<compile_context>
chip_gen: v7x
topology: tpu7x:2x2x1
jax: 0.10.0
libtpu: 0.0.40
codegen_flags: <defaults>
</compile_context>

<pallas_src>
import functools
from collections import namedtuple

import jax
import jax.numpy as jnp
from jax import lax
from jax.experimental import pallas as pl
from jax.experimental.pallas import tpu as pltpu

LANE = 128
SUBLANE = 8

Meta = namedtuple("Meta", ["offsets", "dout"])


def _round_up(x, m):
    return (x + m - 1) // m * m


def _default_num_batch_tiles():
    """One batch tile per TensorCore: v5e/v6e have 1 TC per chip, v7x has 2."""
    try:
        kind = jax.devices()[0].device_kind.lower()
    except Exception:
        return 1
    return 2 if "v7" in kind else 1


# ---------------------------------------------------------------------------
# Pallas kernel: combined multi-hot -> one MXU dot -> +b1 -> relu -> @W2^T + b2
# ---------------------------------------------------------------------------
def _fused_kernel(feat_ref, m_ref, b1_ref, w2t_ref, b2_ref, o_ref):
    # feat_ref: (tb, W) int32, already offset-shifted so column p indexes rows
    #   [offsets[p], offsets[p] + vocab_p) of the folded table M.
    feat = feat_ref[...]
    tb, n_pos = feat.shape
    v_tot = m_ref.shape[0]

    # Single iota, hoisted out of the (tiny, static) column loop.
    col = lax.broadcasted_iota(jnp.int32, (tb, v_tot), 1)

    # Combined multi-hot: positions own disjoint row ranges of M, so boolean OR
    # of the per-column matches equals the sum of per-position one-hots.
    hit = col == feat[:, 0:1]
    for p in range(1, n_pos):
        hit = hit | (col == feat[:, p:p + 1])
    onehot = hit.astype(jnp.float32)                       # (tb, v_tot)

    # One MXU contraction replaces the previous per-position gather/dot loop;
    # mathematically identical to gather -> concat -> first Linear.
    h = jnp.dot(onehot, m_ref[...], preferred_element_type=jnp.float32)
    h = jnp.maximum(h + b1_ref[...], 0.0)                  # bias + relu, f32
    out = jnp.dot(h, w2t_ref[...], preferred_element_type=jnp.float32)
    o_ref[...] = (out + b2_ref[...]).astype(o_ref.dtype)   # lane-dense store


@functools.partial(jax.jit, static_argnames=("meta", "block_b"))
def _fused_forward(features, m, b1, w2t, b2, *, meta, block_b):
    """features: (B, W) int. Returns (B, 1, output_dim) f32."""
    B, W = features.shape
    v_tot, h_pad = m.shape
    dout_pad = w2t.shape[1]

    B_pad = _round_up(B, block_b)
    # Offset-shift each column into its row range of M (fuses with the cast).
    feats = features.astype(jnp.int32) + jnp.asarray(meta.offsets, jnp.int32)[None, :]
    if B_pad != B:                                  # skip the pad when unneeded
        feats = jnp.pad(feats, ((0, B_pad - B), (0, 0)))   # pad rows select row 0
    grid = (B_pad // block_b,)

    out = pl.pallas_call(
        _fused_kernel,
        out_shape=jax.ShapeDtypeStruct((B_pad, dout_pad), jnp.float32),
        grid_spec=pltpu.PrefetchScalarGridSpec(
            num_scalar_prefetch=0,
            grid=grid,
            in_specs=[
                pl.BlockSpec((block_b, W), lambda i: (i, 0)),       # shifted indices
                pl.BlockSpec((v_tot, h_pad), lambda i: (0, 0)),     # folded tables M
                pl.BlockSpec((1, h_pad), lambda i: (0, 0)),         # b1 (padded)
                pl.BlockSpec((h_pad, dout_pad), lambda i: (0, 0)),  # W2^T (padded)
                pl.BlockSpec((1, dout_pad), lambda i: (0, 0)),      # b2 (padded)
            ],
            out_specs=pl.BlockSpec((block_b, dout_pad), lambda i: (i, 0)),
        ),
        compiler_params=pltpu.CompilerParams(
            dimension_semantics=("parallel",),
        ),
    )(feats, m, b1, w2t, b2)

    # Module interface: (B, 1, output_dim). The trailing slice is tiny
    # (dout_pad=128 keeps the in-kernel store unmasked / lane-dense).
    return out[:B, :meta.dout].reshape(B, 1, meta.dout)


def fused_tagger_forward(features, fused, *, meta, num_batch_tiles=None):
    B = features.shape[0]
    if num_batch_tiles is None:
        num_batch_tiles = _default_num_batch_tiles()
    block_b = _round_up(pl.cdiv(B, max(1, num_batch_tiles)), SUBLANE)
    return _fused_forward(features, fused["m"], fused["b1"], fused["w2t"],
                          fused["b2"], meta=meta, block_b=block_b)


# ---------------------------------------------------------------------------
# Parameters (torch-equivalent init) and one-time kernel-layout preparation
# ---------------------------------------------------------------------------
def init_params(key, embedding_specs, hidden_dim, output_dim):
    params = {"embeddings": []}
    linear_input = 0
    for (n_inst, vocab, dim) in embedding_specs:
        key, sub = jax.random.split(key)
        # nn.Embedding weight ~ Normal(0, 0.01)
        emb = 0.01 * jax.random.normal(sub, (vocab, dim), dtype=jnp.float32)
        params["embeddings"].append(emb)
        linear_input += n_inst * dim

    def linear_init(k, fan_in, fan_out):
        # PyTorch nn.Linear default: U(-1/sqrt(fan_in), 1/sqrt(fan_in))
        k1, k2 = jax.random.split(k)
        bound = 1.0 / float(fan_in) ** 0.5
        w = jax.random.uniform(k1, (fan_out, fan_in), jnp.float32, -bound, bound)
        b = jax.random.uniform(k2, (fan_out,), jnp.float32, -bound, bound)
        return w, b

    key, k1, k2 = jax.random.split(key, 3)
    params["w1"], params["b1"] = linear_init(k1, linear_input, hidden_dim)
    params["w2"], params["b2"] = linear_init(k2, hidden_dim, output_dim)
    params["linear_input"] = linear_input
    return params


def prepare_fused_params(params, embedding_specs, hidden_dim, output_dim):
    """One-time packing: fold each window position's table through its W1 slice,
    pad vocab rows to sublane (8) multiples and lane dims to 128, pre-transpose W2."""
    h_pad = _round_up(hidden_dim, LANE)
    dout_pad = _round_up(output_dim, LANE)
    w1 = params["w1"]                                  # (H, D_in) torch layout
    blocks, offsets = [], []
    col = 0
    off = 0
    for i, (n_inst, vocab, dim) in enumerate(embedding_specs):
        table = params["embeddings"][i]                # (vocab, dim)
        for _ in range(n_inst):
            w1_slice = w1[:, col:col + dim].T          # (dim, H)
            m_p = jnp.dot(table, w1_slice, precision=lax.Precision.HIGHEST)
            vp = _round_up(vocab, SUBLANE)             # 8-aligned rows, not 128
            m_p = jnp.pad(m_p, ((0, vp - vocab), (0, h_pad - hidden_dim)))
            blocks.append(m_p)
            offsets.append(off)
            off += vp
            col += dim
    m = jnp.concatenate(blocks, axis=0)                # (sum vpads, h_pad)
    b1 = jnp.pad(params["b1"], (0, h_pad - hidden_dim)).reshape(1, h_pad)
    w2t = jnp.pad(params["w2"].T,
                  ((0, h_pad - hidden_dim), (0, dout_pad - output_dim)))
    b2 = jnp.pad(params["b2"], (0, dout_pad - output_dim)).reshape(1, dout_pad)
    meta = Meta(offsets=tuple(int(o) for o in offsets), dout=int(output_dim))
    fused = {"m": m, "b1": b1, "w2t": w2t, "b2": b2}
    return fused, meta


def reference_forward(params, features, embedding_specs):
    B = features.shape[0]
    index = 0
    pieces = []
    for i, (n_inst, _vocab, dim) in enumerate(embedding_specs):
        idx = features[:, index:index + n_inst]
        emb = jnp.take(params["embeddings"][i], idx, axis=0)
        pieces.append(emb.reshape(B, n_inst * dim))
        index += n_inst
    x = jnp.concatenate(pieces, axis=1)
    h = jnp.maximum(
        jnp.dot(x, params["w1"].T, precision=lax.Precision.HIGHEST) + params["b1"], 0.0)
    o = jnp.dot(h, params["w2"].T, precision=lax.Precision.HIGHEST) + params["b2"]
    return o.reshape(B, 1, -1)


if __name__ == "__main__":
    # embedding_specs = [(window_instances, vocab, embed_dim), ...]
    embedding_specs = [(3, 50, 16), (1, 20, 16)]   # linear_input = 3*16 + 1*16 = 64
    hidden_dim = 32
    output_dim = 32
    batch = 512

    key = jax.random.PRNGKey(0)
    key, pkey = jax.random.split(key)
    params = init_params(pkey, embedding_specs, hidden_dim, output_dim)
    fused, meta = prepare_fused_params(params, embedding_specs, hidden_dim, output_dim)

    # features: int indices, each column bounded by its owning vocab size
    cols = []
    for (n_inst, vocab, _dim) in embedding_specs:
        key, sub = jax.random.split(key)
        cols.append(jax.random.randint(sub, (batch, n_inst), 0, vocab, dtype=jnp.int32))
    features = jnp.concatenate(cols, axis=1)       # (512, 4) int32

    out = fused_tagger_forward(features, fused, meta=meta)
    out = jax.block_until_ready(out)

    ref = reference_forward(params, features, embedding_specs)
    assert out.shape == (batch, 1, output_dim), out.shape
    assert jnp.allclose(out, ref, atol=1e-4, rtol=1e-4), \
        float(jnp.max(jnp.abs(out - ref)))

    print("KERNEL_OK")
</pallas_src>

<mosaic_0001>
module attributes {stable_mosaic.version = 11 : i64} {
  func.func @_fused_kernel(%arg0: i32, %arg1: memref<512x4xi32, #tpu.memory_space<vmem>>, %arg2: memref<192x128xf32, #tpu.memory_space<vmem>>, %arg3: memref<1x128xf32, #tpu.memory_space<vmem>>, %arg4: memref<128x128xf32, #tpu.memory_space<vmem>>, %arg5: memref<1x128xf32, #tpu.memory_space<vmem>>, %arg6: memref<512x128xf32, #tpu.memory_space<vmem>>) attributes {dimension_semantics = [#tpu.dimension_semantics<parallel>], iteration_bounds = array<i64: 1>, scalar_prefetch = 0 : i64, scratch_operands = 0 : i64, tpu.core_type = #tpu.core_type<tc>, window_params = [{transform_indices = @transform_0, window_bounds = array<i64: 512, 4>}, {pipeline_mode = #tpu.pipeline_mode<synchronous>, transform_indices = @transform_1, window_bounds = array<i64: 192, 128>}, {pipeline_mode = #tpu.pipeline_mode<synchronous>, transform_indices = @transform_2, window_bounds = array<i64: 1, 128>}, {pipeline_mode = #tpu.pipeline_mode<synchronous>, transform_indices = @transform_3, window_bounds = array<i64: 128, 128>}, {pipeline_mode = #tpu.pipeline_mode<synchronous>, transform_indices = @transform_4, window_bounds = array<i64: 1, 128>}, {transform_indices = @transform_5, window_bounds = array<i64: 512, 128>}]} {
    %c0 = arith.constant 0 : index
    %c0_0 = arith.constant 0 : index
    %0 = vector.load %arg1[%c0, %c0_0] : memref<512x4xi32, #tpu.memory_space<vmem>>, vector<512x4xi32>
    %1 = tpu.iota {dimensions = array<i32: 1>} : vector<512x192xi32>
    %2 = vector.extract_strided_slice %0 {offsets = [0, 0], sizes = [512, 1], strides = [1, 1]} : vector<512x4xi32> to vector<512x1xi32>
    %3 = vector.broadcast %2 : vector<512x1xi32> to vector<512x192xi32>
    %4 = arith.cmpi eq, %1, %3 : vector<512x192xi32>
    %5 = vector.extract_strided_slice %0 {offsets = [0, 1], sizes = [512, 1], strides = [1, 1]} : vector<512x4xi32> to vector<512x1xi32>
    %6 = vector.broadcast %5 : vector<512x1xi32> to vector<512x192xi32>
    %7 = arith.cmpi eq, %1, %6 : vector<512x192xi32>
    %8 = arith.ori %4, %7 : vector<512x192xi1>
    %9 = vector.extract_strided_slice %0 {offsets = [0, 2], sizes = [512, 1], strides = [1, 1]} : vector<512x4xi32> to vector<512x1xi32>
    %10 = vector.broadcast %9 : vector<512x1xi32> to vector<512x192xi32>
    %11 = arith.cmpi eq, %1, %10 : vector<512x192xi32>
    %12 = arith.ori %8, %11 : vector<512x192xi1>
    %13 = vector.extract_strided_slice %0 {offsets = [0, 3], sizes = [512, 1], strides = [1, 1]} : vector<512x4xi32> to vector<512x1xi32>
    %14 = vector.broadcast %13 : vector<512x1xi32> to vector<512x192xi32>
    %15 = arith.cmpi eq, %1, %14 : vector<512x192xi32>
    %16 = arith.ori %12, %15 : vector<512x192xi1>
    %17 = arith.extui %16 : vector<512x192xi1> to vector<512x192xi32>
    %18 = arith.sitofp %17 : vector<512x192xi32> to vector<512x192xf32>
    %c0_1 = arith.constant 0 : index
    %c0_2 = arith.constant 0 : index
    %19 = vector.load %arg2[%c0_1, %c0_2] : memref<192x128xf32, #tpu.memory_space<vmem>>, vector<192x128xf32>
    %cst = arith.constant dense<0.000000e+00> : vector<512x128xf32>
    %20 = tpu.matmul %18, %19, %cst {dimension_numbers = #tpu.dot_dimension_numbers<[1], [0], [0], [1], [0, 0, 1, 1], [], []>} : vector<512x192xf32>, vector<192x128xf32>, vector<512x128xf32> -> vector<512x128xf32>
    %c0_3 = arith.constant 0 : index
    %c0_4 = arith.constant 0 : index
    %21 = vector.load %arg3[%c0_3, %c0_4] : memref<1x128xf32, #tpu.memory_space<vmem>>, vector<1x128xf32>
    %22 = vector.broadcast %21 : vector<1x128xf32> to vector<512x128xf32>
    %23 = arith.addf %20, %22 : vector<512x128xf32>
    %cst_5 = arith.constant 0.000000e+00 : f32
    %24 = vector.broadcast %cst_5 : f32 to vector<512x128xf32>
    %25 = arith.maximumf %23, %24 : vector<512x128xf32>
    %c0_6 = arith.constant 0 : index
    %c0_7 = arith.constant 0 : index
    %26 = vector.load %arg4[%c0_6, %c0_7] : memref<128x128xf32, #tpu.memory_space<vmem>>, vector<128x128xf32>
    %cst_8 = arith.constant dense<0.000000e+00> : vector<512x128xf32>
    %27 = tpu.matmul %25, %26, %cst_8 {dimension_numbers = #tpu.dot_dimension_numbers<[1], [0], [0], [1], [0, 0, 1, 1], [], []>} : vector<512x128xf32>, vector<128x128xf32>, vector<512x128xf32> -> vector<512x128xf32>
    %c0_9 = arith.constant 0 : index
    %c0_10 = arith.constant 0 : index
    %28 = vector.load %arg5[%c0_9, %c0_10] : memref<1x128xf32, #tpu.memory_space<vmem>>, vector<1x128xf32>
    %29 = vector.broadcast %28 : vector<1x128xf32> to vector<512x128xf32>
    %30 = arith.addf %27, %29 : vector<512x128xf32>
    %c0_11 = arith.constant 0 : index
    %c0_12 = arith.constant 0 : index
    %31 = vector.load %arg6[%c0_11, %c0_12] : memref<512x128xf32, #tpu.memory_space<vmem>>, vector<512x128xf32>
    tpu.vector_store %arg6[%c0_11, %c0_12], %30 {strides = array<i32>} : memref<512x128xf32, #tpu.memory_space<vmem>>, vector<512x128xf32>,
    return
  }
  func.func @transform_0(%arg0: i32) -> (i32, i32) {
    %c0_i32 = arith.constant 0 : i32
    %c0_i32_0 = arith.constant 0 : i32
    return %arg0, %c0_i32 : i32, i32
  }
  func.func @transform_1(%arg0: i32) -> (i32, i32) {
    %c0_i32 = arith.constant 0 : i32
    %c0_i32_0 = arith.constant 0 : i32
    %c0_i32_1 = arith.constant 0 : i32
    return %c0_i32, %c0_i32_0 : i32, i32
  }
  func.func @transform_2(%arg0: i32) -> (i32, i32) {
    %c0_i32 = arith.constant 0 : i32
    %c0_i32_0 = arith.constant 0 : i32
    %c0_i32_1 = arith.constant 0 : i32
    return %c0_i32, %c0_i32_0 : i32, i32
  }
  func.func @transform_3(%arg0: i32) -> (i32, i32) {
    %c0_i32 = arith.constant 0 : i32
    %c0_i32_0 = arith.constant 0 : i32
    %c0_i32_1 = arith.constant 0 : i32
    return %c0_i32, %c0_i32_0 : i32, i32
  }
  func.func @transform_4(%arg0: i32) -> (i32, i32) {
    %c0_i32 = arith.constant 0 : i32
    %c0_i32_0 = arith.constant 0 : i32
    %c0_i32_1 = arith.constant 0 : i32
    return %c0_i32, %c0_i32_0 : i32, i32
  }
  func.func @transform_5(%arg0: i32) -> (i32, i32) {
    %c0_i32 = arith.constant 0 : i32
    %c0_i32_0 = arith.constant 0 : i32
    return %arg0, %c0_i32 : i32, i32
  }
}

</mosaic_0001>

<llo_original>
// kernel: _fused_forward.1
$region0: #{_fused_forward.1}
  #allocation0 [shape = 'u32[]', space=smem, size = 0x4, offset = 0x4, fixed_abs, tag = 'smem constant byte address 0x4 - core index']
  #allocation1 [shape = 'u32[144,128]{1,0:T(1,128)}', space=vmem, size = 0x12000, scoped, tag = 'internal scratch']
  %s0 = inlined_call_operand.vmem [shape: s32[512,4], index: 0, kind: input, shape index: {}]
  %s1 = inlined_call_operand.vmem [shape: f32[192,128], index: 1, kind: input, shape index: {}]
  %s2 = inlined_call_operand.vmem [shape: f32[1,128], index: 2, kind: input, shape index: {}]
  %s3 = inlined_call_operand.vmem [shape: f32[128,128], index: 3, kind: input, shape index: {}]
  %s4 = inlined_call_operand.vmem [shape: f32[1,128], index: 4, kind: input, shape index: {}]
  %s5 = inlined_call_operand.vmem [shape: f32[512,128], index: 5, kind: output, shape index: {}]
  %s6 = sld [smem:[#allocation0]]
  $region30: #{_fused_forward.1} parent=0
    _
  %s8 = ssub.s32 1, %s6
  %s9 = scalar_select 0, %s8, %s6
  // Predicated region
  $region2: #{_fused_forward.1} parent=0 // pred_check
    _
  $region3: #{_fused_forward.1} parent=0 // pred_check_branch
    %11 = sbr.rel (0) target = $region5
  $region4: #{_fused_forward.1} parent=0 // pred_region
    _
  $region5: #{_fused_forward.1} parent=0 // pred_fallthru
    _
  // Predicated region
  $region6: #{_fused_forward.1} parent=0 // pred_check
    _
  $region7: #{_fused_forward.1} parent=0 // pred_check_branch
    %13 = sbr.rel (0) target = $region9
  $region8: #{_fused_forward.1} parent=0 // pred_region
    _
  $region9: #{_fused_forward.1} parent=0 // pred_fallthru
    _
  // Predicated region
  $region10: #{_fused_forward.1} parent=0 // pred_check
    _
  $region11: #{_fused_forward.1} parent=0 // pred_check_branch
    %15 = sbr.rel (0) target = $region13
  $region12: #{_fused_forward.1} parent=0 // pred_region
    _
  $region13: #{_fused_forward.1} parent=0 // pred_fallthru
    _
  // Predicated region
  $region14: #{_fused_forward.1} parent=0 // pred_check
    _
  $region15: #{_fused_forward.1} parent=0 // pred_check_branch
    %17 = sbr.rel (0) target = $region17
  $region16: #{_fused_forward.1} parent=0 // pred_region
    _
  $region17: #{_fused_forward.1} parent=0 // pred_fallthru
    _
  // Predicated region
  $region18: #{_fused_forward.1} parent=0 // pred_check
    _
  $region19: #{_fused_forward.1} parent=0 // pred_check_branch
    %19 = sbr.rel (0) target = $region21
  $region20: #{_fused_forward.1} parent=0 // pred_region
    _
  $region21: #{_fused_forward.1} parent=0 // pred_fallthru
    _
  %v20 = vld [vmem:[%s0] sm:$0xff]
  %v21 = vld [vmem:[%s0 + $0x8] sm:$0xff]
  %v22 = vld [vmem:[%s0 + $0x10] sm:$0xff]
  %v23 = vld [vmem:[%s0 + $0x18] sm:$0xff]
  %v24 = vld [vmem:[%s0 + $0x20] sm:$0xff]
  %v25 = vld [vmem:[%s0 + $0x28] sm:$0xff]
  %v26 = vld [vmem:[%s0 + $0x30] sm:$0xff]
  %v27 = vld [vmem:[%s0 + $0x38] sm:$0xff]
  %v28 = vld [vmem:[%s0 + $0x40] sm:$0xff]
  %v29 = vld [vmem:[%s0 + $0x48] sm:$0xff]
  %v30 = vld [vmem:[%s0 + $0x50] sm:$0xff]
  %v31 = vld [vmem:[%s0 + $0x58] sm:$0xff]
  %v32 = vld [vmem:[%s0 + $0x60] sm:$0xff]
  %v33 = vld [vmem:[%s0 + $0x68] sm:$0xff]
  %v34 = vld [vmem:[%s0 + $0x70] sm:$0xff]
  %v35 = vld [vmem:[%s0 + $0x78] sm:$0xff]
  %v36 = vld [vmem:[%s0 + $0x80] sm:$0xff]
  %v37 = vld [vmem:[%s0 + $0x88] sm:$0xff]
  %v38 = vld [vmem:[%s0 + $0x90] sm:$0xff]
  %v39 = vld [vmem:[%s0 + $0x98] sm:$0xff]
  %v40 = vld [vmem:[%s0 + $0xa0] sm:$0xff]
  %v41 = vld [vmem:[%s0 + $0xa8] sm:$0xff]
  %v42 = vld [vmem:[%s0 + $0xb0] sm:$0xff]
  %v43 = vld [vmem:[%s0 + $0xb8] sm:$0xff]
  %v44 = vld [vmem:[%s0 + $0xc0] sm:$0xff]
  %v45 = vld [vmem:[%s0 + $0xc8] sm:$0xff]
  %v46 = vld [vmem:[%s0 + $0xd0] sm:$0xff]
  %v47 = vld [vmem:[%s0 + $0xd8] sm:$0xff]
  %v48 = vld [vmem:[%s0 + $0xe0] sm:$0xff]
  %v49 = vld [vmem:[%s0 + $0xe8] sm:$0xff]
  %v50 = vld [vmem:[%s0 + $0xf0] sm:$0xff]
  %v51 = vld [vmem:[%s0 + $0xf8] sm:$0xff]
  %v52 = vld [vmem:[%s0 + $0x100] sm:$0xff]
  %v53 = vld [vmem:[%s0 + $0x108] sm:$0xff]
  %v54 = vld [vmem:[%s0 + $0x110] sm:$0xff]
  %v55 = vld [vmem:[%s0 + $0x118] sm:$0xff]
  %v56 = vld [vmem:[%s0 + $0x120] sm:$0xff]
  %v57 = vld [vmem:[%s0 + $0x128] sm:$0xff]
  %v58 = vld [vmem:[%s0 + $0x130] sm:$0xff]
  %v59 = vld [vmem:[%s0 + $0x138] sm:$0xff]
  %v60 = vld [vmem:[%s0 + $0x140] sm:$0xff]
  %v61 = vld [vmem:[%s0 + $0x148] sm:$0xff]
  %v62 = vld [vmem:[%s0 + $0x150] sm:$0xff]
  %v63 = vld [vmem:[%s0 + $0x158] sm:$0xff]
  %v64 = vld [vmem:[%s0 + $0x160] sm:$0xff]
  %v65 = vld [vmem:[%s0 + $0x168] sm:$0xff]
  %v66 = vld [vmem:[%s0 + $0x170] sm:$0xff]
  %v67 = vld [vmem:[%s0 + $0x178] sm:$0xff]
  %v68 = vld [vmem:[%s0 + $0x180] sm:$0xff]
  %v69 = vld [vmem:[%s0 + $0x188] sm:$0xff]
  %v70 = vld [vmem:[%s0 + $0x190] sm:$0xff]
  %v71 = vld [vmem:[%s0 + $0x198] sm:$0xff]
  %v72 = vld [vmem:[%s0 + $0x1a0] sm:$0xff]
  %v73 = vld [vmem:[%s0 + $0x1a8] sm:$0xff]
  %v74 = vld [vmem:[%s0 + $0x1b0] sm:$0xff]
  %v75 = vld [vmem:[%s0 + $0x1b8] sm:$0xff]
  %v76 = vld [vmem:[%s0 + $0x1c0] sm:$0xff]
  %v77 = vld [vmem:[%s0 + $0x1c8] sm:$0xff]
  %v78 = vld [vmem:[%s0 + $0x1d0] sm:$0xff]
  %v79 = vld [vmem:[%s0 + $0x1d8] sm:$0xff]
  %v80 = vld [vmem:[%s0 + $0x1e0] sm:$0xff]
  %v81 = vld [vmem:[%s0 + $0x1e8] sm:$0xff]
  %v82 = vld [vmem:[%s0 + $0x1f0] sm:$0xff]
  %v83 = vld [vmem:[%s0 + $0x1f8] sm:$0xff]
  %v84 = vlaneseq
  %v85 = vand.u32 %v84, 127
  %v86 = vadd.s32 %v85, 128
  %87 = vset.pattern.permute.xlu0 0
  %88 = vperm.xlu0 %87, %v20
  %v89 = vpop.permute.xlu0 %88
  %90 = vset.pattern.permute.xlu0 0
  %91 = vperm.xlu0 %90, %v21
  %v92 = vpop.permute.xlu0 %91
  %93 = vset.pattern.permute.xlu0 0
  %94 = vperm.xlu0 %93, %v22
  %v95 = vpop.permute.xlu0 %94
  %96 = vset.pattern.permute.xlu0 0
  %97 = vperm.xlu0 %96, %v23
  %v98 = vpop.permute.xlu0 %97
  %99 = vset.pattern.permute.xlu0 0
  %100 = vperm.xlu0 %99, %v24
  %v101 = vpop.permute.xlu0 %100
  %102 = vset.pattern.permute.xlu0 0
  %103 = vperm.xlu0 %102, %v25
  %v104 = vpop.permute.xlu0 %103
  %105 = vset.pattern.permute.xlu0 0
  %106 = vperm.xlu0 %105, %v26
  %v107 = vpop.permute.xlu0 %106
  %108 = vset.pattern.permute.xlu0 0
  %109 = vperm.xlu0 %108, %v27
  %v110 = vpop.permute.xlu0 %109
  %111 = vset.pattern.permute.xlu0 0
  %112 = vperm.xlu0 %111, %v28
  %v113 = vpop.permute.xlu0 %112
  %114 = vset.pattern.permute.xlu0 0
  %115 = vperm.xlu0 %114, %v29
  %v116 = vpop.permute.xlu0 %115
  %117 = vset.pattern.permute.xlu0 0
  %118 = vperm.xlu0 %117, %v30
  %v119 = vpop.permute.xlu0 %118
  %120 = vset.pattern.permute.xlu0 0
  %121 = vperm.xlu0 %120, %v31
  %v122 = vpop.permute.xlu0 %121
  %123 = vset.pattern.permute.xlu0 0
  %124 = vperm.xlu0 %123, %v32
  %v125 = vpop.permute.xlu0 %124
  %126 = vset.pattern.permute.xlu0 0
  %127 = vperm.xlu0 %126, %v33
  %v128 = vpop.permute.xlu0 %127
  %129 = vset.pattern.permute.xlu0 0
  %130 = vperm.xlu0 %129, %v34
  %v131 = vpop.permute.xlu0 %130
  %132 = vset.pattern.permute.xlu0 0
  %133 = vperm.xlu0 %132, %v35
  %v134 = vpop.permute.xlu0 %133
  %135 = vset.pattern.permute.xlu0 0
  %136 = vperm.xlu0 %135, %v36
  %v137 = vpop.permute.xlu0 %136
  %138 = vset.pattern.permute.xlu0 0
  %139 = vperm.xlu0 %138, %v37
  %v140 = vpop.permute.xlu0 %139
  %141 = vset.pattern.permute.xlu0 0
  %142 = vperm.xlu0 %141, %v38
  %v143 = vpop.permute.xlu0 %142
  %144 = vset.pattern.permute.xlu0 0
  %145 = vperm.xlu0 %144, %v39
  %v146 = vpop.permute.xlu0 %145
  %147 = vset.pattern.permute.xlu0 0
  %148 = vperm.xlu0 %147, %v40
  %v149 = vpop.permute.xlu0 %148
  %150 = vset.pattern.permute.xlu0 0
  %151 = vperm.xlu0 %150, %v41
  %v152 = vpop.permute.xlu0 %151
  %153 = vset.pattern.permute.xlu0 0
  %154 = vperm.xlu0 %153, %v42
  %v155 = vpop.permute.xlu0 %154
  %156 = vset.pattern.permute.xlu0 0
  %157 = vperm.xlu0 %156, %v43
  %v158 = vpop.permute.xlu0 %157
  %159 = vset.pattern.permute.xlu0 0
  %160 = vperm.xlu0 %159, %v44
  %v161 = vpop.permute.xlu0 %160
  %162 = vset.pattern.permute.xlu0 0
  %163 = vperm.xlu0 %162, %v45
  %v164 = vpop.permute.xlu0 %163
  %165 = vset.pattern.permute.xlu0 0
  %166 = vperm.xlu0 %165, %v46
  %v167 = vpop.permute.xlu0 %166
  %168 = vset.pattern.permute.xlu0 0
  %169 = vperm.xlu0 %168, %v47
  %v170 = vpop.permute.xlu0 %169
  %171 = vset.pattern.permute.xlu0 0
  %172 = vperm.xlu0 %171, %v48
  %v173 = vpop.permute.xlu0 %172
  %174 = vset.pattern.permute.xlu0 0
  %175 = vperm.xlu0 %174, %v49
  %v176 = vpop.permute.xlu0 %175
  %177 = vset.pattern.permute.xlu0 0
  %178 = vperm.xlu0 %177, %v50
  %v179 = vpop.permute.xlu0 %178
  %180 = vset.pattern.permute.xlu0 0
  %181 = vperm.xlu0 %180, %v51
  %v182 = vpop.permute.xlu0 %181
  %183 = vset.pattern.permute.xlu0 0
  %184 = vperm.xlu0 %183, %v52
  %v185 = vpop.permute.xlu0 %184
  %186 = vset.pattern.permute.xlu0 0
  %187 = vperm.xlu0 %186, %v53
  %v188 = vpop.permute.xlu0 %187
  %189 = vset.pattern.permute.xlu0 0
  %190 = vperm.xlu0 %189, %v54
  %v191 = vpop.permute.xlu0 %190
  %192 = vset.pattern.permute.xlu0 0
  %193 = vperm.xlu0 %192, %v55
  %v194 = vpop.permute.xlu0 %193
  %195 = vset.pattern.permute.xlu0 0
  %196 = vperm.xlu0 %195, %v56
  %v197 = vpop.permute.xlu0 %196
  %198 = vset.pattern.permute.xlu0 0
  %199 = vperm.xlu0 %198, %v57
  %v200 = vpop.permute.xlu0 %199
  %201 = vset.pattern.permute.xlu0 0
  %202 = vperm.xlu0 %201, %v58
  %v203 = vpop.permute.xlu0 %202
  %204 = vset.pattern.permute.xlu0 0
  %205 = vperm.xlu0 %204, %v59
  %v206 = vpop.permute.xlu0 %205
  %207 = vset.pattern.permute.xlu0 0
  %208 = vperm.xlu0 %207, %v60
  %v209 = vpop.permute.xlu0 %208
  %210 = vset.pattern.permute.xlu0 0
  %211 = vperm.xlu0 %210, %v61
  %v212 = vpop.permute.xlu0 %211
  %213 = vset.pattern.permute.xlu0 0
  %214 = vperm.xlu0 %213, %v62
  %v215 = vpop.permute.xlu0 %214
  %216 = vset.pattern.permute.xlu0 0
  %217 = vperm.xlu0 %216, %v63
  %v218 = vpop.permute.xlu0 %217
  %219 = vset.pattern.permute.xlu0 0
  %220 = vperm.xlu0 %219, %v64
  %v221 = vpop.permute.xlu0 %220
  %222 = vset.pattern.permute.xlu0 0
  %223 = vperm.xlu0 %222, %v65
  %v224 = vpop.permute.xlu0 %223
  %225 = vset.pattern.permute.xlu0 0
  %226 = vperm.xlu0 %225, %v66
  %v227 = vpop.permute.xlu0 %226
  %228 = vset.pattern.permute.xlu0 0
  %229 = vperm.xlu0 %228, %v67
  %v230 = vpop.permute.xlu0 %229
  %231 = vset.pattern.permute.xlu0 0
  %232 = vperm.xlu0 %231, %v68
  %v233 = vpop.permute.xlu0 %232
  %234 = vset.pattern.permute.xlu0 0
  %235 = vperm.xlu0 %234, %v69
  %v236 = vpop.permute.xlu0 %235
  %237 = vset.pattern.permute.xlu0 0
  %238 = vperm.xlu0 %237, %v70
  %v239 = vpop.permute.xlu0 %238
  %240 = vset.pattern.permute.xlu0 0
  %241 = vperm.xlu0 %240, %v71
  %v242 = vpop.permute.xlu0 %241
  %243 = vset.pattern.permute.xlu0 0
  %244 = vperm.xlu0 %243, %v72
  %v245 = vpop.permute.xlu0 %244
  %246 = vset.pattern.permute.xlu0 0
  %247 = vperm.xlu0 %246, %v73
  %v248 = vpop.permute.xlu0 %247
  %249 = vset.pattern.permute.xlu0 0
  %250 = vperm.xlu0 %249, %v74
  %v251 = vpop.permute.xlu0 %250
  %252 = vset.pattern.permute.xlu0 0
  %253 = vperm.xlu0 %252, %v75
  %v254 = vpop.permute.xlu0 %253
  %255 = vset.pattern.permute.xlu0 0
  %256 = vperm.xlu0 %255, %v76
  %v257 = vpop.permute.xlu0 %256
  %258 = vset.pattern.permute.xlu0 0
  %259 = vperm.xlu0 %258, %v77
  %v260 = vpop.permute.xlu0 %259
  %261 = vset.pattern.permute.xlu0 0
  %262 = vperm.xlu0 %261, %v78
  %v263 = vpop.permute.xlu0 %262
  %264 = vset.pattern.permute.xlu0 0
  %265 = vperm.xlu0 %264, %v79
  %v266 = vpop.permute.xlu0 %265
  %267 = vset.pattern.permute.xlu0 0
  %268 = vperm.xlu0 %267, %v80
  %v269 = vpop.permute.xlu0 %268
  %270 = vset.pattern.permute.xlu0 0
  %271 = vperm.xlu0 %270, %v81
  %v272 = vpop.permute.xlu0 %271
  %273 = vset.pattern.permute.xlu0 0
  %274 = vperm.xlu0 %273, %v82
  %v275 = vpop.permute.xlu0 %274
  %276 = vset.pattern.permute.xlu0 0
  %277 = vperm.xlu0 %276, %v83
  %v278 = vpop.permute.xlu0 %277
  %vm279 = vcmp.eq.s32.totalorder %v85, %v89
  %vm280 = vcmp.eq.s32.totalorder %v86, %v89
  %vm281 = vcmp.eq.s32.totalorder %v85, %v92
  %vm282 = vcmp.eq.s32.totalorder %v86, %v92
  %vm283 = vcmp.eq.s32.totalorder %v85, %v95
  %vm284 = vcmp.eq.s32.totalorder %v86, %v95
  %vm285 = vcmp.eq.s32.totalorder %v85, %v98
  %vm286 = vcmp.eq.s32.totalorder %v86, %v98
  %vm287 = vcmp.eq.s32.totalorder %v85, %v101
  %vm288 = vcmp.eq.s32.totalorder %v86, %v101
  %vm289 = vcmp.eq.s32.totalorder %v85, %v104
  %vm290 = vcmp.eq.s32.totalorder %v86, %v104
  %vm291 = vcmp.eq.s32.totalorder %v85, %v107
  %vm292 = vcmp.eq.s32.totalorder %v86, %v107
  %vm293 = vcmp.eq.s32.totalorder %v85, %v110
  %vm294 = vcmp.eq.s32.totalorder %v86, %v110
  %vm295 = vcmp.eq.s32.totalorder %v85, %v113
  %vm296 = vcmp.eq.s32.totalorder %v86, %v113
  %vm297 = vcmp.eq.s32.totalorder %v85, %v116
  %vm298 = vcmp.eq.s32.totalorder %v86, %v116
  %vm299 = vcmp.eq.s32.totalorder %v85, %v119
  %vm300 = vcmp.eq.s32.totalorder %v86, %v119
  %vm301 = vcmp.eq.s32.totalorder %v85, %v122
  %vm302 = vcmp.eq.s32.totalorder %v86, %v122
  %vm303 = vcmp.eq.s32.totalorder %v85, %v125
  %vm304 = vcmp.eq.s32.totalorder %v86, %v125
  %vm305 = vcmp.eq.s32.totalorder %v85, %v128
  %vm306 = vcmp.eq.s32.totalorder %v86, %v128
  %vm307 = vcmp.eq.s32.totalorder %v85, %v131
  %vm308 = vcmp.eq.s32.totalorder %v86, %v131
  %vm309 = vcmp.eq.s32.totalorder %v85, %v134
  %vm310 = vcmp.eq.s32.totalorder %v86, %v134
  %vm311 = vcmp.eq.s32.totalorder %v85, %v137
  %vm312 = vcmp.eq.s32.totalorder %v86, %v137
  %vm313 = vcmp.eq.s32.totalorder %v85, %v140
  %vm314 = vcmp.eq.s32.totalorder %v86, %v140
  %vm315 = vcmp.eq.s32.totalorder %v85, %v143
  %vm316 = vcmp.eq.s32.totalorder %v86, %v143
  %vm317 = vcmp.eq.s32.totalorder %v85, %v146
  %vm318 = vcmp.eq.s32.totalorder %v86, %v146
  %vm319 = vcmp.eq.s32.totalorder %v85, %v149
  %vm320 = vcmp.eq.s32.totalorder %v86, %v149
  %vm321 = vcmp.eq.s32.totalorder %v85, %v152
  %vm322 = vcmp.eq.s32.totalorder %v86, %v152
  %vm323 = vcmp.eq.s32.totalorder %v85, %v155
  %vm324 = vcmp.eq.s32.totalorder %v86, %v155
  %vm325 = vcmp.eq.s32.totalorder %v85, %v158
  %vm326 = vcmp.eq.s32.totalorder %v86, %v158
  %vm327 = vcmp.eq.s32.totalorder %v85, %v161
  %vm328 = vcmp.eq.s32.totalorder %v86, %v161
  %vm329 = vcmp.eq.s32.totalorder %v85, %v164
  %vm330 = vcmp.eq.s32.totalorder %v86, %v164
  %vm331 = vcmp.eq.s32.totalorder %v85, %v167
  %vm332 = vcmp.eq.s32.totalorder %v86, %v167
  %vm333 = vcmp.eq.s32.totalorder %v85, %v170
  %vm334 = vcmp.eq.s32.totalorder %v86, %v170
  %vm335 = vcmp.eq.s32.totalorder %v85, %v173
  %vm336 = vcmp.eq.s32.totalorder %v86, %v173
  %vm337 = vcmp.eq.s32.totalorder %v85, %v176
  %vm338 = vcmp.eq.s32.totalorder %v86, %v176
  %vm339 = vcmp.eq.s32.totalorder %v85, %v179
  %vm340 = vcmp.eq.s32.totalorder %v86, %v179
  %vm341 = vcmp.eq.s32.totalorder %v85, %v182
  %vm342 = vcmp.eq.s32.totalorder %v86, %v182
  %vm343 = vcmp.eq.s32.totalorder %v85, %v185
  %vm344 = vcmp.eq.s32.totalorder %v86, %v185
  %vm345 = vcmp.eq.s32.totalorder %v85, %v188
  %vm346 = vcmp.eq.s32.totalorder %v86, %v188
  %vm347 = vcmp.eq.s32.totalorder %v85, %v191
  %vm348 = vcmp.eq.s32.totalorder %v86, %v191
  %vm349 = vcmp.eq.s32.totalorder %v85, %v194
  %vm350 = vcmp.eq.s32.totalorder %v86, %v194
  %vm351 = vcmp.eq.s32.totalorder %v85, %v197
  %vm352 = vcmp.eq.s32.totalorder %v86, %v197
  %vm353 = vcmp.eq.s32.totalorder %v85, %v200
  %vm354 = vcmp.eq.s32.totalorder %v86, %v200
  %vm355 = vcmp.eq.s32.totalorder %v85, %v203
  %vm356 = vcmp.eq.s32.totalorder %v86, %v203
  %vm357 = vcmp.eq.s32.totalorder %v85, %v206
  %vm358 = vcmp.eq.s32.totalorder %v86, %v206
  %vm359 = vcmp.eq.s32.totalorder %v85, %v209
  %vm360 = vcmp.eq.s32.totalorder %v86, %v209
  %vm361 = vcmp.eq.s32.totalorder %v85, %v212
  %vm362 = vcmp.eq.s32.totalorder %v86, %v212
  %vm363 = vcmp.eq.s32.totalorder %v85, %v215
  %vm364 = vcmp.eq.s32.totalorder %v86, %v215
  %vm365 = vcmp.eq.s32.totalorder %v85, %v218
  %vm366 = vcmp.eq.s32.totalorder %v86, %v218
  %vm367 = vcmp.eq.s32.totalorder %v85, %v221
  %vm368 = vcmp.eq.s32.totalorder %v86, %v221
  %vm369 = vcmp.eq.s32.totalorder %v85, %v224
  %vm370 = vcmp.eq.s32.totalorder %v86, %v224
  %vm371 = vcmp.eq.s32.totalorder %v85, %v227
  %vm372 = vcmp.eq.s32.totalorder %v86, %v227
  %vm373 = vcmp.eq.s32.totalorder %v85, %v230
  %vm374 = vcmp.eq.s32.totalorder %v86, %v230
  %vm375 = vcmp.eq.s32.totalorder %v85, %v233
  %vm376 = vcmp.eq.s32.totalorder %v86, %v233
  %vm377 = vcmp.eq.s32.totalorder %v85, %v236
  %vm378 = vcmp.eq.s32.totalorder %v86, %v236
  %vm379 = vcmp.eq.s32.totalorder %v85, %v239
  %vm380 = vcmp.eq.s32.totalorder %v86, %v239
  %vm381 = vcmp.eq.s32.totalorder %v85, %v242
  %vm382 = vcmp.eq.s32.totalorder %v86, %v242
  %vm383 = vcmp.eq.s32.totalorder %v85, %v245
  %vm384 = vcmp.eq.s32.totalorder %v86, %v245
  %vm385 = vcmp.eq.s32.totalorder %v85, %v248
  %vm386 = vcmp.eq.s32.totalorder %v86, %v248
  %vm387 = vcmp.eq.s32.totalorder %v85, %v251
  %vm388 = vcmp.eq.s32.totalorder %v86, %v251
  %vm389 = vcmp.eq.s32.totalorder %v85, %v254
  %vm390 = vcmp.eq.s32.totalorder %v86, %v254
  %vm391 = vcmp.eq.s32.totalorder %v85, %v257
  %vm392 = vcmp.eq.s32.totalorder %v86, %v257
  %vm393 = vcmp.eq.s32.totalorder %v85, %v260
  %vm394 = vcmp.eq.s32.totalorder %v86, %v260
  %vm395 = vcmp.eq.s32.totalorder %v85, %v263
  %vm396 = vcmp.eq.s32.totalorder %v86, %v263
  %vm397 = vcmp.eq.s32.totalorder %v85, %v266
  %vm398 = vcmp.eq.s32.totalorder %v86, %v266
  %vm399 = vcmp.eq.s32.totalorder %v85, %v269
  %vm400 = vcmp.eq.s32.totalorder %v86, %v269
  %vm401 = vcmp.eq.s32.totalorder %v85, %v272
  %vm402 = vcmp.eq.s32.totalorder %v86, %v272
  %vm403 = vcmp.eq.s32.totalorder %v85, %v275
  %vm404 = vcmp.eq.s32.totalorder %v86, %v275
  %vm405 = vcmp.eq.s32.totalorder %v85, %v278
  %vm406 = vcmp.eq.s32.totalorder %v86, %v278
  %407 = vset.pattern.permute.xlu0 1
  %408 = vperm.xlu0 %407, %v20
  %v409 = vpop.permute.xlu0 %408
  %410 = vset.pattern.permute.xlu0 1
  %411 = vperm.xlu0 %410, %v21
  %v412 = vpop.permute.xlu0 %411
  %413 = vset.pattern.permute.xlu0 1
  %414 = vperm.xlu0 %413, %v22
  %v415 = vpop.permute.xlu0 %414
  %416 = vset.pattern.permute.xlu0 1
  %417 = vperm.xlu0 %416, %v23
  %v418 = vpop.permute.xlu0 %417
  %419 = vset.pattern.permute.xlu0 1
  %420 = vperm.xlu0 %419, %v24
  %v421 = vpop.permute.xlu0 %420
  %422 = vset.pattern.permute.xlu0 1
  %423 = vperm.xlu0 %422, %v25
  %v424 = vpop.permute.xlu0 %423
  %425 = vset.pattern.permute.xlu0 1
  %426 = vperm.xlu0 %425, %v26
  %v427 = vpop.permute.xlu0 %426
  %428 = vset.pattern.permute.xlu0 1
  %429 = vperm.xlu0 %428, %v27
  %v430 = vpop.permute.xlu0 %429
  %431 = vset.pattern.permute.xlu0 1
  %432 = vperm.xlu0 %431, %v28
  %v433 = vpop.permute.xlu0 %432
  %434 = vset.pattern.permute.xlu0 1
  %435 = vperm.xlu0 %434, %v29
  %v436 = vpop.permute.xlu0 %435
  %437 = vset.pattern.permute.xlu0 1
  %438 = vperm.xlu0 %437, %v30
  %v439 = vpop.permute.xlu0 %438
  %440 = vset.pattern.permute.xlu0 1
  %441 = vperm.xlu0 %440, %v31
  %v442 = vpop.permute.xlu0 %441
  %443 = vset.pattern.permute.xlu0 1
  %444 = vperm.xlu0 %443, %v32
  %v445 = vpop.permute.xlu0 %444
  %446 = vset.pattern.permute.xlu0 1
  %447 = vperm.xlu0 %446, %v33
  %v448 = vpop.permute.xlu0 %447
  %449 = vset.pattern.permute.xlu0 1
  %450 = vperm.xlu0 %449, %v34
  %v451 = vpop.permute.xlu0 %450
  %452 = vset.pattern.permute.xlu0 1
  %453 = vperm.xlu0 %452, %v35
  %v454 = vpop.permute.xlu0 %453
  %455 = vset.pattern.permute.xlu0 1
  %456 = vperm.xlu0 %455, %v36
  %v457 = vpop.permute.xlu0 %456
  %458 = vset.pattern.permute.xlu0 1
  %459 = vperm.xlu0 %458, %v37
  %v460 = vpop.permute.xlu0 %459
  %461 = vset.pattern.permute.xlu0 1
  %462 = vperm.xlu0 %461, %v38
  %v463 = vpop.permute.xlu0 %462
  %464 = vset.pattern.permute.xlu0 1
  %465 = vperm.xlu0 %464, %v39
  %v466 = vpop.permute.xlu0 %465
  %467 = vset.pattern.permute.xlu0 1
  %468 = vperm.xlu0 %467, %v40
  %v469 = vpop.permute.xlu0 %468
  %470 = vset.pattern.permute.xlu0 1
  %471 = vperm.xlu0 %470, %v41
  %v472 = vpop.permute.xlu0 %471
  %473 = vset.pattern.permute.xlu0 1
  %474 = vperm.xlu0 %473, %v42
  %v475 = vpop.permute.xlu0 %474
  %476 = vset.pattern.permute.xlu0 1
  %477 = vperm.xlu0 %476, %v43
  %v478 = vpop.permute.xlu0 %477
  %479 = vset.pattern.permute.xlu0 1
  %480 = vperm.xlu0 %479, %v44
  %v481 = vpop.permute.xlu0 %480
  %482 = vset.pattern.permute.xlu0 1
  %483 = vperm.xlu0 %482, %v45
  %v484 = vpop.permute.xlu0 %483
  %485 = vset.pattern.permute.xlu0 1
  %486 = vperm.xlu0 %485, %v46
  %v487 = vpop.permute.xlu0 %486
  %488 = vset.pattern.permute.xlu0 1
  %489 = vperm.xlu0 %488, %v47
  %v490 = vpop.permute.xlu0 %489
  %491 = vset.pattern.permute.xlu0 1
  %492 = vperm.xlu0 %491, %v48
  %v493 = vpop.permute.xlu0 %492
  %494 = vset.pattern.permute.xlu0 1
  %495 = vperm.xlu0 %494, %v49
  %v496 = vpop.permute.xlu0 %495
  %497 = vset.pattern.permute.xlu0 1
  %498 = vperm.xlu0 %497, %v50
  %v499 = vpop.permute.xlu0 %498
  %500 = vset.pattern.permute.xlu0 1
  %501 = vperm.xlu0 %500, %v51
  %v502 = vpop.permute.xlu0 %501
  %503 = vset.pattern.permute.xlu0 1
  %504 = vperm.xlu0 %503, %v52
  %v505 = vpop.permute.xlu0 %504
  %506 = vset.pattern.permute.xlu0 1
  %507 = vperm.xlu0 %506, %v53
  %v508 = vpop.permute.xlu0 %507
  %509 = vset.pattern.permute.xlu0 1
  %510 = vperm.xlu0 %509, %v54
  %v511 = vpop.permute.xlu0 %510
  %512 = vset.pattern.permute.xlu0 1
  %513 = vperm.xlu0 %512, %v55
  %v514 = vpop.permute.xlu0 %513
  %515 = vset.pattern.permute.xlu0 1
  %516 = vperm.xlu0 %515, %v56
  %v517 = vpop.permute.xlu0 %516
  %518 = vset.pattern.permute.xlu0 1
  %519 = vperm.xlu0 %518, %v57
  %v520 = vpop.permute.xlu0 %519
  %521 = vset.pattern.permute.xlu0 1
  %522 = vperm.xlu0 %521, %v58
  %v523 = vpop.permute.xlu0 %522
  %524 = vset.pattern.permute.xlu0 1
  %525 = vperm.xlu0 %524, %v59
  %v526 = vpop.permute.xlu0 %525
  %527 = vset.pattern.permute.xlu0 1
  %528 = vperm.xlu0 %527, %v60
  %v529 = vpop.permute.xlu0 %528
  %530 = vset.pattern.permute.xlu0 1
  %531 = vperm.xlu0 %530, %v61
  %v532 = vpop.permute.xlu0 %531
  %533 = vset.pattern.permute.xlu0 1
  %534 = vperm.xlu0 %533, %v62
  %v535 = vpop.permute.xlu0 %534
  %536 = vset.pattern.permute.xlu0 1
  %537 = vperm.xlu0 %536, %v63
  %v538 = vpop.permute.xlu0 %537
  %539 = vset.pattern.permute.xlu0 1
  %540 = vperm.xlu0 %539, %v64
  %v541 = vpop.permute.xlu0 %540
  %542 = vset.pattern.permute.xlu0 1
  %543 = vperm.xlu0 %542, %v65
  %v544 = vpop.permute.xlu0 %543
  %545 = vset.pattern.permute.xlu0 1
  %546 = vperm.xlu0 %545, %v66
  %v547 = vpop.permute.xlu0 %546
  %548 = vset.pattern.permute.xlu0 1
  %549 = vperm.xlu0 %548, %v67
  %v550 = vpop.permute.xlu0 %549
  %551 = vset.pattern.permute.xlu0 1
  %552 = vperm.xlu0 %551, %v68
  %v553 = vpop.permute.xlu0 %552
  %554 = vset.pattern.permute.xlu0 1
  %555 = vperm.xlu0 %554, %v69
  %v556 = vpop.permute.xlu0 %555
  %557 = vset.pattern.permute.xlu0 1
  %558 = vperm.xlu0 %557, %v70
  %v559 = vpop.permute.xlu0 %558
  %560 = vset.pattern.permute.xlu0 1
  %561 = vperm.xlu0 %560, %v71
  %v562 = vpop.permute.xlu0 %561
  %563 = vset.pattern.permute.xlu0 1
  %564 = vperm.xlu0 %563, %v72
  %v565 = vpop.permute.xlu0 %564
  %566 = vset.pattern.permute.xlu0 1
  %567 = vperm.xlu0 %566, %v73
  %v568 = vpop.permute.xlu0 %567
  %569 = vset.pattern.permute.xlu0 1
  %570 = vperm.xlu0 %569, %v74
  %v571 = vpop.permute.xlu0 %570
  %572 = vset.pattern.permute.xlu0 1
  %573 = vperm.xlu0 %572, %v75
  %v574 = vpop.permute.xlu0 %573
  %575 = vset.pattern.permute.xlu0 1
  %576 = vperm.xlu0 %575, %v76
  %v577 = vpop.permute.xlu0 %576
  %578 = vset.pattern.permute.xlu0 1
  %579 = vperm.xlu0 %578, %v77
  %v580 = vpop.permute.xlu0 %579
  %581 = vset.pattern.permute.xlu0 1
  %582 = vperm.xlu0 %581, %v78
  %v583 = vpop.permute.xlu0 %582
  %584 = vset.pattern.permute.xlu0 1
  %585 = vperm.xlu0 %584, %v79
  %v586 = vpop.permute.xlu0 %585
  %587 = vset.pattern.permute.xlu0 1
  %588 = vperm.xlu0 %587, %v80
  %v589 = vpop.permute.xlu0 %588
  %590 = vset.pattern.permute.xlu0 1
  %591 = vperm.xlu0 %590, %v81
  %v592 = vpop.permute.xlu0 %591
  %593 = vset.pattern.permute.xlu0 1
  %594 = vperm.xlu0 %593, %v82
  %v595 = vpop.permute.xlu0 %594
  %596 = vset.pattern.permute.xlu0 1
  %597 = vperm.xlu0 %596, %v83
  %v598 = vpop.permute.xlu0 %597
  %vm599 = vcmp.eq.s32.totalorder %v85, %v409
  %vm600 = vcmp.eq.s32.totalorder %v86, %v409
  %vm601 = vcmp.eq.s32.totalorder %v85, %v412
  %vm602 = vcmp.eq.s32.totalorder %v86, %v412
  %vm603 = vcmp.eq.s32.totalorder %v85, %v415
  %vm604 = vcmp.eq.s32.totalorder %v86, %v415
  %vm605 = vcmp.eq.s32.totalorder %v85, %v418
  %vm606 = vcmp.eq.s32.totalorder %v86, %v418
  %vm607 = vcmp.eq.s32.totalorder %v85, %v421
  %vm608 = vcmp.eq.s32.totalorder %v86, %v421
  %vm609 = vcmp.eq.s32.totalorder %v85, %v424
  %vm610 = vcmp.eq.s32.totalorder %v86, %v424
  %vm611 = vcmp.eq.s32.totalorder %v85, %v427
  %vm612 = vcmp.eq.s32.totalorder %v86, %v427
  %vm613 = vcmp.eq.s32.totalorder %v85, %v430
  %vm614 = vcmp.eq.s32.totalorder %v86, %v430
  %vm615 = vcmp.eq.s32.totalorder %v85, %v433
  %vm616 = vcmp.eq.s32.totalorder %v86, %v433
  %vm617 = vcmp.eq.s32.totalorder %v85, %v436
  %vm618 = vcmp.eq.s32.totalorder %v86, %v436
  %vm619 = vcmp.eq.s32.totalorder %v85, %v439
  %vm620 = vcmp.eq.s32.totalorder %v86, %v439
  %vm621 = vcmp.eq.s32.totalorder %v85, %v442
  %vm622 = vcmp.eq.s32.totalorder %v86, %v442
  %vm623 = vcmp.eq.s32.totalorder %v85, %v445
  %vm624 = vcmp.eq.s32.totalorder %v86, %v445
  %vm625 = vcmp.eq.s32.totalorder %v85, %v448
  %vm626 = vcmp.eq.s32.totalorder %v86, %v448
  %vm627 = vcmp.eq.s32.totalorder %v85, %v451
  %vm628 = vcmp.eq.s32.totalorder %v86, %v451
  %vm629 = vcmp.eq.s32.totalorder %v85, %v454
  %vm630 = vcmp.eq.s32.totalorder %v86, %v454
  %vm631 = vcmp.eq.s32.totalorder %v85, %v457
  %vm632 = vcmp.eq.s32.totalorder %v86, %v457
  %vm633 = vcmp.eq.s32.totalorder %v85, %v460
  %vm634 = vcmp.eq.s32.totalorder %v86, %v460
  %vm635 = vcmp.eq.s32.totalorder %v85, %v463
  %vm636 = vcmp.eq.s32.totalorder %v86, %v463
  %vm637 = vcmp.eq.s32.totalorder %v85, %v466
  %vm638 = vcmp.eq.s32.totalorder %v86, %v466
  %vm639 = vcmp.eq.s32.totalorder %v85, %v469
  %vm640 = vcmp.eq.s32.totalorder %v86, %v469
  %vm641 = vcmp.eq.s32.totalorder %v85, %v472
  %vm642 = vcmp.eq.s32.totalorder %v86, %v472
  %vm643 = vcmp.eq.s32.totalorder %v85, %v475
  %vm644 = vcmp.eq.s32.totalorder %v86, %v475
  %vm645 = vcmp.eq.s32.totalorder %v85, %v478
  %vm646 = vcmp.eq.s32.totalorder %v86, %v478
  %vm647 = vcmp.eq.s32.totalorder %v85, %v481
  %vm648 = vcmp.eq.s32.totalorder %v86, %v481
  %vm649 = vcmp.eq.s32.totalorder %v85, %v484
  %vm650 = vcmp.eq.s32.totalorder %v86, %v484
  %vm651 = vcmp.eq.s32.totalorder %v85, %v487
  %vm652 = vcmp.eq.s32.totalorder %v86, %v487
  %vm653 = vcmp.eq.s32.totalorder %v85, %v490
  %vm654 = vcmp.eq.s32.totalorder %v86, %v490
  %vm655 = vcmp.eq.s32.totalorder %v85, %v493
  %vm656 = vcmp.eq.s32.totalorder %v86, %v493
  %vm657 = vcmp.eq.s32.totalorder %v85, %v496
  %vm658 = vcmp.eq.s32.totalorder %v86, %v496
  %vm659 = vcmp.eq.s32.totalorder %v85, %v499
  %vm660 = vcmp.eq.s32.totalorder %v86, %v499
  %vm661 = vcmp.eq.s32.totalorder %v85, %v502
  %vm662 = vcmp.eq.s32.totalorder %v86, %v502
  %vm663 = vcmp.eq.s32.totalorder %v85, %v505
  %vm664 = vcmp.eq.s32.totalorder %v86, %v505
  %vm665 = vcmp.eq.s32.totalorder %v85, %v508
  %vm666 = vcmp.eq.s32.totalorder %v86, %v508
  %vm667 = vcmp.eq.s32.totalorder %v85, %v511
  %vm668 = vcmp.eq.s32.totalorder %v86, %v511
  %vm669 = vcmp.eq.s32.totalorder %v85, %v514
  %vm670 = vcmp.eq.s32.totalorder %v86, %v514
  %vm671 = vcmp.eq.s32.totalorder %v85, %v517
  %vm672 = vcmp.eq.s32.totalorder %v86, %v517
  %vm673 = vcmp.eq.s32.totalorder %v85, %v520
  %vm674 = vcmp.eq.s32.totalorder %v86, %v520
  %vm675 = vcmp.eq.s32.totalorder %v85, %v523
  %vm676 = vcmp.eq.s32.totalorder %v86, %v523
  %vm677 = vcmp.eq.s32.totalorder %v85, %v526
  %vm678 = vcmp.eq.s32.totalorder %v86, %v526
  %vm679 = vcmp.eq.s32.totalorder %v85, %v529
  %vm680 = vcmp.eq.s32.totalorder %v86, %v529
  %vm681 = vcmp.eq.s32.totalorder %v85, %v532
  %vm682 = vcmp.eq.s32.totalorder %v86, %v532
  %vm683 = vcmp.eq.s32.totalorder %v85, %v535
  %vm684 = vcmp.eq.s32.totalorder %v86, %v535
  %vm685 = vcmp.eq.s32.totalorder %v85, %v538
  %vm686 = vcmp.eq.s32.totalorder %v86, %v538
  %vm687 = vcmp.eq.s32.totalorder %v85, %v541
  %vm688 = vcmp.eq.s32.totalorder %v86, %v541
  %vm689 = vcmp.eq.s32.totalorder %v85, %v544
  %vm690 = vcmp.eq.s32.totalorder %v86, %v544
  %vm691 = vcmp.eq.s32.totalorder %v85, %v547
  %vm692 = vcmp.eq.s32.totalorder %v86, %v547
  %vm693 = vcmp.eq.s32.totalorder %v85, %v550
  %vm694 = vcmp.eq.s32.totalorder %v86, %v550
  %vm695 = vcmp.eq.s32.totalorder %v85, %v553
  %vm696 = vcmp.eq.s32.totalorder %v86, %v553
  %vm697 = vcmp.eq.s32.totalorder %v85, %v556
  %vm698 = vcmp.eq.s32.totalorder %v86, %v556
  %vm699 = vcmp.eq.s32.totalorder %v85, %v559
  %vm700 = vcmp.eq.s32.totalorder %v86, %v559
  %vm701 = vcmp.eq.s32.totalorder %v85, %v562
  %vm702 = vcmp.eq.s32.totalorder %v86, %v562
  %vm703 = vcmp.eq.s32.totalorder %v85, %v565
  %vm704 = vcmp.eq.s32.totalorder %v86, %v565
  %vm705 = vcmp.eq.s32.totalorder %v85, %v568
  %vm706 = vcmp.eq.s32.totalorder %v86, %v568
  %vm707 = vcmp.eq.s32.totalorder %v85, %v571
  %vm708 = vcmp.eq.s32.totalorder %v86, %v571
  %vm709 = vcmp.eq.s32.totalorder %v85, %v574
  %vm710 = vcmp.eq.s32.totalorder %v86, %v574
  %vm711 = vcmp.eq.s32.totalorder %v85, %v577
  %vm712 = vcmp.eq.s32.totalorder %v86, %v577
  %vm713 = vcmp.eq.s32.totalorder %v85, %v580
  %vm714 = vcmp.eq.s32.totalorder %v86, %v580
  %vm715 = vcmp.eq.s32.totalorder %v85, %v583
  %vm716 = vcmp.eq.s32.totalorder %v86, %v583
  %vm717 = vcmp.eq.s32.totalorder %v85, %v586
  %vm718 = vcmp.eq.s32.totalorder %v86, %v586
  %vm719 = vcmp.eq.s32.totalorder %v85, %v589
  %vm720 = vcmp.eq.s32.totalorder %v86, %v589
  %vm721 = vcmp.eq.s32.totalorder %v85, %v592
  %vm722 = vcmp.eq.s32.totalorder %v86, %v592
  %vm723 = vcmp.eq.s32.totalorder %v85, %v595
  %vm724 = vcmp.eq.s32.totalorder %v86, %v595
  %vm725 = vcmp.eq.s32.totalorder %v85, %v598
  %vm726 = vcmp.eq.s32.totalorder %v86, %v598
  %vm727 = vmor %vm279, %vm599
  %vm728 = vmor %vm280, %vm600
  %vm729 = vmor %vm281, %vm601
  %vm730 = vmor %vm282, %vm602
  %vm731 = vmor %vm283, %vm603
  %vm732 = vmor %vm284, %vm604
  %vm733 = vmor %vm285, %vm605
  %vm734 = vmor %vm286, %vm606
  %vm735 = vmor %vm287, %vm607
  %vm736 = vmor %vm288, %vm608
  %vm737 = vmor %vm289, %vm609
  %vm738 = vmor %vm290, %vm610
  %vm739 = vmor %vm291, %vm611
  %vm740 = vmor %vm292, %vm612
  %vm741 = vmor %vm293, %vm613
  %vm742 = vmor %vm294, %vm614
  %vm743 = vmor %vm295, %vm615
  %vm744 = vmor %vm296, %vm616
  %vm745 = vmor %vm297, %vm617
  %vm746 = vmor %vm298, %vm618
  %vm747 = vmor %vm299, %vm619
  %vm748 = vmor %vm300, %vm620
  %vm749 = vmor %vm301, %vm621
  %vm750 = vmor %vm302, %vm622
  %vm751 = vmor %vm303, %vm623
  %vm752 = vmor %vm304, %vm624
  %vm753 = vmor %vm305, %vm625
  %vm754 = vmor %vm306, %vm626
  %vm755 = vmor %vm307, %vm627
  %vm756 = vmor %vm308, %vm628
  %vm757 = vmor %vm309, %vm629
  %vm758 = vmor %vm310, %vm630
  %vm759 = vmor %vm311, %vm631
  %vm760 = vmor %vm312, %vm632
  %vm761 = vmor %vm313, %vm633
  %vm762 = vmor %vm314, %vm634
  %vm763 = vmor %vm315, %vm635
  %vm764 = vmor %vm316, %vm636
  %vm765 = vmor %vm317, %vm637
  %vm766 = vmor %vm318, %vm638
  %vm767 = vmor %vm319, %vm639
  %vm768 = vmor %vm320, %vm640
  %vm769 = vmor %vm321, %vm641
  %vm770 = vmor %vm322, %vm642
  %vm771 = vmor %vm323, %vm643
  %vm772 = vmor %vm324, %vm644
  %vm773 = vmor %vm325, %vm645
  %vm774 = vmor %vm326, %vm646
  %vm775 = vmor %vm327, %vm647
  %vm776 = vmor %vm328, %vm648
  %vm777 = vmor %vm329, %vm649
  %vm778 = vmor %vm330, %vm650
  %vm779 = vmor %vm331, %vm651
  %vm780 = vmor %vm332, %vm652
  %vm781 = vmor %vm333, %vm653
  %vm782 = vmor %vm334, %vm654
  %vm783 = vmor %vm335, %vm655
  %vm784 = vmor %vm336, %vm656
  %vm785 = vmor %vm337, %vm657
  %vm786 = vmor %vm338, %vm658
  %vm787 = vmor %vm339, %vm659
  %vm788 = vmor %vm340, %vm660
  %vm789 = vmor %vm341, %vm661
  %vm790 = vmor %vm342, %vm662
  %vm791 = vmor %vm343, %vm663
  %vm792 = vmor %vm344, %vm664
  %vm793 = vmor %vm345, %vm665
  %vm794 = vmor %vm346, %vm666
  %vm795 = vmor %vm347, %vm667
  %vm796 = vmor %vm348, %vm668
  %vm797 = vmor %vm349, %vm669
  %vm798 = vmor %vm350, %vm670
  %vm799 = vmor %vm351, %vm671
  %vm800 = vmor %vm352, %vm672
  %vm801 = vmor %vm353, %vm673
  %vm802 = vmor %vm354, %vm674
  %vm803 = vmor %vm355, %vm675
  %vm804 = vmor %vm356, %vm676
  %vm805 = vmor %vm357, %vm677
  %vm806 = vmor %vm358, %vm678
  %vm807 = vmor %vm359, %vm679
  %vm808 = vmor %vm360, %vm680
  %vm809 = vmor %vm361, %vm681
  %vm810 = vmor %vm362, %vm682
  %vm811 = vmor %vm363, %vm683
  %vm812 = vmor %vm364, %vm684
  %vm813 = vmor %vm365, %vm685
  %vm814 = vmor %vm366, %vm686
  %vm815 = vmor %vm367, %vm687
  %vm816 = vmor %vm368, %vm688
  %vm817 = vmor %vm369, %vm689
  %vm818 = vmor %vm370, %vm690
  %vm819 = vmor %vm371, %vm691
  %vm820 = vmor %vm372, %vm692
  %vm821 = vmor %vm373, %vm693
  %vm822 = vmor %vm374, %vm694
  %vm823 = vmor %vm375, %vm695
  %vm824 = vmor %vm376, %vm696
  %vm825 = vmor %vm377, %vm697
  %vm826 = vmor %vm378, %vm698
  %vm827 = vmor %vm379, %vm699
  %vm828 = vmor %vm380, %vm700
  %vm829 = vmor %vm381, %vm701
  %vm830 = vmor %vm382, %vm702
  %vm831 = vmor %vm383, %vm703
  %vm832 = vmor %vm384, %vm704
  %vm833 = vmor %vm385, %vm705
  %vm834 = vmor %vm386, %vm706
  %vm835 = vmor %vm387, %vm707
  %vm836 = vmor %vm388, %vm708
  %vm837 = vmor %vm389, %vm709
  %vm838 = vmor %vm390, %vm710
  %vm839 = vmor %vm391, %vm711
  %vm840 = vmor %vm392, %vm712
  %vm841 = vmor %vm393, %vm713
  %vm842 = vmor %vm394, %vm714
  %vm843 = vmor %vm395, %vm715
  %vm844 = vmor %vm396, %vm716
  %vm845 = vmor %vm397, %vm717
  %vm846 = vmor %vm398, %vm718
  %vm847 = vmor %vm399, %vm719
  %vm848 = vmor %vm400, %vm720
  %vm849 = vmor %vm401, %vm721
  %vm850 = vmor %vm402, %vm722
  %vm851 = vmor %vm403, %vm723
  %vm852 = vmor %vm404, %vm724
  %vm853 = vmor %vm405, %vm725
  %vm854 = vmor %vm406, %vm726
  %855 = vset.pattern.permute.xlu0 2
  %856 = vperm.xlu0 %855, %v20
  %v857 = vpop.permute.xlu0 %856
  %858 = vset.pattern.permute.xlu0 2
  %859 = vperm.xlu0 %858, %v21
  %v860 = vpop.permute.xlu0 %859
  %861 = vset.pattern.permute.xlu0 2
  %862 = vperm.xlu0 %861, %v22
  %v863 = vpop.permute.xlu0 %862
  %864 = vset.pattern.permute.xlu0 2
  %865 = vperm.xlu0 %864, %v23
  %v866 = vpop.permute.xlu0 %865
  %867 = vset.pattern.permute.xlu0 2
  %868 = vperm.xlu0 %867, %v24
  %v869 = vpop.permute.xlu0 %868
  %870 = vset.pattern.permute.xlu0 2
  %871 = vperm.xlu0 %870, %v25
  %v872 = vpop.permute.xlu0 %871
  %873 = vset.pattern.permute.xlu0 2
  %874 = vperm.xlu0 %873, %v26
  %v875 = vpop.permute.xlu0 %874
  %876 = vset.pattern.permute.xlu0 2
  %877 = vperm.xlu0 %876, %v27
  %v878 = vpop.permute.xlu0 %877
  %879 = vset.pattern.permute.xlu0 2
  %880 = vperm.xlu0 %879, %v28
  %v881 = vpop.permute.xlu0 %880
  %882 = vset.pattern.permute.xlu0 2
  %883 = vperm.xlu0 %882, %v29
  %v884 = vpop.permute.xlu0 %883
  %885 = vset.pattern.permute.xlu0 2
  %886 = vperm.xlu0 %885, %v30
  %v887 = vpop.permute.xlu0 %886
  %888 = vset.pattern.permute.xlu0 2
  %889 = vperm.xlu0 %888, %v31
  %v890 = vpop.permute.xlu0 %889
  %891 = vset.pattern.permute.xlu0 2
  %892 = vperm.xlu0 %891, %v32
  %v893 = vpop.permute.xlu0 %892
  %894 = vset.pattern.permute.xlu0 2
  %895 = vperm.xlu0 %894, %v33
  %v896 = vpop.permute.xlu0 %895
  %897 = vset.pattern.permute.xlu0 2
  %898 = vperm.xlu0 %897, %v34
  %v899 = vpop.permute.xlu0 %898
  %900 = vset.pattern.permute.xlu0 2
  %901 = vperm.xlu0 %900, %v35
  %v902 = vpop.permute.xlu0 %901
  %903 = vset.pattern.permute.xlu0 2
  %904 = vperm.xlu0 %903, %v36
  %v905 = vpop.permute.xlu0 %904
  %906 = vset.pattern.permute.xlu0 2
  %907 = vperm.xlu0 %906, %v37
  %v908 = vpop.permute.xlu0 %907
  %909 = vset.pattern.permute.xlu0 2
  %910 = vperm.xlu0 %909, %v38
  %v911 = vpop.permute.xlu0 %910
  %912 = vset.pattern.permute.xlu0 2
  %913 = vperm.xlu0 %912, %v39
  %v914 = vpop.permute.xlu0 %913
  %915 = vset.pattern.permute.xlu0 2
  %916 = vperm.xlu0 %915, %v40
  %v917 = vpop.permute.xlu0 %916
  %918 = vset.pattern.permute.xlu0 2
  %919 = vperm.xlu0 %918, %v41
  %v920 = vpop.permute.xlu0 %919
  %921 = vset.pattern.permute.xlu0 2
  %922 = vperm.xlu0 %921, %v42
  %v923 = vpop.permute.xlu0 %922
  %924 = vset.pattern.permute.xlu0 2
  %925 = vperm.xlu0 %924, %v43
  %v926 = vpop.permute.xlu0 %925
  %927 = vset.pattern.permute.xlu0 2
  %928 = vperm.xlu0 %927, %v44
  %v929 = vpop.permute.xlu0 %928
  %930 = vset.pattern.permute.xlu0 2
  %931 = vperm.xlu0 %930, %v45
  %v932 = vpop.permute.xlu0 %931
  %933 = vset.pattern.permute.xlu0 2
  %934 = vperm.xlu0 %933, %v46
  %v935 = vpop.permute.xlu0 %934
  %936 = vset.pattern.permute.xlu0 2
  %937 = vperm.xlu0 %936, %v47
  %v938 = vpop.permute.xlu0 %937
  %939 = vset.pattern.permute.xlu0 2
  %940 = vperm.xlu0 %939, %v48
  %v941 = vpop.permute.xlu0 %940
  %942 = vset.pattern.permute.xlu0 2
  %943 = vperm.xlu0 %942, %v49
  %v944 = vpop.permute.xlu0 %943
  %945 = vset.pattern.permute.xlu0 2
  %946 = vperm.xlu0 %945, %v50
  %v947 = vpop.permute.xlu0 %946
  %948 = vset.pattern.permute.xlu0 2
  %949 = vperm.xlu0 %948, %v51
  %v950 = vpop.permute.xlu0 %949
  %951 = vset.pattern.permute.xlu0 2
  %952 = vperm.xlu0 %951, %v52
  %v953 = vpop.permute.xlu0 %952
  %954 = vset.pattern.permute.xlu0 2
  %955 = vperm.xlu0 %954, %v53
  %v956 = vpop.permute.xlu0 %955
  %957 = vset.pattern.permute.xlu0 2
  %958 = vperm.xlu0 %957, %v54
  %v959 = vpop.permute.xlu0 %958
  %960 = vset.pattern.permute.xlu0 2
  %961 = vperm.xlu0 %960, %v55
  %v962 = vpop.permute.xlu0 %961
  %963 = vset.pattern.permute.xlu0 2
  %964 = vperm.xlu0 %963, %v56
  %v965 = vpop.permute.xlu0 %964
  %966 = vset.pattern.permute.xlu0 2
  %967 = vperm.xlu0 %966, %v57
  %v968 = vpop.permute.xlu0 %967
  %969 = vset.pattern.permute.xlu0 2
  %970 = vperm.xlu0 %969, %v58
  %v971 = vpop.permute.xlu0 %970
  %972 = vset.pattern.permute.xlu0 2
  %973 = vperm.xlu0 %972, %v59
  %v974 = vpop.permute.xlu0 %973
  %975 = vset.pattern.permute.xlu0 2
  %976 = vperm.xlu0 %975, %v60
  %v977 = vpop.permute.xlu0 %976
  %978 = vset.pattern.permute.xlu0 2
  %979 = vperm.xlu0 %978, %v61
  %v980 = vpop.permute.xlu0 %979
  %981 = vset.pattern.permute.xlu0 2
  %982 = vperm.xlu0 %981, %v62
  %v983 = vpop.permute.xlu0 %982
  %984 = vset.pattern.permute.xlu0 2
  %985 = vperm.xlu0 %984, %v63
  %v986 = vpop.permute.xlu0 %985
  %987 = vset.pattern.permute.xlu0 2
  %988 = vperm.xlu0 %987, %v64
  %v989 = vpop.permute.xlu0 %988
  %990 = vset.pattern.permute.xlu0 2
  %991 = vperm.xlu0 %990, %v65
  %v992 = vpop.permute.xlu0 %991
  %993 = vset.pattern.permute.xlu0 2
  %994 = vperm.xlu0 %993, %v66
  %v995 = vpop.permute.xlu0 %994
  %996 = vset.pattern.permute.xlu0 2
  %997 = vperm.xlu0 %996, %v67
  %v998 = vpop.permute.xlu0 %997
  %999 = vset.pattern.permute.xlu0 2
  %1000 = vperm.xlu0 %999, %v68
  %v1001 = vpop.permute.xlu0 %1000
  %1002 = vset.pattern.permute.xlu0 2
  %1003 = vperm.xlu0 %1002, %v69
  %v1004 = vpop.permute.xlu0 %1003
  %1005 = vset.pattern.permute.xlu0 2
  %1006 = vperm.xlu0 %1005, %v70
  %v1007 = vpop.permute.xlu0 %1006
  %1008 = vset.pattern.permute.xlu0 2
  %1009 = vperm.xlu0 %1008, %v71
  %v1010 = vpop.permute.xlu0 %1009
  %1011 = vset.pattern.permute.xlu0 2
  %1012 = vperm.xlu0 %1011, %v72
  %v1013 = vpop.permute.xlu0 %1012
  %1014 = vset.pattern.permute.xlu0 2
  %1015 = vperm.xlu0 %1014, %v73
  %v1016 = vpop.permute.xlu0 %1015
  %1017 = vset.pattern.permute.xlu0 2
  %1018 = vperm.xlu0 %1017, %v74
  %v1019 = vpop.permute.xlu0 %1018
  %1020 = vset.pattern.permute.xlu0 2
  %1021 = vperm.xlu0 %1020, %v75
  %v1022 = vpop.permute.xlu0 %1021
  %1023 = vset.pattern.permute.xlu0 2
  %1024 = vperm.xlu0 %1023, %v76
  %v1025 = vpop.permute.xlu0 %1024
  %1026 = vset.pattern.permute.xlu0 2
  %1027 = vperm.xlu0 %1026, %v77
  %v1028 = vpop.permute.xlu0 %1027
  %1029 = vset.pattern.permute.xlu0 2
  %1030 = vperm.xlu0 %1029, %v78
  %v1031 = vpop.permute.xlu0 %1030
  %1032 = vset.pattern.permute.xlu0 2
  %1033 = vperm.xlu0 %1032, %v79
  %v1034 = vpop.permute.xlu0 %1033
  %1035 = vset.pattern.permute.xlu0 2
  %1036 = vperm.xlu0 %1035, %v80
  %v1037 = vpop.permute.xlu0 %1036
  %1038 = vset.pattern.permute.xlu0 2
  %1039 = vperm.xlu0 %1038, %v81
  %v1040 = vpop.permute.xlu0 %1039
  %1041 = vset.pattern.permute.xlu0 2
  %1042 = vperm.xlu0 %1041, %v82
  %v1043 = vpop.permute.xlu0 %1042
  %1044 = vset.pattern.permute.xlu0 2
  %1045 = vperm.xlu0 %1044, %v83
  %v1046 = vpop.permute.xlu0 %1045
  %vm1047 = vcmp.eq.s32.totalorder %v85, %v857
  %vm1048 = vcmp.eq.s32.totalorder %v86, %v857
  %vm1049 = vcmp.eq.s32.totalorder %v85, %v860
  %vm1050 = vcmp.eq.s32.totalorder %v86, %v860
  %vm1051 = vcmp.eq.s32.totalorder %v85, %v863
  %vm1052 = vcmp.eq.s32.totalorder %v86, %v863
  %vm1053 = vcmp.eq.s32.totalorder %v85, %v866
  %vm1054 = vcmp.eq.s32.totalorder %v86, %v866
  %vm1055 = vcmp.eq.s32.totalorder %v85, %v869
  %vm1056 = vcmp.eq.s32.totalorder %v86, %v869
  %vm1057 = vcmp.eq.s32.totalorder %v85, %v872
  %vm1058 = vcmp.eq.s32.totalorder %v86, %v872
  %vm1059 = vcmp.eq.s32.totalorder %v85, %v875
  %vm1060 = vcmp.eq.s32.totalorder %v86, %v875
  %vm1061 = vcmp.eq.s32.totalorder %v85, %v878
  %vm1062 = vcmp.eq.s32.totalorder %v86, %v878
  %vm1063 = vcmp.eq.s32.totalorder %v85, %v881
  %vm1064 = vcmp.eq.s32.totalorder %v86, %v881
  %vm1065 = vcmp.eq.s32.totalorder %v85, %v884
  %vm1066 = vcmp.eq.s32.totalorder %v86, %v884
  %vm1067 = vcmp.eq.s32.totalorder %v85, %v887
  %vm1068 = vcmp.eq.s32.totalorder %v86, %v887
  %vm1069 = vcmp.eq.s32.totalorder %v85, %v890
  %vm1070 = vcmp.eq.s32.totalorder %v86, %v890
  %vm1071 = vcmp.eq.s32.totalorder %v85, %v893
  %vm1072 = vcmp.eq.s32.totalorder %v86, %v893
  %vm1073 = vcmp.eq.s32.totalorder %v85, %v896
  %vm1074 = vcmp.eq.s32.totalorder %v86, %v896
  %vm1075 = vcmp.eq.s32.totalorder %v85, %v899
  %vm1076 = vcmp.eq.s32.totalorder %v86, %v899
  %vm1077 = vcmp.eq.s32.totalorder %v85, %v902
  %vm1078 = vcmp.eq.s32.totalorder %v86, %v902
  %vm1079 = vcmp.eq.s32.totalorder %v85, %v905
  %vm1080 = vcmp.eq.s32.totalorder %v86, %v905
  %vm1081 = vcmp.eq.s32.totalorder %v85, %v908
  %vm1082 = vcmp.eq.s32.totalorder %v86, %v908
  %vm1083 = vcmp.eq.s32.totalorder %v85, %v911
  %vm1084 = vcmp.eq.s32.totalorder %v86, %v911
  %vm1085 = vcmp.eq.s32.totalorder %v85, %v914
  %vm1086 = vcmp.eq.s32.totalorder %v86, %v914
  %vm1087 = vcmp.eq.s32.totalorder %v85, %v917
  %vm1088 = vcmp.eq.s32.totalorder %v86, %v917
  %vm1089 = vcmp.eq.s32.totalorder %v85, %v920
  %vm1090 = vcmp.eq.s32.totalorder %v86, %v920
  %vm1091 = vcmp.eq.s32.totalorder %v85, %v923
  %vm1092 = vcmp.eq.s32.totalorder %v86, %v923
  %vm1093 = vcmp.eq.s32.totalorder %v85, %v926
  %vm1094 = vcmp.eq.s32.totalorder %v86, %v926
  %vm1095 = vcmp.eq.s32.totalorder %v85, %v929
  %vm1096 = vcmp.eq.s32.totalorder %v86, %v929
  %vm1097 = vcmp.eq.s32.totalorder %v85, %v932
  %vm1098 = vcmp.eq.s32.totalorder %v86, %v932
  %vm1099 = vcmp.eq.s32.totalorder %v85, %v935
  %vm1100 = vcmp.eq.s32.totalorder %v86, %v935
  %vm1101 = vcmp.eq.s32.totalorder %v85, %v938
  %vm1102 = vcmp.eq.s32.totalorder %v86, %v938
  %vm1103 = vcmp.eq.s32.totalorder %v85, %v941
  %vm1104 = vcmp.eq.s32.totalorder %v86, %v941
  %vm1105 = vcmp.eq.s32.totalorder %v85, %v944
  %vm1106 = vcmp.eq.s32.totalorder %v86, %v944
  %vm1107 = vcmp.eq.s32.totalorder %v85, %v947
  %vm1108 = vcmp.eq.s32.totalorder %v86, %v947
  %vm1109 = vcmp.eq.s32.totalorder %v85, %v950
  %vm1110 = vcmp.eq.s32.totalorder %v86, %v950
  %vm1111 = vcmp.eq.s32.totalorder %v85, %v953
  %vm1112 = vcmp.eq.s32.totalorder %v86, %v953
  %vm1113 = vcmp.eq.s32.totalorder %v85, %v956
  %vm1114 = vcmp.eq.s32.totalorder %v86, %v956
  %vm1115 = vcmp.eq.s32.totalorder %v85, %v959
  %vm1116 = vcmp.eq.s32.totalorder %v86, %v959
  %vm1117 = vcmp.eq.s32.totalorder %v85, %v962
  %vm1118 = vcmp.eq.s32.totalorder %v86, %v962
  %vm1119 = vcmp.eq.s32.totalorder %v85, %v965
  %vm1120 = vcmp.eq.s32.totalorder %v86, %v965
  %vm1121 = vcmp.eq.s32.totalorder %v85, %v968
  %vm1122 = vcmp.eq.s32.totalorder %v86, %v968
  %vm1123 = vcmp.eq.s32.totalorder %v85, %v971
  %vm1124 = vcmp.eq.s32.totalorder %v86, %v971
  %vm1125 = vcmp.eq.s32.totalorder %v85, %v974
  %vm1126 = vcmp.eq.s32.totalorder %v86, %v974
  %vm1127 = vcmp.eq.s32.totalorder %v85, %v977
  %vm1128 = vcmp.eq.s32.totalorder %v86, %v977
  %vm1129 = vcmp.eq.s32.totalorder %v85, %v980
  %vm1130 = vcmp.eq.s32.totalorder %v86, %v980
  %vm1131 = vcmp.eq.s32.totalorder %v85, %v983
  %vm1132 = vcmp.eq.s32.totalorder %v86, %v983
  %vm1133 = vcmp.eq.s32.totalorder %v85, %v986
  %vm1134 = vcmp.eq.s32.totalorder %v86, %v986
  %vm1135 = vcmp.eq.s32.totalorder %v85, %v989
  %vm1136 = vcmp.eq.s32.totalorder %v86, %v989
  %vm1137 = vcmp.eq.s32.totalorder %v85, %v992
  %vm1138 = vcmp.eq.s32.totalorder %v86, %v992
  %vm1139 = vcmp.eq.s32.totalorder %v85, %v995
  %vm1140 = vcmp.eq.s32.totalorder %v86, %v995
  %vm1141 = vcmp.eq.s32.totalorder %v85, %v998
  %vm1142 = vcmp.eq.s32.totalorder %v86, %v998
  %vm1143 = vcmp.eq.s32.totalorder %v85, %v1001
  %vm1144 = vcmp.eq.s32.totalorder %v86, %v1001
  %vm1145 = vcmp.eq.s32.totalorder %v85, %v1004
  %vm1146 = vcmp.eq.s32.totalorder %v86, %v1004
  %vm1147 = vcmp.eq.s32.totalorder %v85, %v1007
  %vm1148 = vcmp.eq.s32.totalorder %v86, %v1007
  %vm1149 = vcmp.eq.s32.totalorder %v85, %v1010
  %vm1150 = vcmp.eq.s32.totalorder %v86, %v1010
  %vm1151 = vcmp.eq.s32.totalorder %v85, %v1013
  %vm1152 = vcmp.eq.s32.totalorder %v86, %v1013
  %vm1153 = vcmp.eq.s32.totalorder %v85, %v1016
  %vm1154 = vcmp.eq.s32.totalorder %v86, %v1016
  %vm1155 = vcmp.eq.s32.totalorder %v85, %v1019
  %vm1156 = vcmp.eq.s32.totalorder %v86, %v1019
  %vm1157 = vcmp.eq.s32.totalorder %v85, %v1022
  %vm1158 = vcmp.eq.s32.totalorder %v86, %v1022
  %vm1159 = vcmp.eq.s32.totalorder %v85, %v1025
  %vm1160 = vcmp.eq.s32.totalorder %v86, %v1025
  %vm1161 = vcmp.eq.s32.totalorder %v85, %v1028
  %vm1162 = vcmp.eq.s32.totalorder %v86, %v1028
  %vm1163 = vcmp.eq.s32.totalorder %v85, %v1031
  %vm1164 = vcmp.eq.s32.totalorder %v86, %v1031
  %vm1165 = vcmp.eq.s32.totalorder %v85, %v1034
  %vm1166 = vcmp.eq.s32.totalorder %v86, %v1034
  %vm1167 = vcmp.eq.s32.totalorder %v85, %v1037
  %vm1168 = vcmp.eq.s32.totalorder %v86, %v1037
  %vm1169 = vcmp.eq.s32.totalorder %v85, %v1040
  %vm1170 = vcmp.eq.s32.totalorder %v86, %v1040
  %vm1171 = vcmp.eq.s32.totalorder %v85, %v1043
  %vm1172 = vcmp.eq.s32.totalorder %v86, %v1043
  %vm1173 = vcmp.eq.s32.totalorder %v85, %v1046
  %vm1174 = vcmp.eq.s32.totalorder %v86, %v1046
  %vm1175 = vmor %vm727, %vm1047
  %vm1176 = vmor %vm728, %vm1048
  %vm1177 = vmor %vm729, %vm1049
  %vm1178 = vmor %vm730, %vm1050
  %vm1179 = vmor %vm731, %vm1051
  %vm1180 = vmor %vm732, %vm1052
  %vm1181 = vmor %vm733, %vm1053
  %vm1182 = vmor %vm734, %vm1054
  %vm1183 = vmor %vm735, %vm1055
  %vm1184 = vmor %vm736, %vm1056
  %vm1185 = vmor %vm737, %vm1057
  %vm1186 = vmor %vm738, %vm1058
  %vm1187 = vmor %vm739, %vm1059
  %vm1188 = vmor %vm740, %vm1060
  %vm1189 = vmor %vm741, %vm1061
  %vm1190 = vmor %vm742, %vm1062
  %vm1191 = vmor %vm743, %vm1063
  %vm1192 = vmor %vm744, %vm1064
  %vm1193 = vmor %vm745, %vm1065
  %vm1194 = vmor %vm746, %vm1066
  %vm1195 = vmor %vm747, %vm1067
  %vm1196 = vmor %vm748, %vm1068
  %vm1197 = vmor %vm749, %vm1069
  %vm1198 = vmor %vm750, %vm1070
  %vm1199 = vmor %vm751, %vm1071
  %vm1200 = vmor %vm752, %vm1072
  %vm1201 = vmor %vm753, %vm1073
  %vm1202 = vmor %vm754, %vm1074
  %vm1203 = vmor %vm755, %vm1075
  %vm1204 = vmor %vm756, %vm1076
  %vm1205 = vmor %vm757, %vm1077
  %vm1206 = vmor %vm758, %vm1078
  %vm1207 = vmor %vm759, %vm1079
  %vm1208 = vmor %vm760, %vm1080
  %vm1209 = vmor %vm761, %vm1081
  %vm1210 = vmor %vm762, %vm1082
  %vm1211 = vmor %vm763, %vm1083
  %vm1212 = vmor %vm764, %vm1084
  %vm1213 = vmor %vm765, %vm1085
  %vm1214 = vmor %vm766, %vm1086
  %vm1215 = vmor %vm767, %vm1087
  %vm1216 = vmor %vm768, %vm1088
  %vm1217 = vmor %vm769, %vm1089
  %vm1218 = vmor %vm770, %vm1090
  %vm1219 = vmor %vm771, %vm1091
  %vm1220 = vmor %vm772, %vm1092
  %vm1221 = vmor %vm773, %vm1093
  %vm1222 = vmor %vm774, %vm1094
  %vm1223 = vmor %vm775, %vm1095
  %vm1224 = vmor %vm776, %vm1096
  %vm1225 = vmor %vm777, %vm1097
  %vm1226 = vmor %vm778, %vm1098
  %vm1227 = vmor %vm779, %vm1099
  %vm1228 = vmor %vm780, %vm1100
  %vm1229 = vmor %vm781, %vm1101
  %vm1230 = vmor %vm782, %vm1102
  %vm1231 = vmor %vm783, %vm1103
  %vm1232 = vmor %vm784, %vm1104
  %vm1233 = vmor %vm785, %vm1105
  %vm1234 = vmor %vm786, %vm1106
  %vm1235 = vmor %vm787, %vm1107
  %vm1236 = vmor %vm788, %vm1108
  %vm1237 = vmor %vm789, %vm1109
  %vm1238 = vmor %vm790, %vm1110
  %vm1239 = vmor %vm791, %vm1111
  %vm1240 = vmor %vm792, %vm1112
  %vm1241 = vmor %vm793, %vm1113
  %vm1242 = vmor %vm794, %vm1114
  %vm1243 = vmor %vm795, %vm1115
  %vm1244 = vmor %vm796, %vm1116
  %vm1245 = vmor %vm797, %vm1117
  %vm1246 = vmor %vm798, %vm1118
  %vm1247 = vmor %vm799, %vm1119
  %vm1248 = vmor %vm800, %vm1120
  %vm1249 = vmor %vm801, %vm1121
  %vm1250 = vmor %vm802, %vm1122
  %vm1251 = vmor %vm803, %vm1123
  %vm1252 = vmor %vm804, %vm1124
  %vm1253 = vmor %vm805, %vm1125
  %vm1254 = vmor %vm806, %vm1126
  %vm1255 = vmor %vm807, %vm1127
  %vm1256 = vmor %vm808, %vm1128
  %vm1257 = vmor %vm809, %vm1129
  %vm1258 = vmor %vm810, %vm1130
  %vm1259 = vmor %vm811, %vm1131
  %vm1260 = vmor %vm812, %vm1132
  %vm1261 = vmor %vm813, %vm1133
  %vm1262 = vmor %vm814, %vm1134
  %vm1263 = vmor %vm815, %vm1135
  %vm1264 = vmor %vm816, %vm1136
  %vm1265 = vmor %vm817, %vm1137
  %vm1266 = vmor %vm818, %vm1138
  %vm1267 = vmor %vm819, %vm1139
  %vm1268 = vmor %vm820, %vm1140
  %vm1269 = vmor %vm821, %vm1141
  %vm1270 = vmor %vm822, %vm1142
  %vm1271 = vmor %vm823, %vm1143
  %vm1272 = vmor %vm824, %vm1144
  %vm1273 = vmor %vm825, %vm1145
  %vm1274 = vmor %vm826, %vm1146
  %vm1275 = vmor %vm827, %vm1147
  %vm1276 = vmor %vm828, %vm1148
  %vm1277 = vmor %vm829, %vm1149
  %vm1278 = vmor %vm830, %vm1150
  %vm1279 = vmor %vm831, %vm1151
  %vm1280 = vmor %vm832, %vm1152
  %vm1281 = vmor %vm833, %vm1153
  %vm1282 = vmor %vm834, %vm1154
  %vm1283 = vmor %vm835, %vm1155
  %vm1284 = vmor %vm836, %vm1156
  %vm1285 = vmor %vm837, %vm1157
  %vm1286 = vmor %vm838, %vm1158
  %vm1287 = vmor %vm839, %vm1159
  %vm1288 = vmor %vm840, %vm1160
  %vm1289 = vmor %vm841, %vm1161
  %vm1290 = vmor %vm842, %vm1162
  %vm1291 = vmor %vm843, %vm1163
  %vm1292 = vmor %vm844, %vm1164
  %vm1293 = vmor %vm845, %vm1165
  %vm1294 = vmor %vm846, %vm1166
  %vm1295 = vmor %vm847, %vm1167
  %vm1296 = vmor %vm848, %vm1168
  %vm1297 = vmor %vm849, %vm1169
  %vm1298 = vmor %vm850, %vm1170
  %vm1299 = vmor %vm851, %vm1171
  %vm1300 = vmor %vm852, %vm1172
  %vm1301 = vmor %vm853, %vm1173
  %vm1302 = vmor %vm854, %vm1174
  %1303 = vset.pattern.permute.xlu0 3
  %1304 = vperm.xlu0 %1303, %v20
  %v1305 = vpop.permute.xlu0 %1304
  %1306 = vset.pattern.permute.xlu0 3
  %1307 = vperm.xlu0 %1306, %v21
  %v1308 = vpop.permute.xlu0 %1307
  %1309 = vset.pattern.permute.xlu0 3
  %1310 = vperm.xlu0 %1309, %v22
  %v1311 = vpop.permute.xlu0 %1310
  %1312 = vset.pattern.permute.xlu0 3
  %1313 = vperm.xlu0 %1312, %v23
  %v1314 = vpop.permute.xlu0 %1313
  %1315 = vset.pattern.permute.xlu0 3
  %1316 = vperm.xlu0 %1315, %v24
  %v1317 = vpop.permute.xlu0 %1316
  %1318 = vset.pattern.permute.xlu0 3
  %1319 = vperm.xlu0 %1318, %v25
  %v1320 = vpop.permute.xlu0 %1319
  %1321 = vset.pattern.permute.xlu0 3
  %1322 = vperm.xlu0 %1321, %v26
  %v1323 = vpop.permute.xlu0 %1322
  %1324 = vset.pattern.permute.xlu0 3
  %1325 = vperm.xlu0 %1324, %v27
  %v1326 = vpop.permute.xlu0 %1325
  %1327 = vset.pattern.permute.xlu0 3
  %1328 = vperm.xlu0 %1327, %v28
  %v1329 = vpop.permute.xlu0 %1328
  %1330 = vset.pattern.permute.xlu0 3
  %1331 = vperm.xlu0 %1330, %v29
  %v1332 = vpop.permute.xlu0 %1331
  %1333 = vset.pattern.permute.xlu0 3
  %1334 = vperm.xlu0 %1333, %v30
  %v1335 = vpop.permute.xlu0 %1334
  %1336 = vset.pattern.permute.xlu0 3
  %1337 = vperm.xlu0 %1336, %v31
  %v1338 = vpop.permute.xlu0 %1337
  %1339 = vset.pattern.permute.xlu0 3
  %1340 = vperm.xlu0 %1339, %v32
  %v1341 = vpop.permute.xlu0 %1340
  %1342 = vset.pattern.permute.xlu0 3
  %1343 = vperm.xlu0 %1342, %v33
  %v1344 = vpop.permute.xlu0 %1343
  %1345 = vset.pattern.permute.xlu0 3
  %1346 = vperm.xlu0 %1345, %v34
  %v1347 = vpop.permute.xlu0 %1346
  %1348 = vset.pattern.permute.xlu0 3
  %1349 = vperm.xlu0 %1348, %v35
  %v1350 = vpop.permute.xlu0 %1349
  %1351 = vset.pattern.permute.xlu0 3
  %1352 = vperm.xlu0 %1351, %v36
  %v1353 = vpop.permute.xlu0 %1352
  %1354 = vset.pattern.permute.xlu0 3
  %1355 = vperm.xlu0 %1354, %v37
  %v1356 = vpop.permute.xlu0 %1355
  %1357 = vset.pattern.permute.xlu0 3
  %1358 = vperm.xlu0 %1357, %v38
  %v1359 = vpop.permute.xlu0 %1358
  %1360 = vset.pattern.permute.xlu0 3
  %1361 = vperm.xlu0 %1360, %v39
  %v1362 = vpop.permute.xlu0 %1361
  %1363 = vset.pattern.permute.xlu0 3
  %1364 = vperm.xlu0 %1363, %v40
  %v1365 = vpop.permute.xlu0 %1364
  %1366 = vset.pattern.permute.xlu0 3
  %1367 = vperm.xlu0 %1366, %v41
  %v1368 = vpop.permute.xlu0 %1367
  %1369 = vset.pattern.permute.xlu0 3
  %1370 = vperm.xlu0 %1369, %v42
  %v1371 = vpop.permute.xlu0 %1370
  %1372 = vset.pattern.permute.xlu0 3
  %1373 = vperm.xlu0 %1372, %v43
  %v1374 = vpop.permute.xlu0 %1373
  %1375 = vset.pattern.permute.xlu0 3
  %1376 = vperm.xlu0 %1375, %v44
  %v1377 = vpop.permute.xlu0 %1376
  %1378 = vset.pattern.permute.xlu0 3
  %1379 = vperm.xlu0 %1378, %v45
  %v1380 = vpop.permute.xlu0 %1379
  %1381 = vset.pattern.permute.xlu0 3
  %1382 = vperm.xlu0 %1381, %v46
  %v1383 = vpop.permute.xlu0 %1382
  %1384 = vset.pattern.permute.xlu0 3
  %1385 = vperm.xlu0 %1384, %v47
  %v1386 = vpop.permute.xlu0 %1385
  %1387 = vset.pattern.permute.xlu0 3
  %1388 = vperm.xlu0 %1387, %v48
  %v1389 = vpop.permute.xlu0 %1388
  %1390 = vset.pattern.permute.xlu0 3
  %1391 = vperm.xlu0 %1390, %v49
  %v1392 = vpop.permute.xlu0 %1391
  %1393 = vset.pattern.permute.xlu0 3
  %1394 = vperm.xlu0 %1393, %v50
  %v1395 = vpop.permute.xlu0 %1394
  %1396 = vset.pattern.permute.xlu0 3
  %1397 = vperm.xlu0 %1396, %v51
  %v1398 = vpop.permute.xlu0 %1397
  %1399 = vset.pattern.permute.xlu0 3
  %1400 = vperm.xlu0 %1399, %v52
  %v1401 = vpop.permute.xlu0 %1400
  %1402 = vset.pattern.permute.xlu0 3
  %1403 = vperm.xlu0 %1402, %v53
  %v1404 = vpop.permute.xlu0 %1403
  %1405 = vset.pattern.permute.xlu0 3
  %1406 = vperm.xlu0 %1405, %v54
  %v1407 = vpop.permute.xlu0 %1406
  %1408 = vset.pattern.permute.xlu0 3
  %1409 = vperm.xlu0 %1408, %v55
  %v1410 = vpop.permute.xlu0 %1409
  %1411 = vset.pattern.permute.xlu0 3
  %1412 = vperm.xlu0 %1411, %v56
  %v1413 = vpop.permute.xlu0 %1412
  %1414 = vset.pattern.permute.xlu0 3
  %1415 = vperm.xlu0 %1414, %v57
  %v1416 = vpop.permute.xlu0 %1415
  %1417 = vset.pattern.permute.xlu0 3
  %1418 = vperm.xlu0 %1417, %v58
  %v1419 = vpop.permute.xlu0 %1418
  %1420 = vset.pattern.permute.xlu0 3
  %1421 = vperm.xlu0 %1420, %v59
  %v1422 = vpop.permute.xlu0 %1421
  %1423 = vset.pattern.permute.xlu0 3
  %1424 = vperm.xlu0 %1423, %v60
  %v1425 = vpop.permute.xlu0 %1424
  %1426 = vset.pattern.permute.xlu0 3
  %1427 = vperm.xlu0 %1426, %v61
  %v1428 = vpop.permute.xlu0 %1427
  %1429 = vset.pattern.permute.xlu0 3
  %1430 = vperm.xlu0 %1429, %v62
  %v1431 = vpop.permute.xlu0 %1430
  %1432 = vset.pattern.permute.xlu0 3
  %1433 = vperm.xlu0 %1432, %v63
  %v1434 = vpop.permute.xlu0 %1433
  %1435 = vset.pattern.permute.xlu0 3
  %1436 = vperm.xlu0 %1435, %v64
  %v1437 = vpop.permute.xlu0 %1436
  %1438 = vset.pattern.permute.xlu0 3
  %1439 = vperm.xlu0 %1438, %v65
  %v1440 = vpop.permute.xlu0 %1439
  %1441 = vset.pattern.permute.xlu0 3
  %1442 = vperm.xlu0 %1441, %v66
  %v1443 = vpop.permute.xlu0 %1442
  %1444 = vset.pattern.permute.xlu0 3
  %1445 = vperm.xlu0 %1444, %v67
  %v1446 = vpop.permute.xlu0 %1445
  %1447 = vset.pattern.permute.xlu0 3
  %1448 = vperm.xlu0 %1447, %v68
  %v1449 = vpop.permute.xlu0 %1448
  %1450 = vset.pattern.permute.xlu0 3
  %1451 = vperm.xlu0 %1450, %v69
  %v1452 = vpop.permute.xlu0 %1451
  %1453 = vset.pattern.permute.xlu0 3
  %1454 = vperm.xlu0 %1453, %v70
  %v1455 = vpop.permute.xlu0 %1454
  %1456 = vset.pattern.permute.xlu0 3
  %1457 = vperm.xlu0 %1456, %v71
  %v1458 = vpop.permute.xlu0 %1457
  %1459 = vset.pattern.permute.xlu0 3
  %1460 = vperm.xlu0 %1459, %v72
  %v1461 = vpop.permute.xlu0 %1460
  %1462 = vset.pattern.permute.xlu0 3
  %1463 = vperm.xlu0 %1462, %v73
  %v1464 = vpop.permute.xlu0 %1463
  %1465 = vset.pattern.permute.xlu0 3
  %1466 = vperm.xlu0 %1465, %v74
  %v1467 = vpop.permute.xlu0 %1466
  %1468 = vset.pattern.permute.xlu0 3
  %1469 = vperm.xlu0 %1468, %v75
  %v1470 = vpop.permute.xlu0 %1469
  %1471 = vset.pattern.permute.xlu0 3
  %1472 = vperm.xlu0 %1471, %v76
  %v1473 = vpop.permute.xlu0 %1472
  %1474 = vset.pattern.permute.xlu0 3
  %1475 = vperm.xlu0 %1474, %v77
  %v1476 = vpop.permute.xlu0 %1475
  %1477 = vset.pattern.permute.xlu0 3
  %1478 = vperm.xlu0 %1477, %v78
  %v1479 = vpop.permute.xlu0 %1478
  %1480 = vset.pattern.permute.xlu0 3
  %1481 = vperm.xlu0 %1480, %v79
  %v1482 = vpop.permute.xlu0 %1481
  %1483 = vset.pattern.permute.xlu0 3
  %1484 = vperm.xlu0 %1483, %v80
  %v1485 = vpop.permute.xlu0 %1484
  %1486 = vset.pattern.permute.xlu0 3
  %1487 = vperm.xlu0 %1486, %v81
  %v1488 = vpop.permute.xlu0 %1487
  %1489 = vset.pattern.permute.xlu0 3
  %1490 = vperm.xlu0 %1489, %v82
  %v1491 = vpop.permute.xlu0 %1490
  %1492 = vset.pattern.permute.xlu0 3
  %1493 = vperm.xlu0 %1492, %v83
  %v1494 = vpop.permute.xlu0 %1493
  %vm1495 = vcmp.eq.s32.totalorder %v85, %v1305
  %vm1496 = vcmp.eq.s32.totalorder %v86, %v1305
  %vm1497 = vcmp.eq.s32.totalorder %v85, %v1308
  %vm1498 = vcmp.eq.s32.totalorder %v86, %v1308
  %vm1499 = vcmp.eq.s32.totalorder %v85, %v1311
  %vm1500 = vcmp.eq.s32.totalorder %v86, %v1311
  %vm1501 = vcmp.eq.s32.totalorder %v85, %v1314
  %vm1502 = vcmp.eq.s32.totalorder %v86, %v1314
  %vm1503 = vcmp.eq.s32.totalorder %v85, %v1317
  %vm1504 = vcmp.eq.s32.totalorder %v86, %v1317
  %vm1505 = vcmp.eq.s32.totalorder %v85, %v1320
  %vm1506 = vcmp.eq.s32.totalorder %v86, %v1320
  %vm1507 = vcmp.eq.s32.totalorder %v85, %v1323
  %vm1508 = vcmp.eq.s32.totalorder %v86, %v1323
  %vm1509 = vcmp.eq.s32.totalorder %v85, %v1326
  %vm1510 = vcmp.eq.s32.totalorder %v86, %v1326
  %vm1511 = vcmp.eq.s32.totalorder %v85, %v1329
  %vm1512 = vcmp.eq.s32.totalorder %v86, %v1329
  %vm1513 = vcmp.eq.s32.totalorder %v85, %v1332
  %vm1514 = vcmp.eq.s32.totalorder %v86, %v1332
  %vm1515 = vcmp.eq.s32.totalorder %v85, %v1335
  %vm1516 = vcmp.eq.s32.totalorder %v86, %v1335
  %vm1517 = vcmp.eq.s32.totalorder %v85, %v1338
  %vm1518 = vcmp.eq.s32.totalorder %v86, %v1338
  %vm1519 = vcmp.eq.s32.totalorder %v85, %v1341
  %vm1520 = vcmp.eq.s32.totalorder %v86, %v1341
  %vm1521 = vcmp.eq.s32.totalorder %v85, %v1344
  %vm1522 = vcmp.eq.s32.totalorder %v86, %v1344
  %vm1523 = vcmp.eq.s32.totalorder %v85, %v1347
  %vm1524 = vcmp.eq.s32.totalorder %v86, %v1347
  %vm1525 = vcmp.eq.s32.totalorder %v85, %v1350
  %vm1526 = vcmp.eq.s32.totalorder %v86, %v1350
  %vm1527 = vcmp.eq.s32.totalorder %v85, %v1353
  %vm1528 = vcmp.eq.s32.totalorder %v86, %v1353
  %vm1529 = vcmp.eq.s32.totalorder %v85, %v1356
  %vm1530 = vcmp.eq.s32.totalorder %v86, %v1356
  %vm1531 = vcmp.eq.s32.totalorder %v85, %v1359
  %vm1532 = vcmp.eq.s32.totalorder %v86, %v1359
  %vm1533 = vcmp.eq.s32.totalorder %v85, %v1362
  %vm1534 = vcmp.eq.s32.totalorder %v86, %v1362
  %vm1535 = vcmp.eq.s32.totalorder %v85, %v1365
  %vm1536 = vcmp.eq.s32.totalorder %v86, %v1365
  %vm1537 = vcmp.eq.s32.totalorder %v85, %v1368
  %vm1538 = vcmp.eq.s32.totalorder %v86, %v1368
  %vm1539 = vcmp.eq.s32.totalorder %v85, %v1371
  %vm1540 = vcmp.eq.s32.totalorder %v86, %v1371
  %vm1541 = vcmp.eq.s32.totalorder %v85, %v1374
  %vm1542 = vcmp.eq.s32.totalorder %v86, %v1374
  %vm1543 = vcmp.eq.s32.totalorder %v85, %v1377
  %vm1544 = vcmp.eq.s32.totalorder %v86, %v1377
  %vm1545 = vcmp.eq.s32.totalorder %v85, %v1380
  %vm1546 = vcmp.eq.s32.totalorder %v86, %v1380
  %vm1547 = vcmp.eq.s32.totalorder %v85, %v1383
  %vm1548 = vcmp.eq.s32.totalorder %v86, %v1383
  %vm1549 = vcmp.eq.s32.totalorder %v85, %v1386
  %vm1550 = vcmp.eq.s32.totalorder %v86, %v1386
  %vm1551 = vcmp.eq.s32.totalorder %v85, %v1389
  %vm1552 = vcmp.eq.s32.totalorder %v86, %v1389
  %vm1553 = vcmp.eq.s32.totalorder %v85, %v1392
  %vm1554 = vcmp.eq.s32.totalorder %v86, %v1392
  %vm1555 = vcmp.eq.s32.totalorder %v85, %v1395
  %vm1556 = vcmp.eq.s32.totalorder %v86, %v1395
  %vm1557 = vcmp.eq.s32.totalorder %v85, %v1398
  %vm1558 = vcmp.eq.s32.totalorder %v86, %v1398
  %vm1559 = vcmp.eq.s32.totalorder %v85, %v1401
  %vm1560 = vcmp.eq.s32.totalorder %v86, %v1401
  %vm1561 = vcmp.eq.s32.totalorder %v85, %v1404
  %vm1562 = vcmp.eq.s32.totalorder %v86, %v1404
  %vm1563 = vcmp.eq.s32.totalorder %v85, %v1407
  %vm1564 = vcmp.eq.s32.totalorder %v86, %v1407
  %vm1565 = vcmp.eq.s32.totalorder %v85, %v1410
  %vm1566 = vcmp.eq.s32.totalorder %v86, %v1410
  %vm1567 = vcmp.eq.s32.totalorder %v85, %v1413
  %vm1568 = vcmp.eq.s32.totalorder %v86, %v1413
  %vm1569 = vcmp.eq.s32.totalorder %v85, %v1416
  %vm1570 = vcmp.eq.s32.totalorder %v86, %v1416
  %vm1571 = vcmp.eq.s32.totalorder %v85, %v1419
  %vm1572 = vcmp.eq.s32.totalorder %v86, %v1419
  %vm1573 = vcmp.eq.s32.totalorder %v85, %v1422
  %vm1574 = vcmp.eq.s32.totalorder %v86, %v1422
  %vm1575 = vcmp.eq.s32.totalorder %v85, %v1425
  %vm1576 = vcmp.eq.s32.totalorder %v86, %v1425
  %vm1577 = vcmp.eq.s32.totalorder %v85, %v1428
  %vm1578 = vcmp.eq.s32.totalorder %v86, %v1428
  %vm1579 = vcmp.eq.s32.totalorder %v85, %v1431
  %vm1580 = vcmp.eq.s32.totalorder %v86, %v1431
  %vm1581 = vcmp.eq.s32.totalorder %v85, %v1434
  %vm1582 = vcmp.eq.s32.totalorder %v86, %v1434
  %vm1583 = vcmp.eq.s32.totalorder %v85, %v1437
  %vm1584 = vcmp.eq.s32.totalorder %v86, %v1437
  %vm1585 = vcmp.eq.s32.totalorder %v85, %v1440
  %vm1586 = vcmp.eq.s32.totalorder %v86, %v1440
  %vm1587 = vcmp.eq.s32.totalorder %v85, %v1443
  %vm1588 = vcmp.eq.s32.totalorder %v86, %v1443
  %vm1589 = vcmp.eq.s32.totalorder %v85, %v1446
  %vm1590 = vcmp.eq.s32.totalorder %v86, %v1446
  %vm1591 = vcmp.eq.s32.totalorder %v85, %v1449
  %vm1592 = vcmp.eq.s32.totalorder %v86, %v1449
  %vm1593 = vcmp.eq.s32.totalorder %v85, %v1452
  %vm1594 = vcmp.eq.s32.totalorder %v86, %v1452
  %vm1595 = vcmp.eq.s32.totalorder %v85, %v1455
  %vm1596 = vcmp.eq.s32.totalorder %v86, %v1455
  %vm1597 = vcmp.eq.s32.totalorder %v85, %v1458
  %vm1598 = vcmp.eq.s32.totalorder %v86, %v1458
  %vm1599 = vcmp.eq.s32.totalorder %v85, %v1461
  %vm1600 = vcmp.eq.s32.totalorder %v86, %v1461
  %vm1601 = vcmp.eq.s32.totalorder %v85, %v1464
  %vm1602 = vcmp.eq.s32.totalorder %v86, %v1464
  %vm1603 = vcmp.eq.s32.totalorder %v85, %v1467
  %vm1604 = vcmp.eq.s32.totalorder %v86, %v1467
  %vm1605 = vcmp.eq.s32.totalorder %v85, %v1470
  %vm1606 = vcmp.eq.s32.totalorder %v86, %v1470
  %vm1607 = vcmp.eq.s32.totalorder %v85, %v1473
  %vm1608 = vcmp.eq.s32.totalorder %v86, %v1473
  %vm1609 = vcmp.eq.s32.totalorder %v85, %v1476
  %vm1610 = vcmp.eq.s32.totalorder %v86, %v1476
  %vm1611 = vcmp.eq.s32.totalorder %v85, %v1479
  %vm1612 = vcmp.eq.s32.totalorder %v86, %v1479
  %vm1613 = vcmp.eq.s32.totalorder %v85, %v1482
  %vm1614 = vcmp.eq.s32.totalorder %v86, %v1482
  %vm1615 = vcmp.eq.s32.totalorder %v85, %v1485
  %vm1616 = vcmp.eq.s32.totalorder %v86, %v1485
  %vm1617 = vcmp.eq.s32.totalorder %v85, %v1488
  %vm1618 = vcmp.eq.s32.totalorder %v86, %v1488
  %vm1619 = vcmp.eq.s32.totalorder %v85, %v1491
  %vm1620 = vcmp.eq.s32.totalorder %v86, %v1491
  %vm1621 = vcmp.eq.s32.totalorder %v85, %v1494
  %vm1622 = vcmp.eq.s32.totalorder %v86, %v1494
  %vm1623 = vmor %vm1175, %vm1495
  %vm1624 = vmor %vm1176, %vm1496
  %vm1625 = vmor %vm1177, %vm1497
  %vm1626 = vmor %vm1178, %vm1498
  %vm1627 = vmor %vm1179, %vm1499
  %vm1628 = vmor %vm1180, %vm1500
  %vm1629 = vmor %vm1181, %vm1501
  %vm1630 = vmor %vm1182, %vm1502
  %vm1631 = vmor %vm1183, %vm1503
  %vm1632 = vmor %vm1184, %vm1504
  %vm1633 = vmor %vm1185, %vm1505
  %vm1634 = vmor %vm1186, %vm1506
  %vm1635 = vmor %vm1187, %vm1507
  %vm1636 = vmor %vm1188, %vm1508
  %vm1637 = vmor %vm1189, %vm1509
  %vm1638 = vmor %vm1190, %vm1510
  %vm1639 = vmor %vm1191, %vm1511
  %vm1640 = vmor %vm1192, %vm1512
  %vm1641 = vmor %vm1193, %vm1513
  %vm1642 = vmor %vm1194, %vm1514
  %vm1643 = vmor %vm1195, %vm1515
  %vm1644 = vmor %vm1196, %vm1516
  %vm1645 = vmor %vm1197, %vm1517
  %vm1646 = vmor %vm1198, %vm1518
  %vm1647 = vmor %vm1199, %vm1519
  %vm1648 = vmor %vm1200, %vm1520
  %vm1649 = vmor %vm1201, %vm1521
  %vm1650 = vmor %vm1202, %vm1522
  %vm1651 = vmor %vm1203, %vm1523
  %vm1652 = vmor %vm1204, %vm1524
  %vm1653 = vmor %vm1205, %vm1525
  %vm1654 = vmor %vm1206, %vm1526
  %vm1655 = vmor %vm1207, %vm1527
  %vm1656 = vmor %vm1208, %vm1528
  %vm1657 = vmor %vm1209, %vm1529
  %vm1658 = vmor %vm1210, %vm1530
  %vm1659 = vmor %vm1211, %vm1531
  %vm1660 = vmor %vm1212, %vm1532
  %vm1661 = vmor %vm1213, %vm1533
  %vm1662 = vmor %vm1214, %vm1534
  %vm1663 = vmor %vm1215, %vm1535
  %vm1664 = vmor %vm1216, %vm1536
  %vm1665 = vmor %vm1217, %vm1537
  %vm1666 = vmor %vm1218, %vm1538
  %vm1667 = vmor %vm1219, %vm1539
  %vm1668 = vmor %vm1220, %vm1540
  %vm1669 = vmor %vm1221, %vm1541
  %vm1670 = vmor %vm1222, %vm1542
  %vm1671 = vmor %vm1223, %vm1543
  %vm1672 = vmor %vm1224, %vm1544
  %vm1673 = vmor %vm1225, %vm1545
  %vm1674 = vmor %vm1226, %vm1546
  %vm1675 = vmor %vm1227, %vm1547
  %vm1676 = vmor %vm1228, %vm1548
  %vm1677 = vmor %vm1229, %vm1549
  %vm1678 = vmor %vm1230, %vm1550
  %vm1679 = vmor %vm1231, %vm1551
  %vm1680 = vmor %vm1232, %vm1552
  %vm1681 = vmor %vm1233, %vm1553
  %vm1682 = vmor %vm1234, %vm1554
  %vm1683 = vmor %vm1235, %vm1555
  %vm1684 = vmor %vm1236, %vm1556
  %vm1685 = vmor %vm1237, %vm1557
  %vm1686 = vmor %vm1238, %vm1558
  %vm1687 = vmor %vm1239, %vm1559
  %vm1688 = vmor %vm1240, %vm1560
  %vm1689 = vmor %vm1241, %vm1561
  %vm1690 = vmor %vm1242, %vm1562
  %vm1691 = vmor %vm1243, %vm1563
  %vm1692 = vmor %vm1244, %vm1564
  %vm1693 = vmor %vm1245, %vm1565
  %vm1694 = vmor %vm1246, %vm1566
  %vm1695 = vmor %vm1247, %vm1567
  %vm1696 = vmor %vm1248, %vm1568
  %vm1697 = vmor %vm1249, %vm1569
  %vm1698 = vmor %vm1250, %vm1570
  %vm1699 = vmor %vm1251, %vm1571
  %vm1700 = vmor %vm1252, %vm1572
  %vm1701 = vmor %vm1253, %vm1573
  %vm1702 = vmor %vm1254, %vm1574
  %vm1703 = vmor %vm1255, %vm1575
  %vm1704 = vmor %vm1256, %vm1576
  %vm1705 = vmor %vm1257, %vm1577
  %vm1706 = vmor %vm1258, %vm1578
  %vm1707 = vmor %vm1259, %vm1579
  %vm1708 = vmor %vm1260, %vm1580
  %vm1709 = vmor %vm1261, %vm1581
  %vm1710 = vmor %vm1262, %vm1582
  %vm1711 = vmor %vm1263, %vm1583
  %vm1712 = vmor %vm1264, %vm1584
  %vm1713 = vmor %vm1265, %vm1585
  %vm1714 = vmor %vm1266, %vm1586
  %vm1715 = vmor %vm1267, %vm1587
  %vm1716 = vmor %vm1268, %vm1588
  %vm1717 = vmor %vm1269, %vm1589
  %vm1718 = vmor %vm1270, %vm1590
  %vm1719 = vmor %vm1271, %vm1591
  %vm1720 = vmor %vm1272, %vm1592
  %vm1721 = vmor %vm1273, %vm1593
  %vm1722 = vmor %vm1274, %vm1594
  %vm1723 = vmor %vm1275, %vm1595
  %vm1724 = vmor %vm1276, %vm1596
  %vm1725 = vmor %vm1277, %vm1597
  %vm1726 = vmor %vm1278, %vm1598
  %vm1727 = vmor %vm1279, %vm1599
  %vm1728 = vmor %vm1280, %vm1600
  %vm1729 = vmor %vm1281, %vm1601
  %vm1730 = vmor %vm1282, %vm1602
  %vm1731 = vmor %vm1283, %vm1603
  %vm1732 = vmor %vm1284, %vm1604
  %vm1733 = vmor %vm1285, %vm1605
  %vm1734 = vmor %vm1286, %vm1606
  %vm1735 = vmor %vm1287, %vm1607
  %vm1736 = vmor %vm1288, %vm1608
  %vm1737 = vmor %vm1289, %vm1609
  %vm1738 = vmor %vm1290, %vm1610
  %vm1739 = vmor %vm1291, %vm1611
  %vm1740 = vmor %vm1292, %vm1612
  %vm1741 = vmor %vm1293, %vm1613
  %vm1742 = vmor %vm1294, %vm1614
  %vm1743 = vmor %vm1295, %vm1615
  %vm1744 = vmor %vm1296, %vm1616
  %vm1745 = vmor %vm1297, %vm1617
  %vm1746 = vmor %vm1298, %vm1618
  %vm1747 = vmor %vm1299, %vm1619
  %vm1748 = vmor %vm1300, %vm1620
  %vm1749 = vmor %vm1301, %vm1621
  %vm1750 = vmor %vm1302, %vm1622
  %v1751 = vsel %vm1623, 1, 0
  %v1752 = vsel %vm1624, 1, 0
  %v1753 = vsel %vm1625, 1, 0
  %v1754 = vsel %vm1626, 1, 0
  %v1755 = vsel %vm1627, 1, 0
  %v1756 = vsel %vm1628, 1, 0
  %v1757 = vsel %vm1629, 1, 0
  %v1758 = vsel %vm1630, 1, 0
  %v1759 = vsel %vm1631, 1, 0
  %v1760 = vsel %vm1632, 1, 0
  %v1761 = vsel %vm1633, 1, 0
  %v1762 = vsel %vm1634, 1, 0
  %v1763 = vsel %vm1635, 1, 0
  %v1764 = vsel %vm1636, 1, 0
  %v1765 = vsel %vm1637, 1, 0
  %v1766 = vsel %vm1638, 1, 0
  %v1767 = vsel %vm1639, 1, 0
  %v1768 = vsel %vm1640, 1, 0
  %v1769 = vsel %vm1641, 1, 0
  %v1770 = vsel %vm1642, 1, 0
  %v1771 = vsel %vm1643, 1, 0
  %v1772 = vsel %vm1644, 1, 0
  %v1773 = vsel %vm1645, 1, 0
  %v1774 = vsel %vm1646, 1, 0
  %v1775 = vsel %vm1647, 1, 0
  %v1776 = vsel %vm1648, 1, 0
  %v1777 = vsel %vm1649, 1, 0
  %v1778 = vsel %vm1650, 1, 0
  %v1779 = vsel %vm1651, 1, 0
  %v1780 = vsel %vm1652, 1, 0
  %v1781 = vsel %vm1653, 1, 0
  %v1782 = vsel %vm1654, 1, 0
  %v1783 = vsel %vm1655, 1, 0
  %v1784 = vsel %vm1656, 1, 0
  %v1785 = vsel %vm1657, 1, 0
  %v1786 = vsel %vm1658, 1, 0
  %v1787 = vsel %vm1659, 1, 0
  %v1788 = vsel %vm1660, 1, 0
  %v1789 = vsel %vm1661, 1, 0
  %v1790 = vsel %vm1662, 1, 0
  %v1791 = vsel %vm1663, 1, 0
  %v1792 = vsel %vm1664, 1, 0
  %v1793 = vsel %vm1665, 1, 0
  %v1794 = vsel %vm1666, 1, 0
  %v1795 = vsel %vm1667, 1, 0
  %v1796 = vsel %vm1668, 1, 0
  %v1797 = vsel %vm1669, 1, 0
  %v1798 = vsel %vm1670, 1, 0
  %v1799 = vsel %vm1671, 1, 0
  %v1800 = vsel %vm1672, 1, 0
  %v1801 = vsel %vm1673, 1, 0
  %v1802 = vsel %vm1674, 1, 0
  %v1803 = vsel %vm1675, 1, 0
  %v1804 = vsel %vm1676, 1, 0
  %v1805 = vsel %vm1677, 1, 0
  %v1806 = vsel %vm1678, 1, 0
  %v1807 = vsel %vm1679, 1, 0
  %v1808 = vsel %vm1680, 1, 0
  %v1809 = vsel %vm1681, 1, 0
  %v1810 = vsel %vm1682, 1, 0
  %v1811 = vsel %vm1683, 1, 0
  %v1812 = vsel %vm1684, 1, 0
  %v1813 = vsel %vm1685, 1, 0
  %v1814 = vsel %vm1686, 1, 0
  %v1815 = vsel %vm1687, 1, 0
  %v1816 = vsel %vm1688, 1, 0
  %v1817 = vsel %vm1689, 1, 0
  %v1818 = vsel %vm1690, 1, 0
  %v1819 = vsel %vm1691, 1, 0
  %v1820 = vsel %vm1692, 1, 0
  %v1821 = vsel %vm1693, 1, 0
  %v1822 = vsel %vm1694, 1, 0
  %v1823 = vsel %vm1695, 1, 0
  %v1824 = vsel %vm1696, 1, 0
  %v1825 = vsel %vm1697, 1, 0
  %v1826 = vsel %vm1698, 1, 0
  %v1827 = vsel %vm1699, 1, 0
  %v1828 = vsel %vm1700, 1, 0
  %v1829 = vsel %vm1701, 1, 0
  %v1830 = vsel %vm1702, 1, 0
  %v1831 = vsel %vm1703, 1, 0
  %v1832 = vsel %vm1704, 1, 0
  %v1833 = vsel %vm1705, 1, 0
  %v1834 = vsel %vm1706, 1, 0
  %v1835 = vsel %vm1707, 1, 0
  %v1836 = vsel %vm1708, 1, 0
  %v1837 = vsel %vm1709, 1, 0
  %v1838 = vsel %vm1710, 1, 0
  %v1839 = vsel %vm1711, 1, 0
  %v1840 = vsel %vm1712, 1, 0
  %v1841 = vsel %vm1713, 1, 0
  %v1842 = vsel %vm1714, 1, 0
  %v1843 = vsel %vm1715, 1, 0
  %v1844 = vsel %vm1716, 1, 0
  %v1845 = vsel %vm1717, 1, 0
  %v1846 = vsel %vm1718, 1, 0
  %v1847 = vsel %vm1719, 1, 0
  %v1848 = vsel %vm1720, 1, 0
  %v1849 = vsel %vm1721, 1, 0
  %v1850 = vsel %vm1722, 1, 0
  %v1851 = vsel %vm1723, 1, 0
  %v1852 = vsel %vm1724, 1, 0
  %v1853 = vsel %vm1725, 1, 0
  %v1854 = vsel %vm1726, 1, 0
  %v1855 = vsel %vm1727, 1, 0
  %v1856 = vsel %vm1728, 1, 0
  %v1857 = vsel %vm1729, 1, 0
  %v1858 = vsel %vm1730, 1, 0
  %v1859 = vsel %vm1731, 1, 0
  %v1860 = vsel %vm1732, 1, 0
  %v1861 = vsel %vm1733, 1, 0
  %v1862 = vsel %vm1734, 1, 0
  %v1863 = vsel %vm1735, 1, 0
  %v1864 = vsel %vm1736, 1, 0
  %v1865 = vsel %vm1737, 1, 0
  %v1866 = vsel %vm1738, 1, 0
  %v1867 = vsel %vm1739, 1, 0
  %v1868 = vsel %vm1740, 1, 0
  %v1869 = vsel %vm1741, 1, 0
  %v1870 = vsel %vm1742, 1, 0
  %v1871 = vsel %vm1743, 1, 0
  %v1872 = vsel %vm1744, 1, 0
  %v1873 = vsel %vm1745, 1, 0
  %v1874 = vsel %vm1746, 1, 0
  %v1875 = vsel %vm1747, 1, 0
  %v1876 = vsel %vm1748, 1, 0
  %v1877 = vsel %vm1749, 1, 0
  %v1878 = vsel %vm1750, 1, 0
  %v1879 = vcvt.s32.f32 %v1751
  %v1880 = vcvt.s32.f32 %v1752
  %v1881 = vcvt.s32.f32 %v1753
  %v1882 = vcvt.s32.f32 %v1754
  %v1883 = vcvt.s32.f32 %v1755
  %v1884 = vcvt.s32.f32 %v1756
  %v1885 = vcvt.s32.f32 %v1757
  %v1886 = vcvt.s32.f32 %v1758
  %v1887 = vcvt.s32.f32 %v1759
  %v1888 = vcvt.s32.f32 %v1760
  %v1889 = vcvt.s32.f32 %v1761
  %v1890 = vcvt.s32.f32 %v1762
  %v1891 = vcvt.s32.f32 %v1763
  %v1892 = vcvt.s32.f32 %v1764
  %v1893 = vcvt.s32.f32 %v1765
  %v1894 = vcvt.s32.f32 %v1766
  %v1895 = vcvt.s32.f32 %v1767
  %v1896 = vcvt.s32.f32 %v1768
  %v1897 = vcvt.s32.f32 %v1769
  %v1898 = vcvt.s32.f32 %v1770
  %v1899 = vcvt.s32.f32 %v1771
  %v1900 = vcvt.s32.f32 %v1772
  %v1901 = vcvt.s32.f32 %v1773
  %v1902 = vcvt.s32.f32 %v1774
  %v1903 = vcvt.s32.f32 %v1775
  %v1904 = vcvt.s32.f32 %v1776
  %v1905 = vcvt.s32.f32 %v1777
  %v1906 = vcvt.s32.f32 %v1778
  %v1907 = vcvt.s32.f32 %v1779
  %v1908 = vcvt.s32.f32 %v1780
  %v1909 = vcvt.s32.f32 %v1781
  %v1910 = vcvt.s32.f32 %v1782
  %v1911 = vcvt.s32.f32 %v1783
  %v1912 = vcvt.s32.f32 %v1784
  %v1913 = vcvt.s32.f32 %v1785
  %v1914 = vcvt.s32.f32 %v1786
  %v1915 = vcvt.s32.f32 %v1787
  %v1916 = vcvt.s32.f32 %v1788
  %v1917 = vcvt.s32.f32 %v1789
  %v1918 = vcvt.s32.f32 %v1790
  %v1919 = vcvt.s32.f32 %v1791
  %v1920 = vcvt.s32.f32 %v1792
  %v1921 = vcvt.s32.f32 %v1793
  %v1922 = vcvt.s32.f32 %v1794
  %v1923 = vcvt.s32.f32 %v1795
  %v1924 = vcvt.s32.f32 %v1796
  %v1925 = vcvt.s32.f32 %v1797
  %v1926 = vcvt.s32.f32 %v1798
  %v1927 = vcvt.s32.f32 %v1799
  %v1928 = vcvt.s32.f32 %v1800
  %v1929 = vcvt.s32.f32 %v1801
  %v1930 = vcvt.s32.f32 %v1802
  %v1931 = vcvt.s32.f32 %v1803
  %v1932 = vcvt.s32.f32 %v1804
  %v1933 = vcvt.s32.f32 %v1805
  %v1934 = vcvt.s32.f32 %v1806
  %v1935 = vcvt.s32.f32 %v1807
  %v1936 = vcvt.s32.f32 %v1808
  %v1937 = vcvt.s32.f32 %v1809
  %v1938 = vcvt.s32.f32 %v1810
  %v1939 = vcvt.s32.f32 %v1811
  %v1940 = vcvt.s32.f32 %v1812
  %v1941 = vcvt.s32.f32 %v1813
  %v1942 = vcvt.s32.f32 %v1814
  %v1943 = vcvt.s32.f32 %v1815
  %v1944 = vcvt.s32.f32 %v1816
  %v1945 = vcvt.s32.f32 %v1817
  %v1946 = vcvt.s32.f32 %v1818
  %v1947 = vcvt.s32.f32 %v1819
  %v1948 = vcvt.s32.f32 %v1820
  %v1949 = vcvt.s32.f32 %v1821
  %v1950 = vcvt.s32.f32 %v1822
  %v1951 = vcvt.s32.f32 %v1823
  %v1952 = vcvt.s32.f32 %v1824
  %v1953 = vcvt.s32.f32 %v1825
  %v1954 = vcvt.s32.f32 %v1826
  %v1955 = vcvt.s32.f32 %v1827
  %v1956 = vcvt.s32.f32 %v1828
  %v1957 = vcvt.s32.f32 %v1829
  %v1958 = vcvt.s32.f32 %v1830
  %v1959 = vcvt.s32.f32 %v1831
  %v1960 = vcvt.s32.f32 %v1832
  %v1961 = vcvt.s32.f32 %v1833
  %v1962 = vcvt.s32.f32 %v1834
  %v1963 = vcvt.s32.f32 %v1835
  %v1964 = vcvt.s32.f32 %v1836
  %v1965 = vcvt.s32.f32 %v1837
  %v1966 = vcvt.s32.f32 %v1838
  %v1967 = vcvt.s32.f32 %v1839
  %v1968 = vcvt.s32.f32 %v1840
  %v1969 = vcvt.s32.f32 %v1841
  %v1970 = vcvt.s32.f32 %v1842
  %v1971 = vcvt.s32.f32 %v1843
  %v1972 = vcvt.s32.f32 %v1844
  %v1973 = vcvt.s32.f32 %v1845
  %v1974 = vcvt.s32.f32 %v1846
  %v1975 = vcvt.s32.f32 %v1847
  %v1976 = vcvt.s32.f32 %v1848
  %v1977 = vcvt.s32.f32 %v1849
  %v1978 = vcvt.s32.f32 %v1850
  %v1979 = vcvt.s32.f32 %v1851
  %v1980 = vcvt.s32.f32 %v1852
  %v1981 = vcvt.s32.f32 %v1853
  %v1982 = vcvt.s32.f32 %v1854
  %v1983 = vcvt.s32.f32 %v1855
  %v1984 = vcvt.s32.f32 %v1856
  %v1985 = vcvt.s32.f32 %v1857
  %v1986 = vcvt.s32.f32 %v1858
  %v1987 = vcvt.s32.f32 %v1859
  %v1988 = vcvt.s32.f32 %v1860
  %v1989 = vcvt.s32.f32 %v1861
  %v1990 = vcvt.s32.f32 %v1862
  %v1991 = vcvt.s32.f32 %v1863
  %v1992 = vcvt.s32.f32 %v1864
  %v1993 = vcvt.s32.f32 %v1865
  %v1994 = vcvt.s32.f32 %v1866
  %v1995 = vcvt.s32.f32 %v1867
  %v1996 = vcvt.s32.f32 %v1868
  %v1997 = vcvt.s32.f32 %v1869
  %v1998 = vcvt.s32.f32 %v1870
  %v1999 = vcvt.s32.f32 %v1871
  %v2000 = vcvt.s32.f32 %v1872
  %v2001 = vcvt.s32.f32 %v1873
  %v2002 = vcvt.s32.f32 %v1874
  %v2003 = vcvt.s32.f32 %v1875
  %v2004 = vcvt.s32.f32 %v1876
  %v2005 = vcvt.s32.f32 %v1877
  %v2006 = vcvt.s32.f32 %v1878
  %v2007 = vld [vmem:[%s1] sm:$0xff]
  %v2008 = vld [vmem:[%s1 + $0x8] sm:$0xff]
  %v2009 = vld [vmem:[%s1 + $0x10] sm:$0xff]
  %v2010 = vld [vmem:[%s1 + $0x18] sm:$0xff]
  %v2011 = vld [vmem:[%s1 + $0x20] sm:$0xff]
  %v2012 = vld [vmem:[%s1 + $0x28] sm:$0xff]
  %v2013 = vld [vmem:[%s1 + $0x30] sm:$0xff]
  %v2014 = vld [vmem:[%s1 + $0x38] sm:$0xff]
  %v2015 = vld [vmem:[%s1 + $0x40] sm:$0xff]
  %v2016 = vld [vmem:[%s1 + $0x48] sm:$0xff]
  %v2017 = vld [vmem:[%s1 + $0x50] sm:$0xff]
  %v2018 = vld [vmem:[%s1 + $0x58] sm:$0xff]
  %v2019 = vld [vmem:[%s1 + $0x60] sm:$0xff]
  %v2020 = vld [vmem:[%s1 + $0x68] sm:$0xff]
  %v2021 = vld [vmem:[%s1 + $0x70] sm:$0xff]
  %v2022 = vld [vmem:[%s1 + $0x78] sm:$0xff]
  %v2023 = vld [vmem:[%s1 + $0x80] sm:$0xff]
  %v2024 = vld [vmem:[%s1 + $0x88] sm:$0xff]
  %v2025 = vld [vmem:[%s1 + $0x90] sm:$0xff]
  %v2026 = vld [vmem:[%s1 + $0x98] sm:$0xff]
  %v2027 = vld [vmem:[%s1 + $0xa0] sm:$0xff]
  %v2028 = vld [vmem:[%s1 + $0xa8] sm:$0xff]
  %v2029 = vld [vmem:[%s1 + $0xb0] sm:$0xff]
  %v2030 = vld [vmem:[%s1 + $0xb8] sm:$0xff]
  %v2031 = vld [vmem:[%s2] sm:$0x1]
  %v2033 = vlaneseq
  %v2034 = vshrl.u32 %v2033, 7
  %v2035 = vsub.s32 0, %v2034
  %v2036 = vrot.slane %v2031, %v2035
  %vm2038 = vcmask 523264
  %v2040 = vsel %vm2038, %v1880, 0
  %v2043 = vsel %vm2038, %v1882, 0
  %v2046 = vsel %vm2038, %v1884, 0
  %v2049 = vsel %vm2038, %v1886, 0
  %v2052 = vsel %vm2038, %v1888, 0
  %v2055 = vsel %vm2038, %v1890, 0
  %v2058 = vsel %vm2038, %v1892, 0
  %v2061 = vsel %vm2038, %v1894, 0
  %v2064 = vsel %vm2038, %v1896, 0
  %v2067 = vsel %vm2038, %v1898, 0
  %v2070 = vsel %vm2038, %v1900, 0
  %v2073 = vsel %vm2038, %v1902, 0
  %v2076 = vsel %vm2038, %v1904, 0
  %v2079 = vsel %vm2038, %v1906, 0
  %v2082 = vsel %vm2038, %v1908, 0
  %v2085 = vsel %vm2038, %v1910, 0
  %v2088 = vsel %vm2038, %v1912, 0
  %v2091 = vsel %vm2038, %v1914, 0
  %v2094 = vsel %vm2038, %v1916, 0
  %v2097 = vsel %vm2038, %v1918, 0
  %v2100 = vsel %vm2038, %v1920, 0
  %v2103 = vsel %vm2038, %v1922, 0
  %v2106 = vsel %vm2038, %v1924, 0
  %v2109 = vsel %vm2038, %v1926, 0
  %v2112 = vsel %vm2038, %v1928, 0
  %v2115 = vsel %vm2038, %v1930, 0
  %v2118 = vsel %vm2038, %v1932, 0
  %v2121 = vsel %vm2038, %v1934, 0
  %v2124 = vsel %vm2038, %v1936, 0
  %v2127 = vsel %vm2038, %v1938, 0
  %v2130 = vsel %vm2038, %v1940, 0
  %v2133 = vsel %vm2038, %v1942, 0
  %v2136 = vsel %vm2038, %v1944, 0
  %v2139 = vsel %vm2038, %v1946, 0
  %v2142 = vsel %vm2038, %v1948, 0
  %v2145 = vsel %vm2038, %v1950, 0
  %v2148 = vsel %vm2038, %v1952, 0
  %v2151 = vsel %vm2038, %v1954, 0
  %v2154 = vsel %vm2038, %v1956, 0
  %v2157 = vsel %vm2038, %v1958, 0
  %v2160 = vsel %vm2038, %v1960, 0
  %v2163 = vsel %vm2038, %v1962, 0
  %v2166 = vsel %vm2038, %v1964, 0
  %v2169 = vsel %vm2038, %v1966, 0
  %v2172 = vsel %vm2038, %v1968, 0
  %v2175 = vsel %vm2038, %v1970, 0
  %v2178 = vsel %vm2038, %v1972, 0
  %v2181 = vsel %vm2038, %v1974, 0
  %v2184 = vsel %vm2038, %v1976, 0
  %v2187 = vsel %vm2038, %v1978, 0
  %v2190 = vsel %vm2038, %v1980, 0
  %v2193 = vsel %vm2038, %v1982, 0
  %v2196 = vsel %vm2038, %v1984, 0
  %v2199 = vsel %vm2038, %v1986, 0
  %v2202 = vsel %vm2038, %v1988, 0
  %v2205 = vsel %vm2038, %v1990, 0
  %v2208 = vsel %vm2038, %v1992, 0
  %v2211 = vsel %vm2038, %v1994, 0
  %v2214 = vsel %vm2038, %v1996, 0
  %v2217 = vsel %vm2038, %v1998, 0
  %v2220 = vsel %vm2038, %v2000, 0
  %v2223 = vsel %vm2038, %v2002, 0
  %v2226 = vsel %vm2038, %v2004, 0
  %v2229 = vsel %vm2038, %v2006, 0
  %2231 = vmatprep.subr.mxu0 0.0
  %2232 = vmatpush1.msra.mxu0 %v2007
  %2233 = vmatprep.subr.mxu0 0.0
  %2234 = vmatpush1.msra.mxu0 %v2008
  %2235 = vmatprep.subr.mxu0 0.0
  %2236 = vmatpush1.msra.mxu0 %v2009
  %2237 = vmatprep.subr.mxu0 0.0
  %2238 = vmatpush1.msra.mxu0 %v2010
  %2239 = vmatprep.subr.mxu0 0.0
  %2240 = vmatpush1.msra.mxu0 %v2011
  %2241 = vmatprep.subr.mxu0 0.0
  %2242 = vmatpush1.msra.mxu0 %v2012
  %2243 = vmatprep.subr.mxu0 0.0
  %2244 = vmatpush1.msra.mxu0 %v2013
  %2245 = vmatprep.subr.mxu0 0.0
  %2246 = vmatpush1.msra.mxu0 %v2014
  %2247 = vmatprep.subr.mxu0 0.0
  %2248 = vmatpush1.msra.mxu0 %v2015
  %2249 = vmatprep.subr.mxu0 0.0
  %2250 = vmatpush1.msra.mxu0 %v2016
  %2251 = vmatprep.subr.mxu0 0.0
  %2252 = vmatpush1.msra.mxu0 %v2017
  %2253 = vmatprep.subr.mxu0 0.0
  %2254 = vmatpush1.msra.mxu0 %v2018
  %2255 = vmatprep.subr.mxu0 0.0
  %2256 = vmatpush1.msra.mxu0 %v2019
  %2257 = vmatprep.subr.mxu0 0.0
  %2258 = vmatpush1.msra.mxu0 %v2020
  %2259 = vmatprep.subr.mxu0 0.0
  %2260 = vmatpush1.msra.mxu0 %v2021
  %2261 = vmatprep.subr.mxu0 0.0
  %2262 = vmatpush1.msra.mxu0 %v2022
  %2263 = vmatprep.subr.mxu0 0.0
  %2264 = vmatpush1.msra.mxu0 %v2023
  %2265 = vmatprep.subr.mxu0 0.0
  %2266 = vmatpush1.msra.mxu0 %v2024
  %2267 = vmatprep.subr.mxu0 0.0
  %2268 = vmatpush1.msra.mxu0 %v2025
  %2269 = vmatprep.subr.mxu0 0.0
  %2270 = vmatpush1.msra.mxu0 %v2026
  %2271 = vmatprep.subr.mxu0 0.0
  %2272 = vmatpush1.msra.mxu0 %v2027
  %2273 = vmatprep.subr.mxu0 0.0
  %2274 = vmatpush1.msra.mxu0 %v2028
  %2275 = vmatprep.subr.mxu0 0.0
  %2276 = vmatpush1.msra.mxu0 %v2029
  %2277 = vmatprep.subr.mxu0 0.0
  %2278 = vmatpush1.msra.mxu0 %v2030
  %2279 = vmatprep.subr.mxu0 0.0
  %2280 = vmatpush1.msra.mxu0 0.0
  %2281 = vmatprep.subr.mxu0 0.0
  %2282 = vmatpush1.msra.mxu0 0.0
  %2283 = vmatprep.subr.mxu0 0.0
  %2284 = vmatpush1.msra.mxu0 0.0
  %2285 = vmatprep.subr.mxu0 0.0
  %2286 = vmatpush1.msra.mxu0 0.0
  %2287 = vmatprep.subr.mxu0 0.0
  %2288 = vmatpush1.msra.mxu0 0.0
  %2289 = vmatprep.subr.mxu0 0.0
  %2290 = vmatpush1.msra.mxu0 0.0
  %2291 = vmatprep.subr.mxu0 0.0
  %2292 = vmatpush1.msra.mxu0 0.0
  %2293 = vmatprep.subr.mxu0 0.0
  %2294 = vmatpush1.msra.mxu0 0.0
  %2295 = vmatprep.mubr.f32.mxu0 %v2040
  %2296 = vmatmul.mubr.f32.gmra.mrb[0].mxu0 %v1879
  %v2297 = vpop.f32.mrb[0].mxu0
  %v2298 = vadd.f32 %v2036, %v2297
  %v2299 = vpop.f32.mrb[0].mxu0
  %2300 = vmatprep.mubr.f32.mxu0 %v2043
  %2301 = vmatmul.mubr.f32.gmra.mrb[0].mxu0 %v1881
  %v2302 = vpop.f32.mrb[0].mxu0
  %v2303 = vadd.f32 %v2036, %v2302
  %v2304 = vpop.f32.mrb[0].mxu0
  %2305 = vmatprep.mubr.f32.mxu0 %v2046
  %2306 = vmatmul.mubr.f32.gmra.mrb[0].mxu0 %v1883
  %v2307 = vpop.f32.mrb[0].mxu0
  %v2308 = vadd.f32 %v2036, %v2307
  %v2309 = vpop.f32.mrb[0].mxu0
  %2310 = vmatprep.mubr.f32.mxu0 %v2049
  %2311 = vmatmul.mubr.f32.gmra.mrb[0].mxu0 %v1885
  %v2312 = vpop.f32.mrb[0].mxu0
  %v2313 = vadd.f32 %v2036, %v2312
  %v2314 = vpop.f32.mrb[0].mxu0
  %2315 = vmatprep.mubr.f32.mxu0 %v2052
  %2316 = vmatmul.mubr.f32.gmra.mrb[0].mxu0 %v1887
  %v2317 = vpop.f32.mrb[0].mxu0
  %v2318 = vadd.f32 %v2036, %v2317
  %v2319 = vpop.f32.mrb[0].mxu0
  %2320 = vmatprep.mubr.f32.mxu0 %v2055
  %2321 = vmatmul.mubr.f32.gmra.mrb[0].mxu0 %v1889
  %v2322 = vpop.f32.mrb[0].mxu0
  %v2323 = vadd.f32 %v2036, %v2322
  %v2324 = vpop.f32.mrb[0].mxu0
  %2325 = vmatprep.mubr.f32.mxu0 %v2058
  %2326 = vmatmul.mubr.f32.gmra.mrb[0].mxu0 %v1891
  %v2327 = vpop.f32.mrb[0].mxu0
  %v2328 = vadd.f32 %v2036, %v2327
  %v2329 = vpop.f32.mrb[0].mxu0
  %2330 = vmatprep.mubr.f32.mxu0 %v2061
  %2331 = vmatmul.mubr.f32.gmra.mrb[0].mxu0 %v1893
  %v2332 = vpop.f32.mrb[0].mxu0
  %v2333 = vadd.f32 %v2036, %v2332
  %v2334 = vpop.f32.mrb[0].mxu0
  %2335 = vmatprep.mubr.f32.mxu0 %v2064
  %2336 = vmatmul.mubr.f32.gmra.mrb[0].mxu0 %v1895
  %v2337 = vpop.f32.mrb[0].mxu0
  %v2338 = vadd.f32 %v2036, %v2337
  %v2339 = vpop.f32.mrb[0].mxu0
  %2340 = vmatprep.mubr.f32.mxu0 %v2067
  %2341 = vmatmul.mubr.f32.gmra.mrb[0].mxu0 %v1897
  %v2342 = vpop.f32.mrb[0].mxu0
  %v2343 = vadd.f32 %v2036, %v2342
  %v2344 = vpop.f32.mrb[0].mxu0
  %2345 = vmatprep.mubr.f32.mxu0 %v2070
  %2346 = vmatmul.mubr.f32.gmra.mrb[0].mxu0 %v1899
  %v2347 = vpop.f32.mrb[0].mxu0
  %v2348 = vadd.f32 %v2036, %v2347
  %v2349 = vpop.f32.mrb[0].mxu0
  %2350 = vmatprep.mubr.f32.mxu0 %v2073
  %2351 = vmatmul.mubr.f32.gmra.mrb[0].mxu0 %v1901
  %v2352 = vpop.f32.mrb[0].mxu0
  %v2353 = vadd.f32 %v2036, %v2352
  %v2354 = vpop.f32.mrb[0].mxu0
  %2355 = vmatprep.mubr.f32.mxu0 %v2076
  %2356 = vmatmul.mubr.f32.gmra.mrb[0].mxu0 %v1903
  %v2357 = vpop.f32.mrb[0].mxu0
  %v2358 = vadd.f32 %v2036, %v2357
  %v2359 = vpop.f32.mrb[0].mxu0
  %2360 = vmatprep.mubr.f32.mxu0 %v2079
  %2361 = vmatmul.mubr.f32.gmra.mrb[0].mxu0 %v1905
  %v2362 = vpop.f32.mrb[0].mxu0
  %v2363 = vadd.f32 %v2036, %v2362
  %v2364 = vpop.f32.mrb[0].mxu0
  %2365 = vmatprep.mubr.f32.mxu0 %v2082
  %2366 = vmatmul.mubr.f32.gmra.mrb[0].mxu0 %v1907
  %v2367 = vpop.f32.mrb[0].mxu0
  %v2368 = vadd.f32 %v2036, %v2367
  %v2369 = vpop.f32.mrb[0].mxu0
  %2370 = vmatprep.mubr.f32.mxu0 %v2085
  %2371 = vmatmul.mubr.f32.gmra.mrb[0].mxu0 %v1909
  %v2372 = vpop.f32.mrb[0].mxu0
  %v2373 = vadd.f32 %v2036, %v2372
  %v2374 = vpop.f32.mrb[0].mxu0
  %2375 = vmatprep.mubr.f32.mxu0 %v2088
  %2376 = vmatmul.mubr.f32.gmra.mrb[0].mxu0 %v1911
  %v2377 = vpop.f32.mrb[0].mxu0
  %v2378 = vadd.f32 %v2036, %v2377
  %v2379 = vpop.f32.mrb[0].mxu0
  %2380 = vmatprep.mubr.f32.mxu0 %v2091
  %2381 = vmatmul.mubr.f32.gmra.mrb[0].mxu0 %v1913
  %v2382 = vpop.f32.mrb[0].mxu0
  %v2383 = vadd.f32 %v2036, %v2382
  %v2384 = vpop.f32.mrb[0].mxu0
  %2385 = vmatprep.mubr.f32.mxu0 %v2094
  %2386 = vmatmul.mubr.f32.gmra.mrb[0].mxu0 %v1915
  %v2387 = vpop.f32.mrb[0].mxu0
  %v2388 = vadd.f32 %v2036, %v2387
  %v2389 = vpop.f32.mrb[0].mxu0
  %2390 = vmatprep.mubr.f32.mxu0 %v2097
  %2391 = vmatmul.mubr.f32.gmra.mrb[0].mxu0 %v1917
  %v2392 = vpop.f32.mrb[0].mxu0
  %v2393 = vadd.f32 %v2036, %v2392
  %v2394 = vpop.f32.mrb[0].mxu0
  %2395 = vmatprep.mubr.f32.mxu0 %v2100
  %2396 = vmatmul.mubr.f32.gmra.mrb[0].mxu0 %v1919
  %v2397 = vpop.f32.mrb[0].mxu0
  %v2398 = vadd.f32 %v2036, %v2397
  %v2399 = vpop.f32.mrb[0].mxu0
  %2400 = vmatprep.mubr.f32.mxu0 %v2103
  %2401 = vmatmul.mubr.f32.gmra.mrb[0].mxu0 %v1921
  %v2402 = vpop.f32.mrb[0].mxu0
  %v2403 = vadd.f32 %v2036, %v2402
  %v2404 = vpop.f32.mrb[0].mxu0
  %2405 = vmatprep.mubr.f32.mxu0 %v2106
  %2406 = vmatmul.mubr.f32.gmra.mrb[0].mxu0 %v1923
  %v2407 = vpop.f32.mrb[0].mxu0
  %v2408 = vadd.f32 %v2036, %v2407
  %v2409 = vpop.f32.mrb[0].mxu0
  %2410 = vmatprep.mubr.f32.mxu0 %v2109
  %2411 = vmatmul.mubr.f32.gmra.mrb[0].mxu0 %v1925
  %v2412 = vpop.f32.mrb[0].mxu0
  %v2413 = vadd.f32 %v2036, %v2412
  %v2414 = vpop.f32.mrb[0].mxu0
  %2415 = vmatprep.mubr.f32.mxu0 %v2112
  %2416 = vmatmul.mubr.f32.gmra.mrb[0].mxu0 %v1927
  %v2417 = vpop.f32.mrb[0].mxu0
  %v2418 = vadd.f32 %v2036, %v2417
  %v2419 = vpop.f32.mrb[0].mxu0
  %2420 = vmatprep.mubr.f32.mxu0 %v2115
  %2421 = vmatmul.mubr.f32.gmra.mrb[0].mxu0 %v1929
  %v2422 = vpop.f32.mrb[0].mxu0
  %v2423 = vadd.f32 %v2036, %v2422
  %v2424 = vpop.f32.mrb[0].mxu0
  %2425 = vmatprep.mubr.f32.mxu0 %v2118
  %2426 = vmatmul.mubr.f32.gmra.mrb[0].mxu0 %v1931
  %v2427 = vpop.f32.mrb[0].mxu0
  %v2428 = vadd.f32 %v2036, %v2427
  %v2429 = vpop.f32.mrb[0].mxu0
  %2430 = vmatprep.mubr.f32.mxu0 %v2121
  %2431 = vmatmul.mubr.f32.gmra.mrb[0].mxu0 %v1933
  %v2432 = vpop.f32.mrb[0].mxu0
  %v2433 = vadd.f32 %v2036, %v2432
  %v2434 = vpop.f32.mrb[0].mxu0
  %2435 = vmatprep.mubr.f32.mxu0 %v2124
  %2436 = vmatmul.mubr.f32.gmra.mrb[0].mxu0 %v1935
  %v2437 = vpop.f32.mrb[0].mxu0
  %v2438 = vadd.f32 %v2036, %v2437
  %v2439 = vpop.f32.mrb[0].mxu0
  %2440 = vmatprep.mubr.f32.mxu0 %v2127
  %2441 = vmatmul.mubr.f32.gmra.mrb[0].mxu0 %v1937
  %v2442 = vpop.f32.mrb[0].mxu0
  %v2443 = vadd.f32 %v2036, %v2442
  %v2444 = vpop.f32.mrb[0].mxu0
  %2445 = vmatprep.mubr.f32.mxu0 %v2130
  %2446 = vmatmul.mubr.f32.gmra.mrb[0].mxu0 %v1939
  %v2447 = vpop.f32.mrb[0].mxu0
  %v2448 = vadd.f32 %v2036, %v2447
  %v2449 = vpop.f32.mrb[0].mxu0
  %2450 = vmatprep.mubr.f32.mxu0 %v2133
  %2451 = vmatmul.mubr.f32.gmra.mrb[0].mxu0 %v1941
  %v2452 = vpop.f32.mrb[0].mxu0
  %v2453 = vadd.f32 %v2036, %v2452
  %v2454 = vpop.f32.mrb[0].mxu0
  %2455 = vmatprep.mubr.f32.mxu0 %v2136
  %2456 = vmatmul.mubr.f32.gmra.mrb[0].mxu0 %v1943
  %v2457 = vpop.f32.mrb[0].mxu0
  %v2458 = vadd.f32 %v2036, %v2457
  %v2459 = vpop.f32.mrb[0].mxu0
  %2460 = vmatprep.mubr.f32.mxu0 %v2139
  %2461 = vmatmul.mubr.f32.gmra.mrb[0].mxu0 %v1945
  %v2462 = vpop.f32.mrb[0].mxu0
  %v2463 = vadd.f32 %v2036, %v2462
  %v2464 = vpop.f32.mrb[0].mxu0
  %2465 = vmatprep.mubr.f32.mxu0 %v2142
  %2466 = vmatmul.mubr.f32.gmra.mrb[0].mxu0 %v1947
  %v2467 = vpop.f32.mrb[0].mxu0
  %v2468 = vadd.f32 %v2036, %v2467
  %v2469 = vpop.f32.mrb[0].mxu0
  %2470 = vmatprep.mubr.f32.mxu0 %v2145
  %2471 = vmatmul.mubr.f32.gmra.mrb[0].mxu0 %v1949
  %v2472 = vpop.f32.mrb[0].mxu0
  %v2473 = vadd.f32 %v2036, %v2472
  %v2474 = vpop.f32.mrb[0].mxu0
  %2475 = vmatprep.mubr.f32.mxu0 %v2148
  %2476 = vmatmul.mubr.f32.gmra.mrb[0].mxu0 %v1951
  %v2477 = vpop.f32.mrb[0].mxu0
  %v2478 = vadd.f32 %v2036, %v2477
  %v2479 = vpop.f32.mrb[0].mxu0
  %2480 = vmatprep.mubr.f32.mxu0 %v2151
  %2481 = vmatmul.mubr.f32.gmra.mrb[0].mxu0 %v1953
  %v2482 = vpop.f32.mrb[0].mxu0
  %v2483 = vadd.f32 %v2036, %v2482
  %v2484 = vpop.f32.mrb[0].mxu0
  %2485 = vmatprep.mubr.f32.mxu0 %v2154
  %2486 = vmatmul.mubr.f32.gmra.mrb[0].mxu0 %v1955
  %v2487 = vpop.f32.mrb[0].mxu0
  %v2488 = vadd.f32 %v2036, %v2487
  %v2489 = vpop.f32.mrb[0].mxu0
  %2490 = vmatprep.mubr.f32.mxu0 %v2157
  %2491 = vmatmul.mubr.f32.gmra.mrb[0].mxu0 %v1957
  %v2492 = vpop.f32.mrb[0].mxu0
  %v2493 = vadd.f32 %v2036, %v2492
  %v2494 = vpop.f32.mrb[0].mxu0
  %2495 = vmatprep.mubr.f32.mxu0 %v2160
  %2496 = vmatmul.mubr.f32.gmra.mrb[0].mxu0 %v1959
  %v2497 = vpop.f32.mrb[0].mxu0
  %v2498 = vadd.f32 %v2036, %v2497
  %v2499 = vpop.f32.mrb[0].mxu0
  %2500 = vmatprep.mubr.f32.mxu0 %v2163
  %2501 = vmatmul.mubr.f32.gmra.mrb[0].mxu0 %v1961
  %v2502 = vpop.f32.mrb[0].mxu0
  %v2503 = vadd.f32 %v2036, %v2502
  %v2504 = vpop.f32.mrb[0].mxu0
  %2505 = vmatprep.mubr.f32.mxu0 %v2166
  %2506 = vmatmul.mubr.f32.gmra.mrb[0].mxu0 %v1963
  %v2507 = vpop.f32.mrb[0].mxu0
  %v2508 = vadd.f32 %v2036, %v2507
  %v2509 = vpop.f32.mrb[0].mxu0
  %2510 = vmatprep.mubr.f32.mxu0 %v2169
  %2511 = vmatmul.mubr.f32.gmra.mrb[0].mxu0 %v1965
  %v2512 = vpop.f32.mrb[0].mxu0
  %v2513 = vadd.f32 %v2036, %v2512
  %v2514 = vpop.f32.mrb[0].mxu0
  %2515 = vmatprep.mubr.f32.mxu0 %v2172
  %2516 = vmatmul.mubr.f32.gmra.mrb[0].mxu0 %v1967
  %v2517 = vpop.f32.mrb[0].mxu0
  %v2518 = vadd.f32 %v2036, %v2517
  %v2519 = vpop.f32.mrb[0].mxu0
  %2520 = vmatprep.mubr.f32.mxu0 %v2175
  %2521 = vmatmul.mubr.f32.gmra.mrb[0].mxu0 %v1969
  %v2522 = vpop.f32.mrb[0].mxu0
  %v2523 = vadd.f32 %v2036, %v2522
  %v2524 = vpop.f32.mrb[0].mxu0
  %2525 = vmatprep.mubr.f32.mxu0 %v2178
  %2526 = vmatmul.mubr.f32.gmra.mrb[0].mxu0 %v1971
  %v2527 = vpop.f32.mrb[0].mxu0
  %v2528 = vadd.f32 %v2036, %v2527
  %v2529 = vpop.f32.mrb[0].mxu0
  %2530 = vmatprep.mubr.f32.mxu0 %v2181
  %2531 = vmatmul.mubr.f32.gmra.mrb[0].mxu0 %v1973
  %v2532 = vpop.f32.mrb[0].mxu0
  %v2533 = vadd.f32 %v2036, %v2532
  %v2534 = vpop.f32.mrb[0].mxu0
  %2535 = vmatprep.mubr.f32.mxu0 %v2184
  %2536 = vmatmul.mubr.f32.gmra.mrb[0].mxu0 %v1975
  %v2537 = vpop.f32.mrb[0].mxu0
  %v2538 = vadd.f32 %v2036, %v2537
  %v2539 = vpop.f32.mrb[0].mxu0
  %2540 = vmatprep.mubr.f32.mxu0 %v2187
  %2541 = vmatmul.mubr.f32.gmra.mrb[0].mxu0 %v1977
  %v2542 = vpop.f32.mrb[0].mxu0
  %v2543 = vadd.f32 %v2036, %v2542
  %v2544 = vpop.f32.mrb[0].mxu0
  %2545 = vmatprep.mubr.f32.mxu0 %v2190
  %2546 = vmatmul.mubr.f32.gmra.mrb[0].mxu0 %v1979
  %v2547 = vpop.f32.mrb[0].mxu0
  %v2548 = vadd.f32 %v2036, %v2547
  %v2549 = vpop.f32.mrb[0].mxu0
  %2550 = vmatprep.mubr.f32.mxu0 %v2193
  %2551 = vmatmul.mubr.f32.gmra.mrb[0].mxu0 %v1981
  %v2552 = vpop.f32.mrb[0].mxu0
  %v2553 = vadd.f32 %v2036, %v2552
  %v2554 = vpop.f32.mrb[0].mxu0
  %2555 = vmatprep.mubr.f32.mxu0 %v2196
  %2556 = vmatmul.mubr.f32.gmra.mrb[0].mxu0 %v1983
  %v2557 = vpop.f32.mrb[0].mxu0
  %v2558 = vadd.f32 %v2036, %v2557
  %v2559 = vpop.f32.mrb[0].mxu0
  %2560 = vmatprep.mubr.f32.mxu0 %v2199
  %2561 = vmatmul.mubr.f32.gmra.mrb[0].mxu0 %v1985
  %v2562 = vpop.f32.mrb[0].mxu0
  %v2563 = vadd.f32 %v2036, %v2562
  %v2564 = vpop.f32.mrb[0].mxu0
  %2565 = vmatprep.mubr.f32.mxu0 %v2202
  %2566 = vmatmul.mubr.f32.gmra.mrb[0].mxu0 %v1987
  %v2567 = vpop.f32.mrb[0].mxu0
  %v2568 = vadd.f32 %v2036, %v2567
  %v2569 = vpop.f32.mrb[0].mxu0
  %2570 = vmatprep.mubr.f32.mxu0 %v2205
  %2571 = vmatmul.mubr.f32.gmra.mrb[0].mxu0 %v1989
  %v2572 = vpop.f32.mrb[0].mxu0
  %v2573 = vadd.f32 %v2036, %v2572
  %v2574 = vpop.f32.mrb[0].mxu0
  %2575 = vmatprep.mubr.f32.mxu0 %v2208
  %2576 = vmatmul.mubr.f32.gmra.mrb[0].mxu0 %v1991
  %v2577 = vpop.f32.mrb[0].mxu0
  %v2578 = vadd.f32 %v2036, %v2577
  %v2579 = vpop.f32.mrb[0].mxu0
  %2580 = vmatprep.mubr.f32.mxu0 %v2211
  %2581 = vmatmul.mubr.f32.gmra.mrb[0].mxu0 %v1993
  %v2582 = vpop.f32.mrb[0].mxu0
  %v2583 = vadd.f32 %v2036, %v2582
  %v2584 = vpop.f32.mrb[0].mxu0
  %2585 = vmatprep.mubr.f32.mxu0 %v2214
  %2586 = vmatmul.mubr.f32.gmra.mrb[0].mxu0 %v1995
  %v2587 = vpop.f32.mrb[0].mxu0
  %v2588 = vadd.f32 %v2036, %v2587
  %v2589 = vpop.f32.mrb[0].mxu0
  %2590 = vmatprep.mubr.f32.mxu0 %v2217
  %2591 = vmatmul.mubr.f32.gmra.mrb[0].mxu0 %v1997
  %v2592 = vpop.f32.mrb[0].mxu0
  %v2593 = vadd.f32 %v2036, %v2592
  %v2594 = vpop.f32.mrb[0].mxu0
  %2595 = vmatprep.mubr.f32.mxu0 %v2220
  %2596 = vmatmul.mubr.f32.gmra.mrb[0].mxu0 %v1999
  %v2597 = vpop.f32.mrb[0].mxu0
  %v2598 = vadd.f32 %v2036, %v2597
  %v2599 = vpop.f32.mrb[0].mxu0
  %2600 = vmatprep.mubr.f32.mxu0 %v2223
  %2601 = vmatmul.mubr.f32.gmra.mrb[0].mxu0 %v2001
  %v2602 = vpop.f32.mrb[0].mxu0
  %v2603 = vadd.f32 %v2036, %v2602
  %v2604 = vpop.f32.mrb[0].mxu0
  %2605 = vmatprep.mubr.f32.mxu0 %v2226
  %2606 = vmatmul.mubr.f32.gmra.mrb[0].mxu0 %v2003
  %v2607 = vpop.f32.mrb[0].mxu0
  %v2608 = vadd.f32 %v2036, %v2607
  %v2609 = vpop.f32.mrb[0].mxu0
  %2610 = vmatprep.mubr.f32.mxu0 %v2229
  %2611 = vmatmul.mubr.f32.gmra.mrb[0].mxu0 %v2005
  %v2612 = vpop.f32.mrb[0].mxu0
  %v2613 = vadd.f32 %v2036, %v2612
  %v2614 = vpop.f32.mrb[0].mxu0
  %2615 = vdwg.mxu0
  %v2616 = vmax.f32 %v2298, 0.0
  %v2617 = vmax.f32 %v2303, 0.0
  %v2618 = vmax.f32 %v2308, 0.0
  %v2619 = vmax.f32 %v2313, 0.0
  %v2620 = vmax.f32 %v2318, 0.0
  %v2621 = vmax.f32 %v2323, 0.0
  %v2622 = vmax.f32 %v2328, 0.0
  %v2623 = vmax.f32 %v2333, 0.0
  %v2624 = vmax.f32 %v2338, 0.0
  %v2625 = vmax.f32 %v2343, 0.0
  %v2626 = vmax.f32 %v2348, 0.0
  %v2627 = vmax.f32 %v2353, 0.0
  %v2628 = vmax.f32 %v2358, 0.0
  %v2629 = vmax.f32 %v2363, 0.0
  %v2630 = vmax.f32 %v2368, 0.0
  %v2631 = vmax.f32 %v2373, 0.0
  %v2632 = vmax.f32 %v2378, 0.0
  %v2633 = vmax.f32 %v2383, 0.0
  %v2634 = vmax.f32 %v2388, 0.0
  %v2635 = vmax.f32 %v2393, 0.0
  %v2636 = vmax.f32 %v2398, 0.0
  %v2637 = vmax.f32 %v2403, 0.0
  %v2638 = vmax.f32 %v2408, 0.0
  %v2639 = vmax.f32 %v2413, 0.0
  %v2640 = vmax.f32 %v2418, 0.0
  %v2641 = vmax.f32 %v2423, 0.0
  %v2642 = vmax.f32 %v2428, 0.0
  %v2643 = vmax.f32 %v2433, 0.0
  %v2644 = vmax.f32 %v2438, 0.0
  %v2645 = vmax.f32 %v2443, 0.0
  %v2646 = vmax.f32 %v2448, 0.0
  %v2647 = vmax.f32 %v2453, 0.0
  %v2648 = vmax.f32 %v2458, 0.0
  %v2649 = vmax.f32 %v2463, 0.0
  %v2650 = vmax.f32 %v2468, 0.0
  %v2651 = vmax.f32 %v2473, 0.0
  %v2652 = vmax.f32 %v2478, 0.0
  %v2653 = vmax.f32 %v2483, 0.0
  %v2654 = vmax.f32 %v2488, 0.0
  %v2655 = vmax.f32 %v2493, 0.0
  %v2656 = vmax.f32 %v2498, 0.0
  %v2657 = vmax.f32 %v2503, 0.0
  %v2658 = vmax.f32 %v2508, 0.0
  %v2659 = vmax.f32 %v2513, 0.0
  %v2660 = vmax.f32 %v2518, 0.0
  %v2661 = vmax.f32 %v2523, 0.0
  %v2662 = vmax.f32 %v2528, 0.0
  %v2663 = vmax.f32 %v2533, 0.0
  %v2664 = vmax.f32 %v2538, 0.0
  %v2665 = vmax.f32 %v2543, 0.0
  %v2666 = vmax.f32 %v2548, 0.0
  %v2667 = vmax.f32 %v2553, 0.0
  %v2668 = vmax.f32 %v2558, 0.0
  %v2669 = vmax.f32 %v2563, 0.0
  %v2670 = vmax.f32 %v2568, 0.0
  %v2671 = vmax.f32 %v2573, 0.0
  %v2672 = vmax.f32 %v2578, 0.0
  %v2673 = vmax.f32 %v2583, 0.0
  %v2674 = vmax.f32 %v2588, 0.0
  %v2675 = vmax.f32 %v2593, 0.0
  %v2676 = vmax.f32 %v2598, 0.0
  %v2677 = vmax.f32 %v2603, 0.0
  %v2678 = vmax.f32 %v2608, 0.0
  %v2679 = vmax.f32 %v2613, 0.0
  %v2680 = vld [vmem:[%s3] sm:$0xff]
  %v2681 = vld [vmem:[%s3 + $0x8] sm:$0xff]
  %v2682 = vld [vmem:[%s3 + $0x10] sm:$0xff]
  %v2683 = vld [vmem:[%s3 + $0x18] sm:$0xff]
  %v2684 = vld [vmem:[%s3 + $0x20] sm:$0xff]
  %v2685 = vld [vmem:[%s3 + $0x28] sm:$0xff]
  %v2686 = vld [vmem:[%s3 + $0x30] sm:$0xff]
  %v2687 = vld [vmem:[%s3 + $0x38] sm:$0xff]
  %v2688 = vld [vmem:[%s3 + $0x40] sm:$0xff]
  %v2689 = vld [vmem:[%s3 + $0x48] sm:$0xff]
  %v2690 = vld [vmem:[%s3 + $0x50] sm:$0xff]
  %v2691 = vld [vmem:[%s3 + $0x58] sm:$0xff]
  %v2692 = vld [vmem:[%s3 + $0x60] sm:$0xff]
  %v2693 = vld [vmem:[%s3 + $0x68] sm:$0xff]
  %v2694 = vld [vmem:[%s3 + $0x70] sm:$0xff]
  %v2695 = vld [vmem:[%s3 + $0x78] sm:$0xff]
  %v2696 = vld [vmem:[%s4] sm:$0x1]
  %v2698 = vlaneseq
  %v2699 = vshrl.u32 %v2698, 7
  %v2700 = vsub.s32 0, %v2699
  %v2701 = vrot.slane %v2696, %v2700
  %2703 = vmatprep.subr.mxu0 0.0
  %2704 = vmatpush1.msra.mxu0 %v2680
  %2705 = vmatprep.subr.mxu0 0.0
  %2706 = vmatpush1.msra.mxu0 %v2681
  %2707 = vmatprep.subr.mxu0 0.0
  %2708 = vmatpush1.msra.mxu0 %v2682
  %2709 = vmatprep.subr.mxu0 0.0
  %2710 = vmatpush1.msra.mxu0 %v2683
  %2711 = vmatprep.subr.mxu0 0.0
  %2712 = vmatpush1.msra.mxu0 %v2684
  %2713 = vmatprep.subr.mxu0 0.0
  %2714 = vmatpush1.msra.mxu0 %v2685
  %2715 = vmatprep.subr.mxu0 0.0
  %2716 = vmatpush1.msra.mxu0 %v2686
  %2717 = vmatprep.subr.mxu0 0.0
  %2718 = vmatpush1.msra.mxu0 %v2687
  %2719 = vmatprep.subr.mxu0 0.0
  %2720 = vmatpush1.msra.mxu0 %v2688
  %2721 = vmatprep.subr.mxu0 0.0
  %2722 = vmatpush1.msra.mxu0 %v2689
  %2723 = vmatprep.subr.mxu0 0.0
  %2724 = vmatpush1.msra.mxu0 %v2690
  %2725 = vmatprep.subr.mxu0 0.0
  %2726 = vmatpush1.msra.mxu0 %v2691
  %2727 = vmatprep.subr.mxu0 0.0
  %2728 = vmatpush1.msra.mxu0 %v2692
  %2729 = vmatprep.subr.mxu0 0.0
  %2730 = vmatpush1.msra.mxu0 %v2693
  %2731 = vmatprep.subr.mxu0 0.0
  %2732 = vmatpush1.msra.mxu0 %v2694
  %2733 = vmatprep.subr.mxu0 0.0
  %2734 = vmatpush1.msra.mxu0 %v2695
  %2735 = vmatprep.subr.mxu0 0.0
  %2736 = vmatpush1.msra.mxu0 0.0
  %2737 = vmatprep.subr.mxu0 0.0
  %2738 = vmatpush1.msra.mxu0 0.0
  %2739 = vmatprep.subr.mxu0 0.0
  %2740 = vmatpush1.msra.mxu0 0.0
  %2741 = vmatprep.subr.mxu0 0.0
  %2742 = vmatpush1.msra.mxu0 0.0
  %2743 = vmatprep.subr.mxu0 0.0
  %2744 = vmatpush1.msra.mxu0 0.0
  %2745 = vmatprep.subr.mxu0 0.0
  %2746 = vmatpush1.msra.mxu0 0.0
  %2747 = vmatprep.subr.mxu0 0.0
  %2748 = vmatpush1.msra.mxu0 0.0
  %2749 = vmatprep.subr.mxu0 0.0
  %2750 = vmatpush1.msra.mxu0 0.0
  %2751 = vmatprep.subr.mxu0 0.0
  %2752 = vmatpush1.msra.mxu0 0.0
  %2753 = vmatprep.subr.mxu0 0.0
  %2754 = vmatpush1.msra.mxu0 0.0
  %2755 = vmatprep.subr.mxu0 0.0
  %2756 = vmatpush1.msra.mxu0 0.0
  %2757 = vmatprep.subr.mxu0 0.0
  %2758 = vmatpush1.msra.mxu0 0.0
  %2759 = vmatprep.subr.mxu0 0.0
  %2760 = vmatpush1.msra.mxu0 0.0
  %2761 = vmatprep.subr.mxu0 0.0
  %2762 = vmatpush1.msra.mxu0 0.0
  %2763 = vmatprep.subr.mxu0 0.0
  %2764 = vmatpush1.msra.mxu0 0.0
  %2765 = vmatprep.subr.mxu0 0.0
  %2766 = vmatpush1.msra.mxu0 0.0
  %2767 = vmatprep.mubr.f32.mxu0 0.0
  %2768 = vmatmul.mubr.f32.gmra.mrb[0].mxu0 %v2616
  %v2769 = vpop.f32.mrb[0].mxu0
  %v2770 = vadd.f32 %v2701, %v2769
  %v2771 = vpop.f32.mrb[0].mxu0
  %2772 = vmatprep.mubr.f32.mxu0 0.0
  %2773 = vmatmul.mubr.f32.gmra.mrb[0].mxu0 %v2617
  %v2774 = vpop.f32.mrb[0].mxu0
  %v2775 = vadd.f32 %v2701, %v2774
  %v2776 = vpop.f32.mrb[0].mxu0
  %2777 = vmatprep.mubr.f32.mxu0 0.0
  %2778 = vmatmul.mubr.f32.gmra.mrb[0].mxu0 %v2618
  %v2779 = vpop.f32.mrb[0].mxu0
  %v2780 = vadd.f32 %v2701, %v2779
  %v2781 = vpop.f32.mrb[0].mxu0
  %2782 = vmatprep.mubr.f32.mxu0 0.0
  %2783 = vmatmul.mubr.f32.gmra.mrb[0].mxu0 %v2619
  %v2784 = vpop.f32.mrb[0].mxu0
  %v2785 = vadd.f32 %v2701, %v2784
  %v2786 = vpop.f32.mrb[0].mxu0
  %2787 = vmatprep.mubr.f32.mxu0 0.0
  %2788 = vmatmul.mubr.f32.gmra.mrb[0].mxu0 %v2620
  %v2789 = vpop.f32.mrb[0].mxu0
  %v2790 = vadd.f32 %v2701, %v2789
  %v2791 = vpop.f32.mrb[0].mxu0
  %2792 = vmatprep.mubr.f32.mxu0 0.0
  %2793 = vmatmul.mubr.f32.gmra.mrb[0].mxu0 %v2621
  %v2794 = vpop.f32.mrb[0].mxu0
  %v2795 = vadd.f32 %v2701, %v2794
  %v2796 = vpop.f32.mrb[0].mxu0
  %2797 = vmatprep.mubr.f32.mxu0 0.0
  %2798 = vmatmul.mubr.f32.gmra.mrb[0].mxu0 %v2622
  %v2799 = vpop.f32.mrb[0].mxu0
  %v2800 = vadd.f32 %v2701, %v2799
  %v2801 = vpop.f32.mrb[0].mxu0
  %2802 = vmatprep.mubr.f32.mxu0 0.0
  %2803 = vmatmul.mubr.f32.gmra.mrb[0].mxu0 %v2623
  %v2804 = vpop.f32.mrb[0].mxu0
  %v2805 = vadd.f32 %v2701, %v2804
  %v2806 = vpop.f32.mrb[0].mxu0
  %2807 = vmatprep.mubr.f32.mxu0 0.0
  %2808 = vmatmul.mubr.f32.gmra.mrb[0].mxu0 %v2624
  %v2809 = vpop.f32.mrb[0].mxu0
  %v2810 = vadd.f32 %v2701, %v2809
  %v2811 = vpop.f32.mrb[0].mxu0
  %2812 = vmatprep.mubr.f32.mxu0 0.0
  %2813 = vmatmul.mubr.f32.gmra.mrb[0].mxu0 %v2625
  %v2814 = vpop.f32.mrb[0].mxu0
  %v2815 = vadd.f32 %v2701, %v2814
  %v2816 = vpop.f32.mrb[0].mxu0
  %2817 = vmatprep.mubr.f32.mxu0 0.0
  %2818 = vmatmul.mubr.f32.gmra.mrb[0].mxu0 %v2626
  %v2819 = vpop.f32.mrb[0].mxu0
  %v2820 = vadd.f32 %v2701, %v2819
  %v2821 = vpop.f32.mrb[0].mxu0
  %2822 = vmatprep.mubr.f32.mxu0 0.0
  %2823 = vmatmul.mubr.f32.gmra.mrb[0].mxu0 %v2627
  %v2824 = vpop.f32.mrb[0].mxu0
  %v2825 = vadd.f32 %v2701, %v2824
  %v2826 = vpop.f32.mrb[0].mxu0
  %2827 = vmatprep.mubr.f32.mxu0 0.0
  %2828 = vmatmul.mubr.f32.gmra.mrb[0].mxu0 %v2628
  %v2829 = vpop.f32.mrb[0].mxu0
  %v2830 = vadd.f32 %v2701, %v2829
  %v2831 = vpop.f32.mrb[0].mxu0
  %2832 = vmatprep.mubr.f32.mxu0 0.0
  %2833 = vmatmul.mubr.f32.gmra.mrb[0].mxu0 %v2629
  %v2834 = vpop.f32.mrb[0].mxu0
  %v2835 = vadd.f32 %v2701, %v2834
  %v2836 = vpop.f32.mrb[0].mxu0
  %2837 = vmatprep.mubr.f32.mxu0 0.0
  %2838 = vmatmul.mubr.f32.gmra.mrb[0].mxu0 %v2630
  %v2839 = vpop.f32.mrb[0].mxu0
  %v2840 = vadd.f32 %v2701, %v2839
  %v2841 = vpop.f32.mrb[0].mxu0
  %2842 = vmatprep.mubr.f32.mxu0 0.0
  %2843 = vmatmul.mubr.f32.gmra.mrb[0].mxu0 %v2631
  %v2844 = vpop.f32.mrb[0].mxu0
  %v2845 = vadd.f32 %v2701, %v2844
  %v2846 = vpop.f32.mrb[0].mxu0
  %2847 = vmatprep.mubr.f32.mxu0 0.0
  %2848 = vmatmul.mubr.f32.gmra.mrb[0].mxu0 %v2632
  %v2849 = vpop.f32.mrb[0].mxu0
  %v2850 = vadd.f32 %v2701, %v2849
  %v2851 = vpop.f32.mrb[0].mxu0
  %2852 = vmatprep.mubr.f32.mxu0 0.0
  %2853 = vmatmul.mubr.f32.gmra.mrb[0].mxu0 %v2633
  %v2854 = vpop.f32.mrb[0].mxu0
  %v2855 = vadd.f32 %v2701, %v2854
  %v2856 = vpop.f32.mrb[0].mxu0
  %2857 = vmatprep.mubr.f32.mxu0 0.0
  %2858 = vmatmul.mubr.f32.gmra.mrb[0].mxu0 %v2634
  %v2859 = vpop.f32.mrb[0].mxu0
  %v2860 = vadd.f32 %v2701, %v2859
  %v2861 = vpop.f32.mrb[0].mxu0
  %2862 = vmatprep.mubr.f32.mxu0 0.0
  %2863 = vmatmul.mubr.f32.gmra.mrb[0].mxu0 %v2635
  %v2864 = vpop.f32.mrb[0].mxu0
  %v2865 = vadd.f32 %v2701, %v2864
  %v2866 = vpop.f32.mrb[0].mxu0
  %2867 = vmatprep.mubr.f32.mxu0 0.0
  %2868 = vmatmul.mubr.f32.gmra.mrb[0].mxu0 %v2636
  %v2869 = vpop.f32.mrb[0].mxu0
  %v2870 = vadd.f32 %v2701, %v2869
  %v2871 = vpop.f32.mrb[0].mxu0
  %2872 = vmatprep.mubr.f32.mxu0 0.0
  %2873 = vmatmul.mubr.f32.gmra.mrb[0].mxu0 %v2637
  %v2874 = vpop.f32.mrb[0].mxu0
  %v2875 = vadd.f32 %v2701, %v2874
  %v2876 = vpop.f32.mrb[0].mxu0
  %2877 = vmatprep.mubr.f32.mxu0 0.0
  %2878 = vmatmul.mubr.f32.gmra.mrb[0].mxu0 %v2638
  %v2879 = vpop.f32.mrb[0].mxu0
  %v2880 = vadd.f32 %v2701, %v2879
  %v2881 = vpop.f32.mrb[0].mxu0
  %2882 = vmatprep.mubr.f32.mxu0 0.0
  %2883 = vmatmul.mubr.f32.gmra.mrb[0].mxu0 %v2639
  %v2884 = vpop.f32.mrb[0].mxu0
  %v2885 = vadd.f32 %v2701, %v2884
  %v2886 = vpop.f32.mrb[0].mxu0
  %2887 = vmatprep.mubr.f32.mxu0 0.0
  %2888 = vmatmul.mubr.f32.gmra.mrb[0].mxu0 %v2640
  %v2889 = vpop.f32.mrb[0].mxu0
  %v2890 = vadd.f32 %v2701, %v2889
  %v2891 = vpop.f32.mrb[0].mxu0
  %2892 = vmatprep.mubr.f32.mxu0 0.0
  %2893 = vmatmul.mubr.f32.gmra.mrb[0].mxu0 %v2641
  %v2894 = vpop.f32.mrb[0].mxu0
  %v2895 = vadd.f32 %v2701, %v2894
  %v2896 = vpop.f32.mrb[0].mxu0
  %2897 = vmatprep.mubr.f32.mxu0 0.0
  %2898 = vmatmul.mubr.f32.gmra.mrb[0].mxu0 %v2642
  %v2899 = vpop.f32.mrb[0].mxu0
  %v2900 = vadd.f32 %v2701, %v2899
  %v2901 = vpop.f32.mrb[0].mxu0
  %2902 = vmatprep.mubr.f32.mxu0 0.0
  %2903 = vmatmul.mubr.f32.gmra.mrb[0].mxu0 %v2643
  %v2904 = vpop.f32.mrb[0].mxu0
  %v2905 = vadd.f32 %v2701, %v2904
  %v2906 = vpop.f32.mrb[0].mxu0
  %2907 = vmatprep.mubr.f32.mxu0 0.0
  %2908 = vmatmul.mubr.f32.gmra.mrb[0].mxu0 %v2644
  %v2909 = vpop.f32.mrb[0].mxu0
  %v2910 = vadd.f32 %v2701, %v2909
  %v2911 = vpop.f32.mrb[0].mxu0
  %2912 = vmatprep.mubr.f32.mxu0 0.0
  %2913 = vmatmul.mubr.f32.gmra.mrb[0].mxu0 %v2645
  %v2914 = vpop.f32.mrb[0].mxu0
  %v2915 = vadd.f32 %v2701, %v2914
  %v2916 = vpop.f32.mrb[0].mxu0
  %2917 = vmatprep.mubr.f32.mxu0 0.0
  %2918 = vmatmul.mubr.f32.gmra.mrb[0].mxu0 %v2646
  %v2919 = vpop.f32.mrb[0].mxu0
  %v2920 = vadd.f32 %v2701, %v2919
  %v2921 = vpop.f32.mrb[0].mxu0
  %2922 = vmatprep.mubr.f32.mxu0 0.0
  %2923 = vmatmul.mubr.f32.gmra.mrb[0].mxu0 %v2647
  %v2924 = vpop.f32.mrb[0].mxu0
  %v2925 = vadd.f32 %v2701, %v2924
  %v2926 = vpop.f32.mrb[0].mxu0
  %2927 = vmatprep.mubr.f32.mxu0 0.0
  %2928 = vmatmul.mubr.f32.gmra.mrb[0].mxu0 %v2648
  %v2929 = vpop.f32.mrb[0].mxu0
  %v2930 = vadd.f32 %v2701, %v2929
  %v2931 = vpop.f32.mrb[0].mxu0
  %2932 = vmatprep.mubr.f32.mxu0 0.0
  %2933 = vmatmul.mubr.f32.gmra.mrb[0].mxu0 %v2649
  %v2934 = vpop.f32.mrb[0].mxu0
  %v2935 = vadd.f32 %v2701, %v2934
  %v2936 = vpop.f32.mrb[0].mxu0
  %2937 = vmatprep.mubr.f32.mxu0 0.0
  %2938 = vmatmul.mubr.f32.gmra.mrb[0].mxu0 %v2650
  %v2939 = vpop.f32.mrb[0].mxu0
  %v2940 = vadd.f32 %v2701, %v2939
  %v2941 = vpop.f32.mrb[0].mxu0
  %2942 = vmatprep.mubr.f32.mxu0 0.0
  %2943 = vmatmul.mubr.f32.gmra.mrb[0].mxu0 %v2651
  %v2944 = vpop.f32.mrb[0].mxu0
  %v2945 = vadd.f32 %v2701, %v2944
  %v2946 = vpop.f32.mrb[0].mxu0
  %2947 = vmatprep.mubr.f32.mxu0 0.0
  %2948 = vmatmul.mubr.f32.gmra.mrb[0].mxu0 %v2652
  %v2949 = vpop.f32.mrb[0].mxu0
  %v2950 = vadd.f32 %v2701, %v2949
  %v2951 = vpop.f32.mrb[0].mxu0
  %2952 = vmatprep.mubr.f32.mxu0 0.0
  %2953 = vmatmul.mubr.f32.gmra.mrb[0].mxu0 %v2653
  %v2954 = vpop.f32.mrb[0].mxu0
  %v2955 = vadd.f32 %v2701, %v2954
  %v2956 = vpop.f32.mrb[0].mxu0
  %2957 = vmatprep.mubr.f32.mxu0 0.0
  %2958 = vmatmul.mubr.f32.gmra.mrb[0].mxu0 %v2654
  %v2959 = vpop.f32.mrb[0].mxu0
  %v2960 = vadd.f32 %v2701, %v2959
  %v2961 = vpop.f32.mrb[0].mxu0
  %2962 = vmatprep.mubr.f32.mxu0 0.0
  %2963 = vmatmul.mubr.f32.gmra.mrb[0].mxu0 %v2655
  %v2964 = vpop.f32.mrb[0].mxu0
  %v2965 = vadd.f32 %v2701, %v2964
  %v2966 = vpop.f32.mrb[0].mxu0
  %2967 = vmatprep.mubr.f32.mxu0 0.0
  %2968 = vmatmul.mubr.f32.gmra.mrb[0].mxu0 %v2656
  %v2969 = vpop.f32.mrb[0].mxu0
  %v2970 = vadd.f32 %v2701, %v2969
  %v2971 = vpop.f32.mrb[0].mxu0
  %2972 = vmatprep.mubr.f32.mxu0 0.0
  %2973 = vmatmul.mubr.f32.gmra.mrb[0].mxu0 %v2657
  %v2974 = vpop.f32.mrb[0].mxu0
  %v2975 = vadd.f32 %v2701, %v2974
  %v2976 = vpop.f32.mrb[0].mxu0
  %2977 = vmatprep.mubr.f32.mxu0 0.0
  %2978 = vmatmul.mubr.f32.gmra.mrb[0].mxu0 %v2658
  %v2979 = vpop.f32.mrb[0].mxu0
  %v2980 = vadd.f32 %v2701, %v2979
  %v2981 = vpop.f32.mrb[0].mxu0
  %2982 = vmatprep.mubr.f32.mxu0 0.0
  %2983 = vmatmul.mubr.f32.gmra.mrb[0].mxu0 %v2659
  %v2984 = vpop.f32.mrb[0].mxu0
  %v2985 = vadd.f32 %v2701, %v2984
  %v2986 = vpop.f32.mrb[0].mxu0
  %2987 = vmatprep.mubr.f32.mxu0 0.0
  %2988 = vmatmul.mubr.f32.gmra.mrb[0].mxu0 %v2660
  %v2989 = vpop.f32.mrb[0].mxu0
  %v2990 = vadd.f32 %v2701, %v2989
  %v2991 = vpop.f32.mrb[0].mxu0
  %2992 = vmatprep.mubr.f32.mxu0 0.0
  %2993 = vmatmul.mubr.f32.gmra.mrb[0].mxu0 %v2661
  %v2994 = vpop.f32.mrb[0].mxu0
  %v2995 = vadd.f32 %v2701, %v2994
  %v2996 = vpop.f32.mrb[0].mxu0
  %2997 = vmatprep.mubr.f32.mxu0 0.0
  %2998 = vmatmul.mubr.f32.gmra.mrb[0].mxu0 %v2662
  %v2999 = vpop.f32.mrb[0].mxu0
  %v3000 = vadd.f32 %v2701, %v2999
  %v3001 = vpop.f32.mrb[0].mxu0
  %3002 = vmatprep.mubr.f32.mxu0 0.0
  %3003 = vmatmul.mubr.f32.gmra.mrb[0].mxu0 %v2663
  %v3004 = vpop.f32.mrb[0].mxu0
  %v3005 = vadd.f32 %v2701, %v3004
  %v3006 = vpop.f32.mrb[0].mxu0
  %3007 = vmatprep.mubr.f32.mxu0 0.0
  %3008 = vmatmul.mubr.f32.gmra.mrb[0].mxu0 %v2664
  %v3009 = vpop.f32.mrb[0].mxu0
  %v3010 = vadd.f32 %v2701, %v3009
  %v3011 = vpop.f32.mrb[0].mxu0
  %3012 = vmatprep.mubr.f32.mxu0 0.0
  %3013 = vmatmul.mubr.f32.gmra.mrb[0].mxu0 %v2665
  %v3014 = vpop.f32.mrb[0].mxu0
  %v3015 = vadd.f32 %v2701, %v3014
  %v3016 = vpop.f32.mrb[0].mxu0
  %3017 = vmatprep.mubr.f32.mxu0 0.0
  %3018 = vmatmul.mubr.f32.gmra.mrb[0].mxu0 %v2666
  %v3019 = vpop.f32.mrb[0].mxu0
  %v3020 = vadd.f32 %v2701, %v3019
  %v3021 = vpop.f32.mrb[0].mxu0
  %3022 = vmatprep.mubr.f32.mxu0 0.0
  %3023 = vmatmul.mubr.f32.gmra.mrb[0].mxu0 %v2667
  %v3024 = vpop.f32.mrb[0].mxu0
  %v3025 = vadd.f32 %v2701, %v3024
  %v3026 = vpop.f32.mrb[0].mxu0
  %3027 = vmatprep.mubr.f32.mxu0 0.0
  %3028 = vmatmul.mubr.f32.gmra.mrb[0].mxu0 %v2668
  %v3029 = vpop.f32.mrb[0].mxu0
  %v3030 = vadd.f32 %v2701, %v3029
  %v3031 = vpop.f32.mrb[0].mxu0
  %3032 = vmatprep.mubr.f32.mxu0 0.0
  %3033 = vmatmul.mubr.f32.gmra.mrb[0].mxu0 %v2669
  %v3034 = vpop.f32.mrb[0].mxu0
  %v3035 = vadd.f32 %v2701, %v3034
  %v3036 = vpop.f32.mrb[0].mxu0
  %3037 = vmatprep.mubr.f32.mxu0 0.0
  %3038 = vmatmul.mubr.f32.gmra.mrb[0].mxu0 %v2670
  %v3039 = vpop.f32.mrb[0].mxu0
  %v3040 = vadd.f32 %v2701, %v3039
  %v3041 = vpop.f32.mrb[0].mxu0
  %3042 = vmatprep.mubr.f32.mxu0 0.0
  %3043 = vmatmul.mubr.f32.gmra.mrb[0].mxu0 %v2671
  %v3044 = vpop.f32.mrb[0].mxu0
  %v3045 = vadd.f32 %v2701, %v3044
  %v3046 = vpop.f32.mrb[0].mxu0
  %3047 = vmatprep.mubr.f32.mxu0 0.0
  %3048 = vmatmul.mubr.f32.gmra.mrb[0].mxu0 %v2672
  %v3049 = vpop.f32.mrb[0].mxu0
  %v3050 = vadd.f32 %v2701, %v3049
  %v3051 = vpop.f32.mrb[0].mxu0
  %3052 = vmatprep.mubr.f32.mxu0 0.0
  %3053 = vmatmul.mubr.f32.gmra.mrb[0].mxu0 %v2673
  %v3054 = vpop.f32.mrb[0].mxu0
  %v3055 = vadd.f32 %v2701, %v3054
  %v3056 = vpop.f32.mrb[0].mxu0
  %3057 = vmatprep.mubr.f32.mxu0 0.0
  %3058 = vmatmul.mubr.f32.gmra.mrb[0].mxu0 %v2674
  %v3059 = vpop.f32.mrb[0].mxu0
  %v3060 = vadd.f32 %v2701, %v3059
  %v3061 = vpop.f32.mrb[0].mxu0
  %3062 = vmatprep.mubr.f32.mxu0 0.0
  %3063 = vmatmul.mubr.f32.gmra.mrb[0].mxu0 %v2675
  %v3064 = vpop.f32.mrb[0].mxu0
  %v3065 = vadd.f32 %v2701, %v3064
  %v3066 = vpop.f32.mrb[0].mxu0
  %3067 = vmatprep.mubr.f32.mxu0 0.0
  %3068 = vmatmul.mubr.f32.gmra.mrb[0].mxu0 %v2676
  %v3069 = vpop.f32.mrb[0].mxu0
  %v3070 = vadd.f32 %v2701, %v3069
  %v3071 = vpop.f32.mrb[0].mxu0
  %3072 = vmatprep.mubr.f32.mxu0 0.0
  %3073 = vmatmul.mubr.f32.gmra.mrb[0].mxu0 %v2677
  %v3074 = vpop.f32.mrb[0].mxu0
  %v3075 = vadd.f32 %v2701, %v3074
  %v3076 = vpop.f32.mrb[0].mxu0
  %3077 = vmatprep.mubr.f32.mxu0 0.0
  %3078 = vmatmul.mubr.f32.gmra.mrb[0].mxu0 %v2678
  %v3079 = vpop.f32.mrb[0].mxu0
  %v3080 = vadd.f32 %v2701, %v3079
  %v3081 = vpop.f32.mrb[0].mxu0
  %3082 = vmatprep.mubr.f32.mxu0 0.0
  %3083 = vmatmul.mubr.f32.gmra.mrb[0].mxu0 %v2679
  %v3084 = vpop.f32.mrb[0].mxu0
  %v3085 = vadd.f32 %v2701, %v3084
  %v3086 = vpop.f32.mrb[0].mxu0
  %3087 = vdwg.mxu0
  %3088 = vst [vmem:[%s5] sm:$0xff] %v2770
  %3089 = vst [vmem:[%s5 + $0x8] sm:$0xff] %v2775
  %3090 = vst [vmem:[%s5 + $0x10] sm:$0xff] %v2780
  %3091 = vst [vmem:[%s5 + $0x18] sm:$0xff] %v2785
  %3092 = vst [vmem:[%s5 + $0x20] sm:$0xff] %v2790
  %3093 = vst [vmem:[%s5 + $0x28] sm:$0xff] %v2795
  %3094 = vst [vmem:[%s5 + $0x30] sm:$0xff] %v2800
  %3095 = vst [vmem:[%s5 + $0x38] sm:$0xff] %v2805
  %3096 = vst [vmem:[%s5 + $0x40] sm:$0xff] %v2810
  %3097 = vst [vmem:[%s5 + $0x48] sm:$0xff] %v2815
  %3098 = vst [vmem:[%s5 + $0x50] sm:$0xff] %v2820
  %3099 = vst [vmem:[%s5 + $0x58] sm:$0xff] %v2825
  %3100 = vst [vmem:[%s5 + $0x60] sm:$0xff] %v2830
  %3101 = vst [vmem:[%s5 + $0x68] sm:$0xff] %v2835
  %3102 = vst [vmem:[%s5 + $0x70] sm:$0xff] %v2840
  %3103 = vst [vmem:[%s5 + $0x78] sm:$0xff] %v2845
  %3104 = vst [vmem:[%s5 + $0x80] sm:$0xff] %v2850
  %3105 = vst [vmem:[%s5 + $0x88] sm:$0xff] %v2855
  %3106 = vst [vmem:[%s5 + $0x90] sm:$0xff] %v2860
  %3107 = vst [vmem:[%s5 + $0x98] sm:$0xff] %v2865
  %3108 = vst [vmem:[%s5 + $0xa0] sm:$0xff] %v2870
  %3109 = vst [vmem:[%s5 + $0xa8] sm:$0xff] %v2875
  %3110 = vst [vmem:[%s5 + $0xb0] sm:$0xff] %v2880
  %3111 = vst [vmem:[%s5 + $0xb8] sm:$0xff] %v2885
  %3112 = vst [vmem:[%s5 + $0xc0] sm:$0xff] %v2890
  %3113 = vst [vmem:[%s5 + $0xc8] sm:$0xff] %v2895
  %3114 = vst [vmem:[%s5 + $0xd0] sm:$0xff] %v2900
  %3115 = vst [vmem:[%s5 + $0xd8] sm:$0xff] %v2905
  %3116 = vst [vmem:[%s5 + $0xe0] sm:$0xff] %v2910
  %3117 = vst [vmem:[%s5 + $0xe8] sm:$0xff] %v2915
  %3118 = vst [vmem:[%s5 + $0xf0] sm:$0xff] %v2920
  %3119 = vst [vmem:[%s5 + $0xf8] sm:$0xff] %v2925
  %3120 = vst [vmem:[%s5 + $0x100] sm:$0xff] %v2930
  %3121 = vst [vmem:[%s5 + $0x108] sm:$0xff] %v2935
  %3122 = vst [vmem:[%s5 + $0x110] sm:$0xff] %v2940
  %3123 = vst [vmem:[%s5 + $0x118] sm:$0xff] %v2945
  %3124 = vst [vmem:[%s5 + $0x120] sm:$0xff] %v2950
  %3125 = vst [vmem:[%s5 + $0x128] sm:$0xff] %v2955
  %3126 = vst [vmem:[%s5 + $0x130] sm:$0xff] %v2960
  %3127 = vst [vmem:[%s5 + $0x138] sm:$0xff] %v2965
  %3128 = vst [vmem:[%s5 + $0x140] sm:$0xff] %v2970
  %3129 = vst [vmem:[%s5 + $0x148] sm:$0xff] %v2975
  %3130 = vst [vmem:[%s5 + $0x150] sm:$0xff] %v2980
  %3131 = vst [vmem:[%s5 + $0x158] sm:$0xff] %v2985
  %3132 = vst [vmem:[%s5 + $0x160] sm:$0xff] %v2990
  %3133 = vst [vmem:[%s5 + $0x168] sm:$0xff] %v2995
  %3134 = vst [vmem:[%s5 + $0x170] sm:$0xff] %v3000
  %3135 = vst [vmem:[%s5 + $0x178] sm:$0xff] %v3005
  %3136 = vst [vmem:[%s5 + $0x180] sm:$0xff] %v3010
  %3137 = vst [vmem:[%s5 + $0x188] sm:$0xff] %v3015
  %3138 = vst [vmem:[%s5 + $0x190] sm:$0xff] %v3020
  %3139 = vst [vmem:[%s5 + $0x198] sm:$0xff] %v3025
  %3140 = vst [vmem:[%s5 + $0x1a0] sm:$0xff] %v3030
  %3141 = vst [vmem:[%s5 + $0x1a8] sm:$0xff] %v3035
  %3142 = vst [vmem:[%s5 + $0x1b0] sm:$0xff] %v3040
  %3143 = vst [vmem:[%s5 + $0x1b8] sm:$0xff] %v3045
  %3144 = vst [vmem:[%s5 + $0x1c0] sm:$0xff] %v3050
  %3145 = vst [vmem:[%s5 + $0x1c8] sm:$0xff] %v3055
  %3146 = vst [vmem:[%s5 + $0x1d0] sm:$0xff] %v3060
  %3147 = vst [vmem:[%s5 + $0x1d8] sm:$0xff] %v3065
  %3148 = vst [vmem:[%s5 + $0x1e0] sm:$0xff] %v3070
  %3149 = vst [vmem:[%s5 + $0x1e8] sm:$0xff] %v3075
  %3150 = vst [vmem:[%s5 + $0x1f0] sm:$0xff] %v3080
  %3151 = vst [vmem:[%s5 + $0x1f8] sm:$0xff] %v3085
  // Predicated region
  $region22: #{_fused_forward.1} parent=0 // pred_check
    _
  $region23: #{_fused_forward.1} parent=0 // pred_check_branch
    %3153 = sbr.rel (0) target = $region25
  $region24: #{_fused_forward.1} parent=0 // pred_region
    _
  $region25: #{_fused_forward.1} parent=0 // pred_fallthru
    _
  // Predicated region
  $region26: #{_fused_forward.1} parent=0 // pred_check
    _
  $region27: #{_fused_forward.1} parent=0 // pred_check_branch
    %3155 = sbr.rel (0) target = $region29
  $region28: #{_fused_forward.1} parent=0 // pred_region
    _
  $region29: #{_fused_forward.1} parent=0 // pred_fallthru
    _

</llo_original>
